<compile_context>
chip_gen: v6e
topology: v6e:2x2x1
jax: 0.10.0
libtpu: 0.0.40
codegen_flags: <defaults>
</compile_context>

<pallas_src>
import functools
import math

import numpy as np
import jax
import jax.numpy as jnp
from jax.experimental import pallas as pl
from jax.experimental.pallas import tpu as pltpu


def _radial_fwd_kernel(*refs, ic):
    """Per (time-frame, k-space-tile) forward operator.

    Ref shapes (per grid step (t, s)):
      x_ref  : (1, 2, nx, ny)       image (real/imag), f32
      i_ref  : (1, 2, nx, ny)       intensity correction (only when ic=True)
      cs_ref : (2, nc, nx, ny)      coil sensitivities, bf16 (real/imag leading)
      k_ref  : (1, 2, KT)           k-space trajectory tile (kx, ky), radians
      w_ref  : (1, nc, 2, KT)       density compensation tile (native layout)
      y_ref  : (1, 2, nc, KT)       output radial k-space tile
      lhs_ref: (2*nc*nx, ny) bf16   persistent per-frame MXU lhs (scratch)
    """
    if ic:
        x_ref, i_ref, cs_ref, k_ref, w_ref, y_ref, lhs_ref = refs
    else:
        x_ref, cs_ref, k_ref, w_ref, y_ref, lhs_ref = refs
        i_ref = None

    _, nc, nx, ny = cs_ref.shape
    kt = k_ref.shape[-1]
    ncnx = nc * nx
    scale = 1.0 / math.sqrt(float(nx * ny))            # norm='ortho'

    # ---- per-frame LHS build, hoisted out of the k-tile loop --------------
    # Depends only on t.  The k-tile axis is "arbitrary", so a frame's k tiles
    # run consecutively on one core and the scratch persists across them.
    # (If nt == 1 on a 2-TC chip this serializes onto one core; acceptable.)
    @pl.when(pl.program_id(1) == 0)
    def _build_lhs():
        xr = x_ref[0, 0]                               # (nx, ny) f32
        xi = x_ref[0, 1]
        if ic:
            ir = i_ref[0, 0]
            im = i_ref[0, 1]
            xr, xi = xr * ir - xi * im, xr * im + xi * ir
        csr = cs_ref[0].astype(jnp.float32)            # (nc, nx, ny)
        csi = cs_ref[1].astype(jnp.float32)
        gr = xr[None] * csr - xi[None] * csi           # (nc, nx, ny)
        gi = xr[None] * csi + xi[None] * csr
        # Write the two halves straight into the bf16 scratch
        # (no big f32 concatenate / extra cast copy).
        lhs_ref[0:ncnx, :] = gr.reshape(ncnx, ny).astype(jnp.bfloat16)
        lhs_ref[ncnx:2 * ncnx, :] = gi.reshape(ncnx, ny).astype(jnp.bfloat16)

    # ---- separable NDFT basis (EUP work is (nx + 2*ny)*KT per tile) -------
    kk = k_ref[0]                                      # (2, KT)
    kx = kk[0:1, :]                                    # (1, KT)
    ky = kk[1:2, :]

    # y-basis: one cos over a (ny, 2*KT) phase whose second half carries a
    # -pi/2 offset, so columns [0:KT] = cos and [KT:2KT] = sin.  No
    # materialized (ny, 2*KT) cos/sin concatenate.
    ky2 = jnp.concatenate([ky, ky], axis=1)                          # (1, 2KT)
    offs = jnp.concatenate(
        [jnp.zeros((1, kt), jnp.float32),
         jnp.full((1, kt), 0.5 * math.pi, jnp.float32)], axis=1)     # (1, 2KT)
    jy = (jax.lax.broadcasted_iota(jnp.int32, (ny, 2 * kt), 0)
          .astype(jnp.float32) - float(ny // 2))                     # (ny, 2KT)
    rhs = jnp.cos(jy * ky2 - offs).astype(jnp.bfloat16)              # (ny, 2KT)

    # x-basis (kept in f32: stage-2 accumulation stays f32 for accuracy).
    ixp = (jax.lax.broadcasted_iota(jnp.int32, (nx, kt), 0)
           .astype(jnp.float32) - float(nx // 2))                    # (nx, KT)
    ph_x = ixp * kx
    cos_x = jnp.cos(ph_x)
    sin_x = jnp.sin(ph_x)
    # 3-multiply complex-rotation (Karatsuba) precombines for exp(-i*px*kx).
    xk_a = -(cos_x + sin_x)                            # pairs with t_r
    xk_b = cos_x - sin_x                               # pairs with t_i

    # ---- stage 1: one fused bf16 MXU matmul over the ny axis --------------
    q = jnp.dot(lhs_ref[...], rhs,
                preferred_element_type=jnp.float32)    # (2*nc*nx, 2*KT) f32
    t_r = (q[:ncnx, :kt] + q[ncnx:, kt:]).reshape(nc, nx, kt)
    t_i = (q[ncnx:, :kt] - q[:ncnx, kt:]).reshape(nc, nx, kt)

    # ---- stage 2: rotate by exp(-i*px*kx), reduce over nx (XLU reduce) ----
    # (t_r + i t_i) * (cos_x - i sin_x) with 3 multiplies per element:
    k1 = cos_x[None] * (t_r + t_i)
    y_r = jnp.sum(k1 - t_i * xk_b[None], axis=1)       # (nc, KT)
    y_i = jnp.sum(k1 + t_r * xk_a[None], axis=1)       # (nc, KT)

    # ---- density compensation + ortho scale, per-channel stores -----------
    sw = jnp.sqrt(w_ref[0]) * scale                    # (nc, 2, KT)
    y_ref[0, 0] = y_r * sw[:, 0, :]
    y_ref[0, 1] = y_i * sw[:, 1, :]


def _round_up(a, b):
    return ((a + b - 1) // b) * b


def _vmem_capacity_bytes():
    try:
        return int(pltpu.get_tpu_info().vmem_capacity_bytes)
    except Exception:
        return 64 * 1024 * 1024            # conservative (v7x-sized) fallback


def _pick_kt_tile(nx, ny, nc, klen, vmem_cap):
    """Largest lane-dense k tile whose per-step intermediates fit VMEM."""
    # Residency independent of the tile width:
    resident = (2 * (2 * nc * nx * ny * 2)         # cs, bf16, double-buffered
                + 2 * nc * nx * ny * 2             # lhs scratch, bf16
                + 2 * 2 * (2 * nx * ny * 4))       # x (+ I), f32, double-buffered
    budget = int(0.55 * vmem_cap) - resident
    for cand in (512, 256):
        per_tile = (36 * nc * nx * cand            # q + t_r/t_i + stage-2 temps (f32)
                    + 2 * 4 * (2 + 4 * nc) * cand  # k / w / y blocks, double-buffered
                    + 4 * (nx + 2 * ny) * cand)    # trig bases
        if klen >= cand and per_tile <= budget:
            return cand
    return 128


def radial_model_ic_forward(x, k, coil_sensitivities, I, w, ic=True):
    """Pallas implementation of RadialModel_IC.forward.

    Args:
      x : (nt, 2, nx, ny)
      k : (nt, 2, klen)
      coil_sensitivities : (1, nc, 2, nx, ny)
      I : (nt, 2, nx, ny)   (ignored when ic=False)
      w : (nt, nc, 2, klen)
    Returns:
      y : (nt, nc, 2, klen)
    """
    nt = x.shape[0]
    nc = coil_sensitivities.shape[1]
    klen = k.shape[-1]

    # Contract the larger image axis on the MXU: stage-2 VPU work scales with
    # the axis that is NOT contracted.  The NDFT is symmetric under a joint
    # swap of the image axes and of the (kx, ky) trajectory rows.
    if x.shape[2] > x.shape[3]:
        x = jnp.swapaxes(x, 2, 3)
        if I is not None:
            I = jnp.swapaxes(I, 2, 3)
        coil_sensitivities = jnp.swapaxes(coil_sensitivities, 3, 4)
        k = k[:, ::-1, :]
    nx, ny = x.shape[2], x.shape[3]

    vmem_cap = _vmem_capacity_bytes()
    kt_tile = _pick_kt_tile(nx, ny, nc, klen, vmem_cap)
    klen_pad = _round_up(klen, kt_tile)
    n_kt = klen_pad // kt_tile

    x_k = x.astype(jnp.float32)
    # cs feeds the bf16 MXU lhs anyway: DMA it in bf16 (half the resident
    # VMEM footprint, half the one-time HBM DMA).
    cs_k = jnp.transpose(coil_sensitivities[0], (1, 0, 2, 3)).astype(jnp.bfloat16)
    k_k = k.astype(jnp.float32)
    w_k = w.astype(jnp.float32)                  # native (nt, nc, 2, klen) layout

    if klen_pad != klen:
        pad = klen_pad - klen
        k_k = jnp.pad(k_k, ((0, 0), (0, 0), (0, pad)))
        w_k = jnp.pad(w_k, ((0, 0), (0, 0), (0, 0), (0, pad)))

    in_specs = [pl.BlockSpec((1, 2, nx, ny), lambda t, s: (t, 0, 0, 0))]      # x
    args = [x_k]
    if ic:
        in_specs.append(pl.BlockSpec((1, 2, nx, ny), lambda t, s: (t, 0, 0, 0)))
        args.append(I.astype(jnp.float32))
    in_specs += [
        # coil sensitivities are grid-invariant (constant index_map -> one DMA)
        pl.BlockSpec((2, nc, nx, ny), lambda t, s: (0, 0, 0, 0)),
        pl.BlockSpec((1, 2, kt_tile), lambda t, s: (t, 0, s)),                # k
        pl.BlockSpec((1, nc, 2, kt_tile), lambda t, s: (t, 0, 0, s)),         # w
    ]
    args += [cs_k, k_k, w_k]

    grid_spec = pltpu.PrefetchScalarGridSpec(
        num_scalar_prefetch=0,
        grid=(nt, n_kt),
        in_specs=in_specs,
        out_specs=pl.BlockSpec((1, 2, nc, kt_tile), lambda t, s: (t, 0, 0, s)),
        scratch_shapes=[pltpu.VMEM((2 * nc * nx, ny), jnp.bfloat16)],
    )

    y_k = pl.pallas_call(
        functools.partial(_radial_fwd_kernel, ic=ic),
        out_shape=jax.ShapeDtypeStruct((nt, 2, nc, klen_pad), jnp.float32),
        grid_spec=grid_spec,
        compiler_params=pltpu.CompilerParams(
            # The k-tile axis must be "arbitrary": the per-frame lhs scratch
            # written at program_id(1)==0 has to be visible to that frame's
            # later k tiles (frames still shard across v7x cores via t).
            dimension_semantics=("parallel", "arbitrary"),
            vmem_limit_bytes=min(int(0.85 * vmem_cap), 100 * 1024 * 1024),
        ),
    )(*args)

    # TODO(synk): the (2, nc) -> (nc, 2) channel transpose of y is left to XLA
    # so the in-kernel stores stay lane/sublane dense (reviewer fallback).
    return jnp.transpose(y_k[..., :klen], (0, 2, 1, 3))       # (nt, nc, 2, klen)


def _reference_forward_np(x, k, cs, I, w, ic=True):
    """float64 numpy reference (same exact-NDFT semantics)."""
    x = np.asarray(x, np.float64)
    k = np.asarray(k, np.float64)
    cs = np.asarray(cs, np.float64)
    I = np.asarray(I, np.float64)
    w = np.asarray(w, np.float64)
    if ic:
        xr = x[:, 0] * I[:, 0] - x[:, 1] * I[:, 1]
        xi = x[:, 0] * I[:, 1] + x[:, 1] * I[:, 0]
    else:
        xr, xi = x[:, 0], x[:, 1]
    cr = xr[:, None] * cs[:, :, 0] - xi[:, None] * cs[:, :, 1]   # (nt, nc, nx, ny)
    ci = xr[:, None] * cs[:, :, 1] + xi[:, None] * cs[:, :, 0]
    nt, nc, nx, ny = cr.shape
    npix = nx * ny
    g = (cr + 1j * ci).reshape(nt, nc, npix)
    px = np.repeat(np.arange(nx) - nx // 2, ny).astype(np.float64)
    py = np.tile(np.arange(ny) - ny // 2, nx).astype(np.float64)
    phase = (px[None, :, None] * k[:, 0][:, None, :]
             + py[None, :, None] * k[:, 1][:, None, :])          # (nt, npix, klen)
    basis = np.exp(-1j * phase)
    yc = np.einsum('tcp,tpm->tcm', g, basis) / math.sqrt(float(npix))
    y = np.stack([yc.real, yc.imag], axis=2)                     # (nt, nc, 2, klen)
    return y * np.sqrt(w)


if __name__ == "__main__":
    nt, nc, nx, ny = 2, 4, 16, 16
    spokecount, spokelength = 24, 16
    klen = spokecount * spokelength      # 384 -> multiple k tiles + padded tail

    key = jax.random.PRNGKey(0)
    k0, k1, k2, k3 = jax.random.split(key, 4)

    x = jax.random.normal(k0, (nt, 2, nx, ny), jnp.float32)
    coil_sens = 0.5 * jax.random.normal(k1, (1, nc, 2, nx, ny), jnp.float32)
    # intensity correction: 1/sqrt(sum_c |cs|^2), real channel only, tiled over nt
    mag2 = jnp.sum(coil_sens[:, :, 0] ** 2 + coil_sens[:, :, 1] ** 2, axis=1)
    i_real = 1.0 / jnp.sqrt(mag2 + 1e-8)                          # (1, nx, ny)
    I = jnp.concatenate([i_real[:, None], jnp.zeros_like(i_real)[:, None]],
                        axis=1)                                   # (1, 2, nx, ny)
    I = jnp.broadcast_to(I, (nt, 2, nx, ny))
    k = (2.0 * jax.random.uniform(k2, (nt, 2, klen), jnp.float32) - 1.0) * np.pi
    w = jax.random.uniform(k3, (nt, nc, 2, klen), jnp.float32) + 0.1

    # ic=True path
    y = radial_model_ic_forward(x, k, coil_sens, I, w, ic=True)
    y = jax.block_until_ready(y)
    y_ref = _reference_forward_np(x, k, coil_sens, I, w, ic=True)
    np.testing.assert_allclose(np.asarray(y), y_ref, rtol=1.5e-2, atol=1.5e-2)

    # ic=False path (I is neither passed to nor DMA'd by the kernel)
    y2 = radial_model_ic_forward(x, k, coil_sens, I, w, ic=False)
    y2 = jax.block_until_ready(y2)
    y2_ref = _reference_forward_np(x, k, coil_sens, I, w, ic=False)
    np.testing.assert_allclose(np.asarray(y2), y2_ref, rtol=1.5e-2, atol=1.5e-2)

    print("KERNEL_OK")
</pallas_src>

<mosaic_0001>
module attributes {stable_mosaic.version = 11 : i64} {
  func.func @_radial_fwd_kernel(%arg0: i32, %arg1: i32, %arg2: memref<1x2x16x16xf32, #tpu.memory_space<vmem>>, %arg3: memref<1x2x16x16xf32, #tpu.memory_space<vmem>>, %arg4: memref<2x4x16x16xbf16, #tpu.memory_space<vmem>>, %arg5: memref<1x2x256xf32, #tpu.memory_space<vmem>>, %arg6: memref<1x4x2x256xf32, #tpu.memory_space<vmem>>, %arg7: memref<1x2x4x256xf32, #tpu.memory_space<vmem>>, %arg8: memref<128x16xbf16, #tpu.memory_space<vmem>>) attributes {dimension_semantics = [#tpu.dimension_semantics<parallel>, #tpu.dimension_semantics<arbitrary>], iteration_bounds = array<i64: 2, 2>, scalar_prefetch = 0 : i64, scratch_operands = 1 : i64, tpu.core_type = #tpu.core_type<tc>, window_params = [{transform_indices = @transform_0, window_bounds = array<i64: 1, 2, 16, 16>}, {transform_indices = @transform_1, window_bounds = array<i64: 1, 2, 16, 16>}, {pipeline_mode = #tpu.pipeline_mode<synchronous>, transform_indices = @transform_2, window_bounds = array<i64: 2, 4, 16, 16>}, {transform_indices = @transform_3, window_bounds = array<i64: 1, 2, 256>}, {transform_indices = @transform_4, window_bounds = array<i64: 1, 4, 2, 256>}, {transform_indices = @transform_5, window_bounds = array<i64: 1, 2, 4, 256>}]} {
    %c0_i32 = arith.constant 0 : i32
    %0 = arith.cmpi eq, %arg1, %c0_i32 : i32
    %1 = arith.extui %0 : i1 to i32
    %c0_i32_0 = arith.constant 0 : i32
    %2 = arith.cmpi ne, %1, %c0_i32_0 : i32
    scf.if %2 {
      %c0_24 = arith.constant 0 : index
      %c0_25 = arith.constant 0 : index
      %c0_26 = arith.constant 0 : index
      %c0_27 = arith.constant 0 : index
      %74 = vector.load %arg2[%c0_24, %c0_25, %c0_26, %c0_27] : memref<1x2x16x16xf32, #tpu.memory_space<vmem>>, vector<1x1x16x16xf32>
      %75 = vector.shape_cast %74 : vector<1x1x16x16xf32> to vector<16x16xf32>
      %c0_28 = arith.constant 0 : index
      %c1_29 = arith.constant 1 : index
      %c0_30 = arith.constant 0 : index
      %c0_31 = arith.constant 0 : index
      %76 = vector.load %arg2[%c0_28, %c1_29, %c0_30, %c0_31] : memref<1x2x16x16xf32, #tpu.memory_space<vmem>>, vector<1x1x16x16xf32>
      %77 = vector.shape_cast %76 : vector<1x1x16x16xf32> to vector<16x16xf32>
      %c0_32 = arith.constant 0 : index
      %c0_33 = arith.constant 0 : index
      %c0_34 = arith.constant 0 : index
      %c0_35 = arith.constant 0 : index
      %78 = vector.load %arg3[%c0_32, %c0_33, %c0_34, %c0_35] : memref<1x2x16x16xf32, #tpu.memory_space<vmem>>, vector<1x1x16x16xf32>
      %79 = vector.shape_cast %78 : vector<1x1x16x16xf32> to vector<16x16xf32>
      %c0_36 = arith.constant 0 : index
      %c1_37 = arith.constant 1 : index
      %c0_38 = arith.constant 0 : index
      %c0_39 = arith.constant 0 : index
      %80 = vector.load %arg3[%c0_36, %c1_37, %c0_38, %c0_39] : memref<1x2x16x16xf32, #tpu.memory_space<vmem>>, vector<1x1x16x16xf32>
      %81 = vector.shape_cast %80 : vector<1x1x16x16xf32> to vector<16x16xf32>
      %82 = arith.mulf %75, %79 : vector<16x16xf32>
      %83 = arith.mulf %77, %81 : vector<16x16xf32>
      %84 = arith.subf %82, %83 : vector<16x16xf32>
      %85 = arith.mulf %75, %81 : vector<16x16xf32>
      %86 = arith.mulf %77, %79 : vector<16x16xf32>
      %87 = arith.addf %85, %86 : vector<16x16xf32>
      %c0_40 = arith.constant 0 : index
      %c0_41 = arith.constant 0 : index
      %c0_42 = arith.constant 0 : index
      %c0_43 = arith.constant 0 : index
      %88 = vector.load %arg4[%c0_40, %c0_41, %c0_42, %c0_43] : memref<2x4x16x16xbf16, #tpu.memory_space<vmem>>, vector<1x4x16x16xbf16>
      %89 = vector.shape_cast %88 : vector<1x4x16x16xbf16> to vector<4x16x16xbf16>
      %90 = arith.extf %89 : vector<4x16x16xbf16> to vector<4x16x16xf32>
      %c1_44 = arith.constant 1 : index
      %c0_45 = arith.constant 0 : index
      %c0_46 = arith.constant 0 : index
      %c0_47 = arith.constant 0 : index
      %91 = vector.load %arg4[%c1_44, %c0_45, %c0_46, %c0_47] : memref<2x4x16x16xbf16, #tpu.memory_space<vmem>>, vector<1x4x16x16xbf16>
      %92 = vector.shape_cast %91 : vector<1x4x16x16xbf16> to vector<4x16x16xbf16>
      %93 = arith.extf %92 : vector<4x16x16xbf16> to vector<4x16x16xf32>
      %94 = vector.shape_cast %84 : vector<16x16xf32> to vector<1x16x16xf32>
      %95 = vector.broadcast %94 : vector<1x16x16xf32> to vector<4x16x16xf32>
      %96 = arith.mulf %95, %90 : vector<4x16x16xf32>
      %97 = vector.shape_cast %87 : vector<16x16xf32> to vector<1x16x16xf32>
      %98 = vector.broadcast %97 : vector<1x16x16xf32> to vector<4x16x16xf32>
      %99 = arith.mulf %98, %93 : vector<4x16x16xf32>
      %100 = arith.subf %96, %99 : vector<4x16x16xf32>
      %101 = vector.shape_cast %84 : vector<16x16xf32> to vector<1x16x16xf32>
      %102 = vector.broadcast %101 : vector<1x16x16xf32> to vector<4x16x16xf32>
      %103 = arith.mulf %102, %93 : vector<4x16x16xf32>
      %104 = vector.shape_cast %87 : vector<16x16xf32> to vector<1x16x16xf32>
      %105 = vector.broadcast %104 : vector<1x16x16xf32> to vector<4x16x16xf32>
      %106 = arith.mulf %105, %90 : vector<4x16x16xf32>
      %107 = arith.addf %103, %106 : vector<4x16x16xf32>
      %108 = vector.shape_cast %100 : vector<4x16x16xf32> to vector<64x16xf32>
      %109 = arith.truncf %108 : vector<64x16xf32> to vector<64x16xbf16>
      %c0_48 = arith.constant 0 : index
      %c0_49 = arith.constant 0 : index
      %110 = vector.load %arg8[%c0_48, %c0_49] : memref<128x16xbf16, #tpu.memory_space<vmem>>, vector<64x16xbf16>
      tpu.vector_store %arg8[%c0_48, %c0_49], %109 {strides = array<i32>} : memref<128x16xbf16, #tpu.memory_space<vmem>>, vector<64x16xbf16>,
      %111 = vector.shape_cast %107 : vector<4x16x16xf32> to vector<64x16xf32>
      %112 = arith.truncf %111 : vector<64x16xf32> to vector<64x16xbf16>
      %c64 = arith.constant 64 : index
      %c0_50 = arith.constant 0 : index
      %113 = vector.load %arg8[%c64, %c0_50] : memref<128x16xbf16, #tpu.memory_space<vmem>>, vector<64x16xbf16>
      tpu.vector_store %arg8[%c64, %c0_50], %112 {strides = array<i32>} : memref<128x16xbf16, #tpu.memory_space<vmem>>, vector<64x16xbf16>,
    } else {
    }
    %c0 = arith.constant 0 : index
    %c0_1 = arith.constant 0 : index
    %c0_2 = arith.constant 0 : index
    %3 = vector.load %arg5[%c0, %c0_1, %c0_2] : memref<1x2x256xf32, #tpu.memory_space<vmem>>, vector<1x2x256xf32>
    %4 = vector.shape_cast %3 : vector<1x2x256xf32> to vector<2x256xf32>
    %5 = vector.extract_strided_slice %4 {offsets = [0, 0], sizes = [1, 256], strides = [1, 1]} : vector<2x256xf32> to vector<1x256xf32>
    %6 = vector.extract_strided_slice %4 {offsets = [1, 0], sizes = [1, 256], strides = [1, 1]} : vector<2x256xf32> to vector<1x256xf32>
    %7 = tpu.concatenate %6, %6 in 1 : vector<1x256xf32>, vector<1x256xf32> -> vector<1x512xf32>
    %cst = arith.constant 0.000000e+00 : f32
    %8 = vector.broadcast %cst : f32 to vector<1x256xf32>
    %cst_3 = arith.constant 1.57079637 : f32
    %9 = vector.broadcast %cst_3 : f32 to vector<1x256xf32>
    %10 = tpu.concatenate %8, %9 in 1 : vector<1x256xf32>, vector<1x256xf32> -> vector<1x512xf32>
    %11 = tpu.iota {dimensions = array<i32: 0>} : vector<16x512xi32>
    %12 = arith.sitofp %11 : vector<16x512xi32> to vector<16x512xf32>
    %cst_4 = arith.constant 8.000000e+00 : f32
    %13 = vector.broadcast %cst_4 : f32 to vector<16x512xf32>
    %14 = arith.subf %12, %13 : vector<16x512xf32>
    %15 = vector.broadcast %7 : vector<1x512xf32> to vector<16x512xf32>
    %16 = arith.mulf %14, %15 : vector<16x512xf32>
    %17 = vector.broadcast %10 : vector<1x512xf32> to vector<16x512xf32>
    %18 = arith.subf %16, %17 : vector<16x512xf32>
    %19 = math.cos %18 : vector<16x512xf32>
    %20 = arith.truncf %19 : vector<16x512xf32> to vector<16x512xbf16>
    %21 = tpu.iota {dimensions = array<i32: 0>} : vector<16x256xi32>
    %22 = arith.sitofp %21 : vector<16x256xi32> to vector<16x256xf32>
    %cst_5 = arith.constant 8.000000e+00 : f32
    %23 = vector.broadcast %cst_5 : f32 to vector<16x256xf32>
    %24 = arith.subf %22, %23 : vector<16x256xf32>
    %25 = vector.broadcast %5 : vector<1x256xf32> to vector<16x256xf32>
    %26 = arith.mulf %24, %25 : vector<16x256xf32>
    %27 = math.cos %26 : vector<16x256xf32>
    %28 = math.sin %26 : vector<16x256xf32>
    %29 = arith.addf %27, %28 : vector<16x256xf32>
    %cst_6 = arith.constant 0.000000e+00 : f32
    %30 = vector.broadcast %cst_6 : f32 to vector<16x256xf32>
    %31 = arith.subf %30, %29 : vector<16x256xf32>
    %32 = arith.subf %27, %28 : vector<16x256xf32>
    %c0_7 = arith.constant 0 : index
    %c0_8 = arith.constant 0 : index
    %33 = vector.load %arg8[%c0_7, %c0_8] : memref<128x16xbf16, #tpu.memory_space<vmem>>, vector<128x16xbf16>
    %cst_9 = arith.constant dense<0.000000e+00> : vector<128x512xf32>
    %34 = tpu.matmul %33, %20, %cst_9 {dimension_numbers = #tpu.dot_dimension_numbers<[1], [0], [0], [1], [0, 0, 1, 1], [], []>} : vector<128x16xbf16>, vector<16x512xbf16>, vector<128x512xf32> -> vector<128x512xf32>
    %35 = vector.extract_strided_slice %34 {offsets = [0, 0], sizes = [64, 256], strides = [1, 1]} : vector<128x512xf32> to vector<64x256xf32>
    %36 = vector.extract_strided_slice %34 {offsets = [64, 256], sizes = [64, 256], strides = [1, 1]} : vector<128x512xf32> to vector<64x256xf32>
    %37 = arith.addf %35, %36 : vector<64x256xf32>
    %38 = vector.shape_cast %37 : vector<64x256xf32> to vector<4x16x256xf32>
    %39 = vector.extract_strided_slice %34 {offsets = [64, 0], sizes = [64, 256], strides = [1, 1]} : vector<128x512xf32> to vector<64x256xf32>
    %40 = vector.extract_strided_slice %34 {offsets = [0, 256], sizes = [64, 256], strides = [1, 1]} : vector<128x512xf32> to vector<64x256xf32>
    %41 = arith.subf %39, %40 : vector<64x256xf32>
    %42 = vector.shape_cast %41 : vector<64x256xf32> to vector<4x16x256xf32>
    %43 = vector.shape_cast %27 : vector<16x256xf32> to vector<1x16x256xf32>
    %44 = arith.addf %38, %42 : vector<4x16x256xf32>
    %45 = vector.broadcast %43 : vector<1x16x256xf32> to vector<4x16x256xf32>
    %46 = arith.mulf %45, %44 : vector<4x16x256xf32>
    %47 = vector.shape_cast %32 : vector<16x256xf32> to vector<1x16x256xf32>
    %48 = vector.broadcast %47 : vector<1x16x256xf32> to vector<4x16x256xf32>
    %49 = arith.mulf %42, %48 : vector<4x16x256xf32>
    %50 = arith.subf %46, %49 : vector<4x16x256xf32>
    %cst_10 = arith.constant dense<0.000000e+00> : vector<4x256xf32>
    %51 = vector.multi_reduction <add>, %50, %cst_10 [1] : vector<4x16x256xf32> to vector<4x256xf32>
    %52 = vector.shape_cast %31 : vector<16x256xf32> to vector<1x16x256xf32>
    %53 = vector.broadcast %52 : vector<1x16x256xf32> to vector<4x16x256xf32>
    %54 = arith.mulf %38, %53 : vector<4x16x256xf32>
    %55 = arith.addf %46, %54 : vector<4x16x256xf32>
    %cst_11 = arith.constant dense<0.000000e+00> : vector<4x256xf32>
    %56 = vector.multi_reduction <add>, %55, %cst_11 [1] : vector<4x16x256xf32> to vector<4x256xf32>
    %c0_12 = arith.constant 0 : index
    %c0_13 = arith.constant 0 : index
    %c0_14 = arith.constant 0 : index
    %c0_15 = arith.constant 0 : index
    %57 = vector.load %arg6[%c0_12, %c0_13, %c0_14, %c0_15] : memref<1x4x2x256xf32, #tpu.memory_space<vmem>>, vector<1x4x2x256xf32>
    %58 = vector.shape_cast %57 : vector<1x4x2x256xf32> to vector<4x2x256xf32>
    %59 = math.sqrt %58 : vector<4x2x256xf32>
    %cst_16 = arith.constant 6.250000e-02 : f32
    %60 = vector.broadcast %cst_16 : f32 to vector<4x2x256xf32>
    %61 = arith.mulf %59, %60 : vector<4x2x256xf32>
    %62 = vector.extract_strided_slice %61 {offsets = [0, 0, 0], sizes = [4, 1, 256], strides = [1, 1, 1]} : vector<4x2x256xf32> to vector<4x1x256xf32>
    %63 = vector.shape_cast %62 : vector<4x1x256xf32> to vector<4x256xf32>
    %64 = arith.mulf %51, %63 : vector<4x256xf32>
    %c0_17 = arith.constant 0 : index
    %c0_18 = arith.constant 0 : index
    %c0_19 = arith.constant 0 : index
    %c0_20 = arith.constant 0 : index
    %65 = vector.load %arg7[%c0_17, %c0_18, %c0_19, %c0_20] : memref<1x2x4x256xf32, #tpu.memory_space<vmem>>, vector<1x1x4x256xf32>
    %66 = vector.shape_cast %65 : vector<1x1x4x256xf32> to vector<4x256xf32>
    %67 = vector.shape_cast %64 : vector<4x256xf32> to vector<1x1x4x256xf32>
    tpu.vector_store %arg7[%c0_17, %c0_18, %c0_19, %c0_20], %67 {strides = array<i32>} : memref<1x2x4x256xf32, #tpu.memory_space<vmem>>, vector<1x1x4x256xf32>,
    %68 = vector.extract_strided_slice %61 {offsets = [0, 1, 0], sizes = [4, 1, 256], strides = [1, 1, 1]} : vector<4x2x256xf32> to vector<4x1x256xf32>
    %69 = vector.shape_cast %68 : vector<4x1x256xf32> to vector<4x256xf32>
    %70 = arith.mulf %56, %69 : vector<4x256xf32>
    %c0_21 = arith.constant 0 : index
    %c1 = arith.constant 1 : index
    %c0_22 = arith.constant 0 : index
    %c0_23 = arith.constant 0 : index
    %71 = vector.load %arg7[%c0_21, %c1, %c0_22, %c0_23] : memref<1x2x4x256xf32, #tpu.memory_space<vmem>>, vector<1x1x4x256xf32>
    %72 = vector.shape_cast %71 : vector<1x1x4x256xf32> to vector<4x256xf32>
    %73 = vector.shape_cast %70 : vector<4x256xf32> to vector<1x1x4x256xf32>
    tpu.vector_store %arg7[%c0_21, %c1, %c0_22, %c0_23], %73 {strides = array<i32>} : memref<1x2x4x256xf32, #tpu.memory_space<vmem>>, vector<1x1x4x256xf32>,
    return
  }
  func.func @transform_0(%arg0: i32, %arg1: i32) -> (i32, i32, i32, i32) {
    %c0_i32 = arith.constant 0 : i32
    %c0_i32_0 = arith.constant 0 : i32
    %c0_i32_1 = arith.constant 0 : i32
    %c0_i32_2 = arith.constant 0 : i32
    return %arg0, %c0_i32, %c0_i32_0, %c0_i32_1 : i32, i32, i32, i32
  }
  func.func @transform_1(%arg0: i32, %arg1: i32) -> (i32, i32, i32, i32) {
    %c0_i32 = arith.constant 0 : i32
    %c0_i32_0 = arith.constant 0 : i32
    %c0_i32_1 = arith.constant 0 : i32
    %c0_i32_2 = arith.constant 0 : i32
    return %arg0, %c0_i32, %c0_i32_0, %c0_i32_1 : i32, i32, i32, i32
  }
  func.func @transform_2(%arg0: i32, %arg1: i32) -> (i32, i32, i32, i32) {
    %c0_i32 = arith.constant 0 : i32
    %c0_i32_0 = arith.constant 0 : i32
    %c0_i32_1 = arith.constant 0 : i32
    %c0_i32_2 = arith.constant 0 : i32
    %c0_i32_3 = arith.constant 0 : i32
    return %c0_i32, %c0_i32_0, %c0_i32_1, %c0_i32_2 : i32, i32, i32, i32
  }
  func.func @transform_3(%arg0: i32, %arg1: i32) -> (i32, i32, i32) {
    %c0_i32 = arith.constant 0 : i32
    %c0_i32_0 = arith.constant 0 : i32
    return %arg0, %c0_i32, %arg1 : i32, i32, i32
  }
  func.func @transform_4(%arg0: i32, %arg1: i32) -> (i32, i32, i32, i32) {
    %c0_i32 = arith.constant 0 : i32
    %c0_i32_0 = arith.constant 0 : i32
    %c0_i32_1 = arith.constant 0 : i32
    return %arg0, %c0_i32, %c0_i32_0, %arg1 : i32, i32, i32, i32
  }
  func.func @transform_5(%arg0: i32, %arg1: i32) -> (i32, i32, i32, i32) {
    %c0_i32 = arith.constant 0 : i32
    %c0_i32_0 = arith.constant 0 : i32
    %c0_i32_1 = arith.constant 0 : i32
    return %arg0, %c0_i32, %c0_i32_0, %arg1 : i32, i32, i32, i32
  }
}

</mosaic_0001>

<llo_original>
// kernel: tpu_custom_call.1
$region0: #{tpu_custom_call.1}
  #allocation0 [shape = 'u32[]', space=smem, size = 0x4, offset = 0x4, fixed_abs, tag = 'smem constant byte address 0x4 - core index']
  #allocation1 [shape = 'u32[144,128]{1,0:T(1,128)}', space=vmem, size = 0x12000, scoped, tag = 'internal scratch']
  #allocation2 [shape = 'bf16[128,16]{1,0:T(8,128)(2,1)}', space=vmem, size = 0x8000, scoped, tag = 'scratch operand']
  %s0 = inlined_call_operand.hbm [shape: f32[2,2,16,16], index: 0, kind: input, shape index: {}]
  %s1 = inlined_call_operand.hbm [shape: f32[2,2,16,16], index: 1, kind: input, shape index: {}]
  %s2 = inlined_call_operand.hbm [shape: bf16[2,4,16,16], index: 2, kind: input, shape index: {}]
  %s3 = inlined_call_operand.hbm [shape: f32[2,2,512], index: 3, kind: input, shape index: {}]
  %s4 = inlined_call_operand.hbm [shape: f32[2,4,2,512], index: 4, kind: input, shape index: {}]
  %s5 = inlined_call_operand.hbm [shape: f32[2,2,4,512], index: 5, kind: output, shape index: {}]
  %s6 = sld [smem:[#allocation0]]
  $region77: #{tpu_custom_call.1} parent=0
    _
  %s8 = ssub.s32 1, %s6
  %s9 = scalar_select 0, %s8, %s6
  $region1: #{tpu_custom_call.1} parent=0
    #allocation3 [shape = 'u8[32768]{0}', space=vmem, size = 0x8000, scoped, tag = 'input window, operand 0']
    #allocation4 [shape = 's32[2]{0}', space=sflag, size = 0x8, scoped, tag = 'scoped memory for tpu_custom_call.1']
    #allocation5 [shape = 's32[2]{0}', space=sflag, size = 0x8, scoped, tag = 'scoped memory for tpu_custom_call.1']
    #allocation6 [shape = 'u8[32768]{0}', space=vmem, size = 0x8000, scoped, tag = 'input window, operand 1']
    #allocation7 [shape = 's32[2]{0}', space=sflag, size = 0x8, scoped, tag = 'scoped memory for tpu_custom_call.1']
    #allocation8 [shape = 'u8[32768]{0}', space=vmem, size = 0x8000, scoped, tag = 'input window, operand 2, single buffered']
    #allocation9 [shape = 'u8[4096]{0}', space=vmem, size = 0x1000, scoped, tag = 'input window, operand 3']
    #allocation10 [shape = 's32[2]{0}', space=sflag, size = 0x8, scoped, tag = 'scoped memory for tpu_custom_call.1']
    #allocation11 [shape = 'u8[16384]{0}', space=vmem, size = 0x4000, scoped, tag = 'input window, operand 4']
    #allocation12 [shape = 'u8[16384]{0}', space=vmem, size = 0x4000, scoped, tag = 'output window, operand 0']
    %10 = vsyncpa [#allocation4], 0
    %s11 = scalar_lea.sflag [#allocation4], 1
    %12 = vsyncpa %s11, 0
    %13 = vsyncpa [#allocation7], 0
    %s14 = scalar_lea.sflag [#allocation7], 1
    %15 = vsyncpa %s14, 0
    %16 = vsyncpa [#allocation10], 0
    %s17 = scalar_lea.sflag [#allocation10], 1
    %18 = vsyncpa %s17, 0
    %19 = vsyncpa [#allocation5], 0
    %s20 = scalar_lea.sflag [#allocation5], 1
    %21 = vsyncpa %s20, 0
    loop: start=0, step=1, limit=6
    $region2: #{tpu_custom_call.1} parent=1 // loop_pre_header
      _
    $region3: #{tpu_custom_call.1} parent=1 // loop_header
      %s23 = sphi 0, %s27
      %p24 = scmp.ge.s32.totalorder %s23, 6
      %s30 = sphi 0, %s42
      %s31 = sphi 0, %s38
      %s32 = sphi 0, %s30
      %s33 = sphi 0, %s31
      %s34 = sphi 0, %s32
      %s35 = sphi 0, %s33
      %s45 = sphi 0, %s47
      %s48 = sphi 0, %s45
      %s49 = sphi 0, %s48
      %s65 = sphi 0, %s49
      %s71 = sphi 0, %s73
      %s74 = sphi 0, %s71
      %s75 = sphi 0, %s74
      %s91 = sphi 0, %s75
      %s95 = sphi 0, %s95
      %s97 = sphi 0, %s95
      %s98 = sphi 0, %s97
      %s112 = sphi 0, %s98
      %s120 = sphi 0, %s122
      %s123 = sphi 0, %s120
      %s124 = sphi 0, %s123
      %s140 = sphi 0, %s124
      %s148 = sphi 0, %s150
      %s151 = sphi 0, %s148
      %s152 = sphi 0, %s151
      %s168 = sphi 0, %s152
      %s176 = sphi 0, %s178
      %s179 = sphi 0, %s176
      %s180 = sphi 0, %s179
      %s196 = sphi 0, %s180
    $region4: #{tpu_custom_call.1} parent=1 // loop_header_branch
      %26 = sbr.rel (%p24) target = $region8
    $region5: #{tpu_custom_call.1} parent=1 // loop_body
      %s28 = ssub.s32 %s23, 1
      %s29 = ssub.s32 %s23, 2
      %s36 = sadd.s32 1, %s31
      %p37 = scmp.ge.s32.totalorder %s36, 2
      %s38 = scalar_select %p37, 0, %s36
      %s39 = sadd.s32 1, %s30
      %s40 = scalar_select %p37, %s39, %s30
      %p41 = scmp.ge.s32.totalorder %s40, 2
      %s42 = scalar_select %p41, 0, %s40
      %s43 = ssub.s32 %s30, %s42
      %p44 = scmp.eq.s32.totalorder %s43, 0
      %s46 = sadd.s32 %s45, 1
      %s47 = scalar_select %p44, %s45, %s46
      %p50 = pneg %p44
      %p51 = scmp.eq.s32.totalorder %s23, 3
      %p52 = por %p50, %p51
      %p53 = scmp.ne.s32.totalorder %s45, %s48
      %p54 = scmp.eq.s32.totalorder %s23, 0
      %p55 = por %p53, %p54
      %p56 = scmp.ne.s32.totalorder %s45, %s48
      %p57 = scmp.eq.s32.totalorder %s28, 3
      %p58 = por %p56, %p57
      %p59 = scmp.ne.s32.totalorder %s48, %s49
      %p60 = scmp.eq.s32.totalorder %s28, 0
      %p61 = por %p59, %p60
      %p62 = scmp.ne.s32.totalorder %s48, %s49
      %p63 = scmp.eq.s32.totalorder %s29, 3
      %p64 = por %p62, %p63
      %p66 = scmp.ne.s32.totalorder %s49, %s65
      %p67 = scmp.eq.s32.totalorder %s29, 0
      %p68 = por %p66, %p67
      %s69 = ssub.s32 %s30, %s42
      %p70 = scmp.eq.s32.totalorder %s69, 0
      %s72 = sadd.s32 %s71, 1
      %s73 = scalar_select %p70, %s71, %s72
      %p76 = pneg %p70
      %p77 = scmp.eq.s32.totalorder %s23, 3
      %p78 = por %p76, %p77
      %p79 = scmp.ne.s32.totalorder %s71, %s74
      %p80 = scmp.eq.s32.totalorder %s23, 0
      %p81 = por %p79, %p80
      %p82 = scmp.ne.s32.totalorder %s71, %s74
      %p83 = scmp.eq.s32.totalorder %s28, 3
      %p84 = por %p82, %p83
      %p85 = scmp.ne.s32.totalorder %s74, %s75
      %p86 = scmp.eq.s32.totalorder %s28, 0
      %p87 = por %p85, %p86
      %p88 = scmp.ne.s32.totalorder %s74, %s75
      %p89 = scmp.eq.s32.totalorder %s29, 3
      %p90 = por %p88, %p89
      %p92 = scmp.ne.s32.totalorder %s75, %s91
      %p93 = scmp.eq.s32.totalorder %s29, 0
      %p94 = por %p92, %p93
      %s96 = sadd.s32 %s95, 1
      %p99 = scmp.eq.s32.totalorder %s23, 3
      %p100 = scmp.ne.s32.totalorder %s95, %s97
      %p101 = scmp.eq.s32.totalorder %s23, 0
      %p102 = por %p100, %p101
      %p103 = scmp.ne.s32.totalorder %s95, %s97
      %p104 = scmp.eq.s32.totalorder %s28, 3
      %p105 = por %p103, %p104
      %p106 = scmp.ne.s32.totalorder %s97, %s98
      %p107 = scmp.eq.s32.totalorder %s28, 0
      %p108 = por %p106, %p107
      %p109 = scmp.ne.s32.totalorder %s97, %s98
      %p110 = scmp.eq.s32.totalorder %s29, 3
      %p111 = por %p109, %p110
      %p113 = scmp.ne.s32.totalorder %s98, %s112
      %p114 = scmp.eq.s32.totalorder %s29, 0
      %p115 = por %p113, %p114
      %s116 = ssub.s32 %s30, %s42
      %s117 = ssub.s32 %s31, %s38
      %s118 = sor.u32 %s116, %s117
      %p119 = scmp.eq.s32.totalorder %s118, 0
      %s121 = sadd.s32 %s120, 1
      %s122 = scalar_select %p119, %s120, %s121
      %p125 = pneg %p119
      %p126 = scmp.eq.s32.totalorder %s23, 3
      %p127 = por %p125, %p126
      %p128 = scmp.ne.s32.totalorder %s120, %s123
      %p129 = scmp.eq.s32.totalorder %s23, 0
      %p130 = por %p128, %p129
      %p131 = scmp.ne.s32.totalorder %s120, %s123
      %p132 = scmp.eq.s32.totalorder %s28, 3
      %p133 = por %p131, %p132
      %p134 = scmp.ne.s32.totalorder %s123, %s124
      %p135 = scmp.eq.s32.totalorder %s28, 0
      %p136 = por %p134, %p135
      %p137 = scmp.ne.s32.totalorder %s123, %s124
      %p138 = scmp.eq.s32.totalorder %s29, 3
      %p139 = por %p137, %p138
      %p141 = scmp.ne.s32.totalorder %s124, %s140
      %p142 = scmp.eq.s32.totalorder %s29, 0
      %p143 = por %p141, %p142
      %s144 = ssub.s32 %s30, %s42
      %s145 = ssub.s32 %s31, %s38
      %s146 = sor.u32 %s144, %s145
      %p147 = scmp.eq.s32.totalorder %s146, 0
      %s149 = sadd.s32 %s148, 1
      %s150 = scalar_select %p147, %s148, %s149
      %p153 = pneg %p147
      %p154 = scmp.eq.s32.totalorder %s23, 3
      %p155 = por %p153, %p154
      %p156 = scmp.ne.s32.totalorder %s148, %s151
      %p157 = scmp.eq.s32.totalorder %s23, 0
      %p158 = por %p156, %p157
      %p159 = scmp.ne.s32.totalorder %s148, %s151
      %p160 = scmp.eq.s32.totalorder %s28, 3
      %p161 = por %p159, %p160
      %p162 = scmp.ne.s32.totalorder %s151, %s152
      %p163 = scmp.eq.s32.totalorder %s28, 0
      %p164 = por %p162, %p163
      %p165 = scmp.ne.s32.totalorder %s151, %s152
      %p166 = scmp.eq.s32.totalorder %s29, 3
      %p167 = por %p165, %p166
      %p169 = scmp.ne.s32.totalorder %s152, %s168
      %p170 = scmp.eq.s32.totalorder %s29, 0
      %p171 = por %p169, %p170
      %s172 = ssub.s32 %s30, %s42
      %s173 = ssub.s32 %s31, %s38
      %s174 = sor.u32 %s172, %s173
      %p175 = scmp.eq.s32.totalorder %s174, 0
      %s177 = sadd.s32 %s176, 1
      %s178 = scalar_select %p175, %s176, %s177
      %p181 = pneg %p175
      %p182 = scmp.eq.s32.totalorder %s23, 3
      %p183 = por %p181, %p182
      %p184 = scmp.ne.s32.totalorder %s176, %s179
      %p185 = scmp.eq.s32.totalorder %s23, 0
      %p186 = por %p184, %p185
      %p187 = scmp.ne.s32.totalorder %s176, %s179
      %p188 = scmp.eq.s32.totalorder %s28, 3
      %p189 = por %p187, %p188
      %p190 = scmp.ne.s32.totalorder %s179, %s180
      %p191 = scmp.eq.s32.totalorder %s28, 0
      %p192 = por %p190, %p191
      %p193 = scmp.ne.s32.totalorder %s179, %s180
      %p194 = scmp.eq.s32.totalorder %s29, 3
      %p195 = por %p193, %p194
      %p197 = scmp.ne.s32.totalorder %s180, %s196
      %p198 = scmp.eq.s32.totalorder %s29, 0
      %p199 = por %p197, %p198
      %p200 = scmp.le.s32.totalorder 1, %s23
      %p201 = scmp.lt.s32.totalorder %s23, 5
      %p202 = pnand %p200, %p201
      %p203 = pneg %p202
      // Predicated region
      $region9: #{tpu_custom_call.1} parent=5 // pred_check
        _
      $region10: #{tpu_custom_call.1} parent=5 // pred_check_branch
        %205 = sbr.rel (%p202) target = $region12
      $region11: #{tpu_custom_call.1} parent=5 // pred_region
        %s206 = ssub.s32 %s23, 1
        // Predicated region
        $region13: #{tpu_custom_call.1} parent=11 // pred_check
          %p207 = pneg %p108
        $region14: #{tpu_custom_call.1} parent=11 // pred_check_branch
          %209 = sbr.rel (%p207) target = $region16
        $region15: #{tpu_custom_call.1} parent=11 // pred_region
          %s211 = ssub.s32 1024, 1024
          %212 = vsyncadd [#allocation7], %s211
          %s213 = sshll.u32 [#allocation8], 4
          %s214 = int_to_ptr.vmem [resolvable:$true] %s213
          %219 = dma.hbm_to_vmem [thread:$0]  %s2, 1024, %s214, [#allocation7], 64, 64, 4
        $region16: #{tpu_custom_call.1} parent=11 // pred_fallthru
          _
      $region12: #{tpu_custom_call.1} parent=5 // pred_fallthru
        _
      %p220 = scmp.lt.s32.totalorder %s23, 4
      // Predicated region
      $region17: #{tpu_custom_call.1} parent=5 // pred_check
        %p221 = pneg %p220
      $region18: #{tpu_custom_call.1} parent=5 // pred_check_branch
        %223 = sbr.rel (%p221) target = $region20
      $region19: #{tpu_custom_call.1} parent=5 // pred_region
        // Predicated region
        $region21: #{tpu_custom_call.1} parent=19 // pred_check
          %p224 = pneg %p55
        $region22: #{tpu_custom_call.1} parent=19 // pred_check_branch
          %226 = sbr.rel (%p224) target = $region24
        $region23: #{tpu_custom_call.1} parent=19 // pred_region
          %s227 = sand.u32 %s45, 1
          %s228 = scalar_lea.sflag [#allocation4], %s227
          %s229 = sand.u32 %s45, 1
          %s230 = smul.addr %s229, 32
          %s231 = scalar_lea.vmem [#allocation3], %s230
          %s233 = ssub.s32 512, 512
          %234 = vsyncadd %s228, %s233
          %s235 = smul.addr %s30, 4
          %s236 = smul.addr %s235, 128
          %s237 = scalar_lea.hbm %s0, %s236
          %s238 = sshll.u32 %s231, 4
          %s239 = int_to_ptr.vmem [resolvable:$true] %s238
          %244 = dma.hbm_to_vmem [thread:$0]  %s237, 512, %s239, %s228, 128, 128, 8
        $region24: #{tpu_custom_call.1} parent=19 // pred_fallthru
          _
        // Predicated region
        $region25: #{tpu_custom_call.1} parent=19 // pred_check
          %p245 = pneg %p81
        $region26: #{tpu_custom_call.1} parent=19 // pred_check_branch
          %247 = sbr.rel (%p245) target = $region28
        $region27: #{tpu_custom_call.1} parent=19 // pred_region
          %s248 = sand.u32 %s23, 1
          %s249 = scalar_lea.sflag [#allocation7], %s248
          %s250 = sand.u32 %s71, 1
          %s251 = smul.addr %s250, 32
          %s252 = scalar_lea.vmem [#allocation6], %s251
          %s254 = ssub.s32 512, 512
          %255 = vsyncadd %s249, %s254
          %s256 = smul.addr %s30, 4
          %s257 = smul.addr %s256, 128
          %s258 = scalar_lea.hbm %s1, %s257
          %s259 = sshll.u32 %s252, 4
          %s260 = int_to_ptr.vmem [resolvable:$true] %s259
          %265 = dma.hbm_to_vmem [thread:$0]  %s258, 512, %s260, %s249, 128, 128, 8
        $region28: #{tpu_custom_call.1} parent=19 // pred_fallthru
          _
        // Predicated region
        $region29: #{tpu_custom_call.1} parent=19 // pred_check
          %p266 = pneg %p130
        $region30: #{tpu_custom_call.1} parent=19 // pred_check_branch
          %268 = sbr.rel (%p266) target = $region32
        $region31: #{tpu_custom_call.1} parent=19 // pred_region
          %s269 = sand.u32 %s23, 1
          %s270 = scalar_lea.sflag [#allocation10], %s269
          %s271 = sand.u32 %s120, 1
          %s272 = smul.addr %s271, 4
          %s273 = scalar_lea.vmem [#allocation9], %s272
          %s274 = smul.u32 2, %s31
          %s276 = ssub.s32 64, 64
          %277 = vsyncadd %s270, %s276
          %s278 = smul.addr %s30, 4
          %s279 = sadd.s32 %s274, %s278
          %s280 = smul.addr %s279, 32
          %s281 = scalar_lea.hbm %s3, %s280
          %s283 = sshll.u32 %s273, 4
          %s284 = int_to_ptr.vmem [resolvable:$true] %s283
          %286 = dma.hbm_to_vmem [thread:$0]  %s281, 64, %s284, %s270
        $region32: #{tpu_custom_call.1} parent=19 // pred_fallthru
          _
        // Predicated region
        $region33: #{tpu_custom_call.1} parent=19 // pred_check
          %p287 = pneg %p158
        $region34: #{tpu_custom_call.1} parent=19 // pred_check_branch
          %289 = sbr.rel (%p287) target = $region36
        $region35: #{tpu_custom_call.1} parent=19 // pred_region
          %s290 = sand.u32 %s23, 1
          %s291 = scalar_lea.sflag [#allocation10], %s290
          %s292 = sand.u32 %s148, 1
          %s293 = smul.addr %s292, 16
          %s294 = scalar_lea.vmem [#allocation11], %s293
          %s295 = smul.u32 2, %s31
          %s297 = ssub.s32 256, 256
          %298 = vsyncadd %s291, %s297
          %s299 = smul.addr %s30, 16
          %s300 = sadd.s32 %s295, %s299
          %s301 = smul.addr %s300, 32
          %s302 = scalar_lea.hbm %s4, %s301
          %s303 = sshll.u32 %s294, 4
          %s304 = int_to_ptr.vmem [resolvable:$true] %s303
          %309 = dma.hbm_to_vmem [thread:$0]  %s302, 256, %s304, %s291, 128, 64, 4
        $region36: #{tpu_custom_call.1} parent=19 // pred_fallthru
          _
      $region20: #{tpu_custom_call.1} parent=5 // pred_fallthru
        _
      %p310 = scmp.le.s32.totalorder 1, %s23
      %p311 = scmp.lt.s32.totalorder %s23, 5
      %p312 = pnand %p310, %p311
      %p313 = pneg %p312
      // Predicated region
      $region37: #{tpu_custom_call.1} parent=5 // pred_check
        _
      $region38: #{tpu_custom_call.1} parent=5 // pred_check_branch
        %315 = sbr.rel (%p312) target = $region40
      $region39: #{tpu_custom_call.1} parent=5 // pred_region
        %s316 = ssub.s32 %s23, 1
        %s317 = sand.u32 %s48, 1
        %s318 = scalar_lea.sflag [#allocation4], %s317
        %s319 = sand.u32 %s48, 1
        %s320 = smul.addr %s319, 32
        %s321 = scalar_lea.vmem [#allocation3], %s320
        // Predicated region
        $region41: #{tpu_custom_call.1} parent=39 // pred_check
          %p322 = pneg %p61
        $region42: #{tpu_custom_call.1} parent=39 // pred_check_branch
          %324 = sbr.rel (%p322) target = $region44
        $region43: #{tpu_custom_call.1} parent=39 // pred_region
          %325 = dma.done %s318, 512
        $region44: #{tpu_custom_call.1} parent=39 // pred_fallthru
          _
        %s326 = sand.u32 %s28, 1
        %s327 = scalar_lea.sflag [#allocation7], %s326
        %s328 = sand.u32 %s74, 1
        %s329 = smul.addr %s328, 32
        %s330 = scalar_lea.vmem [#allocation6], %s329
        // Predicated region
        $region45: #{tpu_custom_call.1} parent=39 // pred_check
          %p331 = pneg %p87
        $region46: #{tpu_custom_call.1} parent=39 // pred_check_branch
          %333 = sbr.rel (%p331) target = $region48
        $region47: #{tpu_custom_call.1} parent=39 // pred_region
          %334 = dma.done %s327, 512
        $region48: #{tpu_custom_call.1} parent=39 // pred_fallthru
          _
        // Predicated region
        $region49: #{tpu_custom_call.1} parent=39 // pred_check
          %p335 = pneg %p108
        $region50: #{tpu_custom_call.1} parent=39 // pred_check_branch
          %337 = sbr.rel (%p335) target = $region52
        $region51: #{tpu_custom_call.1} parent=39 // pred_region
          %338 = dma.done [#allocation7], 1024
        $region52: #{tpu_custom_call.1} parent=39 // pred_fallthru
          _
        %s339 = sand.u32 %s28, 1
        %s340 = scalar_lea.sflag [#allocation10], %s339
        %s341 = sand.u32 %s123, 1
        %s342 = smul.addr %s341, 4
        %s343 = scalar_lea.vmem [#allocation9], %s342
        // Predicated region
        $region53: #{tpu_custom_call.1} parent=39 // pred_check
          %p344 = pneg %p136
        $region54: #{tpu_custom_call.1} parent=39 // pred_check_branch
          %346 = sbr.rel (%p344) target = $region56
        $region55: #{tpu_custom_call.1} parent=39 // pred_region
          %347 = dma.done %s340, 64
        $region56: #{tpu_custom_call.1} parent=39 // pred_fallthru
          _
        %s348 = sand.u32 %s28, 1
        %s349 = scalar_lea.sflag [#allocation10], %s348
        %s350 = sand.u32 %s151, 1
        %s351 = smul.addr %s350, 16
        %s352 = scalar_lea.vmem [#allocation11], %s351
        // Predicated region
        $region57: #{tpu_custom_call.1} parent=39 // pred_check
          %p353 = pneg %p164
        $region58: #{tpu_custom_call.1} parent=39 // pred_check_branch
          %355 = sbr.rel (%p353) target = $region60
        $region59: #{tpu_custom_call.1} parent=39 // pred_region
          %356 = dma.done %s349, 256
        $region60: #{tpu_custom_call.1} parent=39 // pred_fallthru
          _
        %s357 = sand.u32 %s48, 1
        %s358 = scalar_lea.sflag [#allocation4], %s357
        %s359 = sand.u32 %s48, 1
        %s360 = smul.addr %s359, 32
        %s361 = scalar_lea.vmem [#allocation3], %s360
        %p362 = pneg %p61
        %p363 = pneg %p58
        %s364 = sand.u32 %s28, 1
        %s365 = scalar_lea.sflag [#allocation7], %s364
        %s366 = sand.u32 %s74, 1
        %s367 = smul.addr %s366, 32
        %s368 = scalar_lea.vmem [#allocation6], %s367
        %p369 = pneg %p87
        %p370 = pneg %p84
        %p371 = pneg %p108
        %p372 = pneg %p105
        %s373 = sand.u32 %s28, 1
        %s374 = scalar_lea.sflag [#allocation10], %s373
        %s375 = sand.u32 %s123, 1
        %s376 = smul.addr %s375, 4
        %s377 = scalar_lea.vmem [#allocation9], %s376
        %p378 = pneg %p136
        %p379 = pneg %p133
        %s380 = sand.u32 %s28, 1
        %s381 = scalar_lea.sflag [#allocation10], %s380
        %s382 = sand.u32 %s151, 1
        %s383 = smul.addr %s382, 16
        %s384 = scalar_lea.vmem [#allocation11], %s383
        %p385 = pneg %p164
        %p386 = pneg %p161
        %p387 = pneg %p192
        %p388 = pneg %p189
        %s389 = sand.u32 %s179, 1
        %s390 = scalar_lea.sflag [#allocation5], %s389
        %s391 = sand.u32 %s179, 1
        %s392 = smul.addr %s391, 16
        %s393 = scalar_lea.vmem [#allocation12], %s392
        %s394 = smul.u32 2, %s33
        %s395 = smul.u32 2, %s33
        %s396 = smul.u32 2, %s33
        %p398 = scmp.eq.s32.totalorder %s33, 0
        // Predicated region
        $region61: #{tpu_custom_call.1} parent=39 // pred_check
          %p399 = pneg %p398
        $region62: #{tpu_custom_call.1} parent=39 // pred_check_branch
          %401 = sbr.rel (%p399) target = $region64
        $region63: #{tpu_custom_call.1} parent=39 // pred_region
          %v402 = vld [vmem:[%s321] sm:$0xff]
          %v403 = vld [vmem:[%s321 + $0x8] sm:$0xff]
          %s404 = scalar_lea.vmem %s321, 16 [#allocation3]
          %v405 = vld [vmem:[%s404] sm:$0xff]
          %v406 = vld [vmem:[%s404 + $0x8] sm:$0xff]
          %v407 = vld [vmem:[%s330] sm:$0xff]
          %v408 = vld [vmem:[%s330 + $0x8] sm:$0xff]
          %s409 = scalar_lea.vmem %s330, 16 [#allocation6]
          %v410 = vld [vmem:[%s409] sm:$0xff]
          %v411 = vld [vmem:[%s409 + $0x8] sm:$0xff]
          %v412 = vmul.f32 %v402, %v407
          %v413 = vmul.f32 %v403, %v408
          %v414 = vmul.f32 %v405, %v410
          %v415 = vmul.f32 %v406, %v411
          %v416 = vsub.f32 %v412, %v414
          %v417 = vsub.f32 %v413, %v415
          %v418 = vmul.f32 %v402, %v410
          %v419 = vmul.f32 %v403, %v411
          %v420 = vmul.f32 %v405, %v407
          %v421 = vmul.f32 %v406, %v408
          %v422 = vadd.f32 %v418, %v420
          %v423 = vadd.f32 %v419, %v421
          %v424 = vld [vmem:[#allocation8] sm:$0xf]
          %v425 = vld [vmem:[#allocation8 + $0x4] sm:$0xf]
          %v426 = vld [vmem:[#allocation8 + $0x8] sm:$0xf]
          %v427 = vld [vmem:[#allocation8 + $0xc] sm:$0xf]
          %v428 = vld [vmem:[#allocation8 + $0x10] sm:$0xf]
          %v429 = vld [vmem:[#allocation8 + $0x14] sm:$0xf]
          %v430 = vld [vmem:[#allocation8 + $0x18] sm:$0xf]
          %v431 = vld [vmem:[#allocation8 + $0x1c] sm:$0xf]
          %v432 = vunpack.c.l.bf16 %v424
          %v433 = vunpack.c.l.bf16 %v425
          %v434 = vunpack.c.l.bf16 %v426
          %v435 = vunpack.c.l.bf16 %v427
          %v436 = vunpack.c.l.bf16 %v428
          %v437 = vunpack.c.l.bf16 %v429
          %v438 = vunpack.c.l.bf16 %v430
          %v439 = vunpack.c.l.bf16 %v431
          %s440 = scalar_lea.vmem [#allocation8], 32
          %v441 = vld [vmem:[%s440] sm:$0xf]
          %v442 = vld [vmem:[%s440 + $0x4] sm:$0xf]
          %v443 = vld [vmem:[%s440 + $0x8] sm:$0xf]
          %v444 = vld [vmem:[%s440 + $0xc] sm:$0xf]
          %v445 = vld [vmem:[%s440 + $0x10] sm:$0xf]
          %v446 = vld [vmem:[%s440 + $0x14] sm:$0xf]
          %v447 = vld [vmem:[%s440 + $0x18] sm:$0xf]
          %v448 = vld [vmem:[%s440 + $0x1c] sm:$0xf]
          %v449 = vunpack.c.l.bf16 %v441
          %v450 = vunpack.c.l.bf16 %v442
          %v451 = vunpack.c.l.bf16 %v443
          %v452 = vunpack.c.l.bf16 %v444
          %v453 = vunpack.c.l.bf16 %v445
          %v454 = vunpack.c.l.bf16 %v446
          %v455 = vunpack.c.l.bf16 %v447
          %v456 = vunpack.c.l.bf16 %v448
          %v457 = vmul.f32 %v416, %v432
          %v458 = vmul.f32 %v417, %v433
          %v459 = vmul.f32 %v416, %v434
          %v460 = vmul.f32 %v417, %v435
          %v461 = vmul.f32 %v416, %v436
          %v462 = vmul.f32 %v417, %v437
          %v463 = vmul.f32 %v416, %v438
          %v464 = vmul.f32 %v417, %v439
          %v465 = vmul.f32 %v422, %v449
          %v466 = vmul.f32 %v423, %v450
          %v467 = vmul.f32 %v422, %v451
          %v468 = vmul.f32 %v423, %v452
          %v469 = vmul.f32 %v422, %v453
          %v470 = vmul.f32 %v423, %v454
          %v471 = vmul.f32 %v422, %v455
          %v472 = vmul.f32 %v423, %v456
          %v473 = vsub.f32 %v457, %v465
          %v474 = vsub.f32 %v458, %v466
          %v475 = vsub.f32 %v459, %v467
          %v476 = vsub.f32 %v460, %v468
          %v477 = vsub.f32 %v461, %v469
          %v478 = vsub.f32 %v462, %v470
          %v479 = vsub.f32 %v463, %v471
          %v480 = vsub.f32 %v464, %v472
          %v481 = vmul.f32 %v416, %v449
          %v482 = vmul.f32 %v417, %v450
          %v483 = vmul.f32 %v416, %v451
          %v484 = vmul.f32 %v417, %v452
          %v485 = vmul.f32 %v416, %v453
          %v486 = vmul.f32 %v417, %v454
          %v487 = vmul.f32 %v416, %v455
          %v488 = vmul.f32 %v417, %v456
          %v489 = vmul.f32 %v422, %v432
          %v490 = vmul.f32 %v423, %v433
          %v491 = vmul.f32 %v422, %v434
          %v492 = vmul.f32 %v423, %v435
          %v493 = vmul.f32 %v422, %v436
          %v494 = vmul.f32 %v423, %v437
          %v495 = vmul.f32 %v422, %v438
          %v496 = vmul.f32 %v423, %v439
          %v497 = vadd.f32 %v481, %v489
          %v498 = vadd.f32 %v482, %v490
          %v499 = vadd.f32 %v483, %v491
          %v500 = vadd.f32 %v484, %v492
          %v501 = vadd.f32 %v485, %v493
          %v502 = vadd.f32 %v486, %v494
          %v503 = vadd.f32 %v487, %v495
          %v504 = vadd.f32 %v488, %v496
          %v505 = vpack.c.bf16 %v474, %v473
          %v506 = vpack.c.bf16 %v476, %v475
          %v507 = vpack.c.bf16 %v478, %v477
          %v508 = vpack.c.bf16 %v480, %v479
          %v513 = vunpack.c.l.b16 %v505
          %v514 = vunpack.c.h.b16 %v505
          %v515 = vunpack.c.l.b16 %v506
          %v516 = vunpack.c.h.b16 %v506
          %v517 = vunpack.c.l.b16 %v507
          %v518 = vunpack.c.h.b16 %v507
          %v519 = vunpack.c.l.b16 %v508
          %v520 = vunpack.c.h.b16 %v508
          %v521 = vpack.c.b16 %v513, %v513
          %v522 = vpack.c.b16 %v514, %v514
          %v523 = vpack.c.b16 %v515, %v515
          %v524 = vpack.c.b16 %v516, %v516
          %v525 = vpack.c.b16 %v517, %v517
          %v526 = vpack.c.b16 %v518, %v518
          %v527 = vpack.c.b16 %v519, %v519
          %v528 = vpack.c.b16 %v520, %v520
          %vm537 = vcmask 125952
          %538 = vst.msk [vmem:[#allocation2] sm:$0xf] %vm537, %v521
          %539 = vst.msk [vmem:[#allocation2 + $0x4] sm:$0xf] %vm537, %v522
          %540 = vst.msk [vmem:[#allocation2 + $0x8] sm:$0xf] %vm537, %v523
          %541 = vst.msk [vmem:[#allocation2 + $0xc] sm:$0xf] %vm537, %v524
          %542 = vst.msk [vmem:[#allocation2 + $0x10] sm:$0xf] %vm537, %v525
          %543 = vst.msk [vmem:[#allocation2 + $0x14] sm:$0xf] %vm537, %v526
          %544 = vst.msk [vmem:[#allocation2 + $0x18] sm:$0xf] %vm537, %v527
          %545 = vst.msk [vmem:[#allocation2 + $0x1c] sm:$0xf] %vm537, %v528
          %v546 = vpack.c.bf16 %v498, %v497
          %v547 = vpack.c.bf16 %v500, %v499
          %v548 = vpack.c.bf16 %v502, %v501
          %v549 = vpack.c.bf16 %v504, %v503
          %v554 = vunpack.c.l.b16 %v546
          %v555 = vunpack.c.h.b16 %v546
          %v556 = vunpack.c.l.b16 %v547
          %v557 = vunpack.c.h.b16 %v547
          %v558 = vunpack.c.l.b16 %v548
          %v559 = vunpack.c.h.b16 %v548
          %v560 = vunpack.c.l.b16 %v549
          %v561 = vunpack.c.h.b16 %v549
          %v562 = vpack.c.b16 %v554, %v554
          %v563 = vpack.c.b16 %v555, %v555
          %v564 = vpack.c.b16 %v556, %v556
          %v565 = vpack.c.b16 %v557, %v557
          %v566 = vpack.c.b16 %v558, %v558
          %v567 = vpack.c.b16 %v559, %v559
          %v568 = vpack.c.b16 %v560, %v560
          %v569 = vpack.c.b16 %v561, %v561
          %578 = vst.msk [vmem:[#allocation2 + $0x20] sm:$0xf] %vm537, %v562
          %579 = vst.msk [vmem:[#allocation2 + $0x24] sm:$0xf] %vm537, %v563
          %580 = vst.msk [vmem:[#allocation2 + $0x28] sm:$0xf] %vm537, %v564
          %581 = vst.msk [vmem:[#allocation2 + $0x2c] sm:$0xf] %vm537, %v565
          %582 = vst.msk [vmem:[#allocation2 + $0x30] sm:$0xf] %vm537, %v566
          %583 = vst.msk [vmem:[#allocation2 + $0x34] sm:$0xf] %vm537, %v567
          %584 = vst.msk [vmem:[#allocation2 + $0x38] sm:$0xf] %vm537, %v568
          %585 = vst.msk [vmem:[#allocation2 + $0x3c] sm:$0xf] %vm537, %v569
        $region64: #{tpu_custom_call.1} parent=39 // pred_fallthru
          _
        %v586 = vld [vmem:[%s343] sm:$0xf]
        %v588 = vlaneseq
        %v589 = vshrl.u32 %v588, 7
        %v590 = vsub.s32 1, %v589
        %v591 = vrot.slane %v586, %v590
        %v592 = vlaneseq
        %v593 = vshrl.u32 %v592, 7
        %v594 = vsub.s32 3, %v593
        %v595 = vrot.slane %v586, %v594
        %v598 = vlaneseq
        %v599 = vshrl.u32 %v598, 7
        %v600 = vadd.s32 %v599, 8
        %v601 = vcvt.s32.f32 %v599
        %v602 = vcvt.s32.f32 %v600
        %v603 = vsub.f32 %v601, 8.0
        %v604 = vsub.f32 %v602, 8.0
        %v605 = vlaneseq
        %v606 = vshrl.u32 %v605, 7
        %v607 = vsub.s32 1, %v606
        %v608 = vrot.slane %v591, %v607
        %v609 = vlaneseq
        %v610 = vshrl.u32 %v609, 7
        %v611 = vsub.s32 1, %v610
        %v612 = vrot.slane %v595, %v611
        %v613 = vmul.f32 %v603, %v608
        %v614 = vmul.f32 %v603, %v612
        %v615 = vmul.f32 %v604, %v608
        %v616 = vmul.f32 %v604, %v612
        %v617 = vlaneseq
        %v618 = vshrl.u32 %v617, 7
        %v619 = vsub.s32 0, %v618
        %v620 = vlaneseq
        %v621 = vshrl.u32 %v620, 7
        %v622 = vsub.s32 0, %v621
        %v623 = vsub.f32 %v613, 0.0
        %v624 = vsub.f32 %v614, 0.0
        %v625 = vsub.f32 %v613, 1.5707964
        %v626 = vsub.f32 %v614, 1.5707964
        %v627 = vsub.f32 %v615, 0.0
        %v628 = vsub.f32 %v616, 0.0
        %v629 = vsub.f32 %v615, 1.5707964
        %v630 = vsub.f32 %v616, 1.5707964
        %v631 = vand.u32 2147483647, %v623
        %vm632 = vcmp.le.f32.partialorder %v631, 0.7853982
        %vm633 = vcmp.lt.s32.totalorder %v623, 0
        %v634 = vand.u32 %v623, 2139095040
        %v635 = vshrl.u32 %v634, 23
        %v636 = vsub.s32 %v635, 127
        %v637 = vand.u32 2147483647, %v623
        %v638 = vand.u32 %v637, 8388607
        %v639 = vor.u32 %v638, 8388608
        %v640 = vsub.s32 0, %v639
        %v641 = vadd.s32 %v636, 1
        %vm642 = vcmp.gt.s32.totalorder %v641, 0
        %v643 = vsel %vm642, %v641, 0
        %v644 = vshrl.u32 %v643, 5
        %v645 = vand.u32 %v643, 31
        %v646 = vsub.s32 32, %v645
        %v647 = vshrl.u32 683565275, %v646
        %v648 = vshll.u32 683565275, %v645
        %v649 = vshrl.u32 2475754826, %v646
        %v650 = vor.u32 %v648, %v649
        %v651 = vshll.u32 2475754826, %v645
        %v652 = vshrl.u32 2131351028, %v646
        %v653 = vor.u32 %v651, %v652
        %v654 = vshll.u32 2131351028, %v645
        %v655 = vshrl.u32 2102212464, %v646
        %v656 = vor.u32 %v654, %v655
        %v657 = vshll.u32 2102212464, %v645
        %v658 = vshrl.u32 920167782, %v646
        %v659 = vor.u32 %v657, %v658
        %v660 = vshll.u32 920167782, %v645
        %v661 = vshrl.u32 1326507024, %v646
        %v662 = vor.u32 %v660, %v661
        %vm663 = vcmp.lt.s32.totalorder %v644, 1
        %vm664 = vcmp.lt.s32.totalorder %v644, 2
        %vm665 = vcmp.lt.s32.totalorder %v644, 3
        %vm666 = vcmp.lt.s32.totalorder %v644, 4
        %v667 = vsel %vm663, %v647, %v650
        %v668 = vsel %vm666, %v656, 2102212464
        %v669 = vsel %vm665, %v653, %v668
        %v670 = vsel %vm664, %v667, %v669
        %v671 = vsel %vm663, %v650, %v653
        %v672 = vsel %vm666, %v659, 920167782
        %v673 = vsel %vm665, %v656, %v672
        %v674 = vsel %vm664, %v671, %v673
        %v675 = vsel %vm663, %v653, %v656
        %v676 = vsel %vm666, %v662, 1326507024
        %v677 = vsel %vm665, %v659, %v676
        %v678 = vsel %vm664, %v675, %v677
        %v679 = vshll.u32 %v639, 8
        %v680 = vmul.u32.u64.compose %v679, %v678
        %v681 = vextract.low.u32 %v680
        %v682 = vextract.high.u32 %v680
        %v683 = vmul.u32.u64.compose %v679, %v674
        %v684 = vextract.low.u32 %v683
        %v685 = vextract.high.u32 %v683
        %v686 = vmul.u32 %v679, %v670
        %v687 = vadd.s32 %v682, %v684
        %vm688 = vc.u32 %v682, %v684
        %v689 = vadd.s32 %v685, 1
        %v690 = vsel %vm688, %v689, %v685
        %v691 = vadd.s32 %v686, %v690
        %v692 = vadd.s32 %v691, 536870912
        %v693 = vshrl.u32 %v692, 30
        %v694 = vshll.u32 %v693, 30
        %v695 = vsub.s32 %v691, %v694
        %vm696 = vcmp.lt.s32.totalorder %v695, 0
        %v697 = vsub.s32 0, %v695
        %v698 = vsel %vm696, %v697, %v695
        %v699 = vclz %v698
        %v700 = vsub.s32 %v699, 2
        %vm701 = vcmp.gt.s32.totalorder 0, %v700
        %v702 = vsel %vm701, 0, %v700
        %v703 = vsub.s32 32, %v702
        %v704 = vshll.u32 %v695, %v702
        %v705 = vshrl.u32 %v687, %v703
        %v706 = vor.u32 %v704, %v705
        %v707 = vsub.s32 4294967266, %v702
        %v708 = vadd.s32 %v707, 127
        %v709 = vshll.u32 %v708, 23
        %v710 = vor.u32 4788187, %v709
        %v711 = vand.u32 2147483647, %v710
        %v713 = vcvt.s32.f32 %v706
        %v714 = vmul.f32 %v713, %v711
        %v715 = vxor.u32 %v714, 2147483648
        %v716 = vsel %vm633, %v715, %v714
        %v717 = vsub.s32 4, %v693
        %v718 = vsel %vm633, %v717, %v693
        %v719 = vsel %vm632, %v623, %v716
        %v720 = vsel %vm632, 0, %v718
        %v721 = vcosq.f32.pop %v719
        %v722 = vsinq.f32.pop %v719
        %vm723 = vweird.f32 %v623
        %v724 = vand.u32 %v720, 3
        %vm725 = vcmp.lt.s32.totalorder %v724, 2
        %vm726 = vcmp.eq.s32.totalorder %v724, 0
        %v727 = vxor.u32 %v722, 2147483648
        %v728 = vsel %vm726, %v721, %v727
        %vm729 = vcmp.eq.s32.totalorder %v724, 2
        %v730 = vxor.u32 %v721, 2147483648
        %v731 = vsel %vm729, %v730, %v722
        %v732 = vsel %vm725, %v728, %v731
        %v733 = vsel %vm723, nan, %v732
        %v734 = vand.u32 2147483647, %v624
        %vm735 = vcmp.le.f32.partialorder %v734, 0.7853982
        %vm736 = vcmp.lt.s32.totalorder %v624, 0
        %v737 = vand.u32 %v624, 2139095040
        %v738 = vshrl.u32 %v737, 23
        %v739 = vsub.s32 %v738, 127
        %v740 = vand.u32 2147483647, %v624
        %v741 = vand.u32 %v740, 8388607
        %v742 = vor.u32 %v741, 8388608
        %v743 = vsub.s32 0, %v742
        %v744 = vadd.s32 %v739, 1
        %vm745 = vcmp.gt.s32.totalorder %v744, 0
        %v746 = vsel %vm745, %v744, 0
        %v747 = vshrl.u32 %v746, 5
        %v748 = vand.u32 %v746, 31
        %v749 = vsub.s32 32, %v748
        %v750 = vshrl.u32 683565275, %v749
        %v751 = vshll.u32 683565275, %v748
        %v752 = vshrl.u32 2475754826, %v749
        %v753 = vor.u32 %v751, %v752
        %v754 = vshll.u32 2475754826, %v748
        %v755 = vshrl.u32 2131351028, %v749
        %v756 = vor.u32 %v754, %v755
        %v757 = vshll.u32 2131351028, %v748
        %v758 = vshrl.u32 2102212464, %v749
        %v759 = vor.u32 %v757, %v758
        %v760 = vshll.u32 2102212464, %v748
        %v761 = vshrl.u32 920167782, %v749
        %v762 = vor.u32 %v760, %v761
        %v763 = vshll.u32 920167782, %v748
        %v764 = vshrl.u32 1326507024, %v749
        %v765 = vor.u32 %v763, %v764
        %vm766 = vcmp.lt.s32.totalorder %v747, 1
        %vm767 = vcmp.lt.s32.totalorder %v747, 2
        %vm768 = vcmp.lt.s32.totalorder %v747, 3
        %vm769 = vcmp.lt.s32.totalorder %v747, 4
        %v770 = vsel %vm766, %v750, %v753
        %v771 = vsel %vm769, %v759, 2102212464
        %v772 = vsel %vm768, %v756, %v771
        %v773 = vsel %vm767, %v770, %v772
        %v774 = vsel %vm766, %v753, %v756
        %v775 = vsel %vm769, %v762, 920167782
        %v776 = vsel %vm768, %v759, %v775
        %v777 = vsel %vm767, %v774, %v776
        %v778 = vsel %vm766, %v756, %v759
        %v779 = vsel %vm769, %v765, 1326507024
        %v780 = vsel %vm768, %v762, %v779
        %v781 = vsel %vm767, %v778, %v780
        %v782 = vshll.u32 %v742, 8
        %v783 = vmul.u32.u64.compose %v782, %v781
        %v784 = vextract.low.u32 %v783
        %v785 = vextract.high.u32 %v783
        %v786 = vmul.u32.u64.compose %v782, %v777
        %v787 = vextract.low.u32 %v786
        %v788 = vextract.high.u32 %v786
        %v789 = vmul.u32 %v782, %v773
        %v790 = vadd.s32 %v785, %v787
        %vm791 = vc.u32 %v785, %v787
        %v792 = vadd.s32 %v788, 1
        %v793 = vsel %vm791, %v792, %v788
        %v794 = vadd.s32 %v789, %v793
        %v795 = vadd.s32 %v794, 536870912
        %v796 = vshrl.u32 %v795, 30
        %v797 = vshll.u32 %v796, 30
        %v798 = vsub.s32 %v794, %v797
        %vm799 = vcmp.lt.s32.totalorder %v798, 0
        %v800 = vsub.s32 0, %v798
        %v801 = vsel %vm799, %v800, %v798
        %v802 = vclz %v801
        %v803 = vsub.s32 %v802, 2
        %vm804 = vcmp.gt.s32.totalorder 0, %v803
        %v805 = vsel %vm804, 0, %v803
        %v806 = vsub.s32 32, %v805
        %v807 = vshll.u32 %v798, %v805
        %v808 = vshrl.u32 %v790, %v806
        %v809 = vor.u32 %v807, %v808
        %v810 = vsub.s32 4294967266, %v805
        %v811 = vadd.s32 %v810, 127
        %v812 = vshll.u32 %v811, 23
        %v813 = vor.u32 4788187, %v812
        %v814 = vand.u32 2147483647, %v813
        %v816 = vcvt.s32.f32 %v809
        %v817 = vmul.f32 %v816, %v814
        %v818 = vxor.u32 %v817, 2147483648
        %v819 = vsel %vm736, %v818, %v817
        %v820 = vsub.s32 4, %v796
        %v821 = vsel %vm736, %v820, %v796
        %v822 = vsel %vm735, %v624, %v819
        %v823 = vsel %vm735, 0, %v821
        %v824 = vcosq.f32.pop %v822
        %v825 = vsinq.f32.pop %v822
        %vm826 = vweird.f32 %v624
        %v827 = vand.u32 %v823, 3
        %vm828 = vcmp.lt.s32.totalorder %v827, 2
        %vm829 = vcmp.eq.s32.totalorder %v827, 0
        %v830 = vxor.u32 %v825, 2147483648
        %v831 = vsel %vm829, %v824, %v830
        %vm832 = vcmp.eq.s32.totalorder %v827, 2
        %v833 = vxor.u32 %v824, 2147483648
        %v834 = vsel %vm832, %v833, %v825
        %v835 = vsel %vm828, %v831, %v834
        %v836 = vsel %vm826, nan, %v835
        %v837 = vand.u32 2147483647, %v625
        %vm838 = vcmp.le.f32.partialorder %v837, 0.7853982
        %vm839 = vcmp.lt.s32.totalorder %v625, 0
        %v840 = vand.u32 %v625, 2139095040
        %v841 = vshrl.u32 %v840, 23
        %v842 = vsub.s32 %v841, 127
        %v843 = vand.u32 2147483647, %v625
        %v844 = vand.u32 %v843, 8388607
        %v845 = vor.u32 %v844, 8388608
        %v846 = vsub.s32 0, %v845
        %v847 = vadd.s32 %v842, 1
        %vm848 = vcmp.gt.s32.totalorder %v847, 0
        %v849 = vsel %vm848, %v847, 0
        %v850 = vshrl.u32 %v849, 5
        %v851 = vand.u32 %v849, 31
        %v852 = vsub.s32 32, %v851
        %v853 = vshrl.u32 683565275, %v852
        %v854 = vshll.u32 683565275, %v851
        %v855 = vshrl.u32 2475754826, %v852
        %v856 = vor.u32 %v854, %v855
        %v857 = vshll.u32 2475754826, %v851
        %v858 = vshrl.u32 2131351028, %v852
        %v859 = vor.u32 %v857, %v858
        %v860 = vshll.u32 2131351028, %v851
        %v861 = vshrl.u32 2102212464, %v852
        %v862 = vor.u32 %v860, %v861
        %v863 = vshll.u32 2102212464, %v851
        %v864 = vshrl.u32 920167782, %v852
        %v865 = vor.u32 %v863, %v864
        %v866 = vshll.u32 920167782, %v851
        %v867 = vshrl.u32 1326507024, %v852
        %v868 = vor.u32 %v866, %v867
        %vm869 = vcmp.lt.s32.totalorder %v850, 1
        %vm870 = vcmp.lt.s32.totalorder %v850, 2
        %vm871 = vcmp.lt.s32.totalorder %v850, 3
        %vm872 = vcmp.lt.s32.totalorder %v850, 4
        %v873 = vsel %vm869, %v853, %v856
        %v874 = vsel %vm872, %v862, 2102212464
        %v875 = vsel %vm871, %v859, %v874
        %v876 = vsel %vm870, %v873, %v875
        %v877 = vsel %vm869, %v856, %v859
        %v878 = vsel %vm872, %v865, 920167782
        %v879 = vsel %vm871, %v862, %v878
        %v880 = vsel %vm870, %v877, %v879
        %v881 = vsel %vm869, %v859, %v862
        %v882 = vsel %vm872, %v868, 1326507024
        %v883 = vsel %vm871, %v865, %v882
        %v884 = vsel %vm870, %v881, %v883
        %v885 = vshll.u32 %v845, 8
        %v886 = vmul.u32.u64.compose %v885, %v884
        %v887 = vextract.low.u32 %v886
        %v888 = vextract.high.u32 %v886
        %v889 = vmul.u32.u64.compose %v885, %v880
        %v890 = vextract.low.u32 %v889
        %v891 = vextract.high.u32 %v889
        %v892 = vmul.u32 %v885, %v876
        %v893 = vadd.s32 %v888, %v890
        %vm894 = vc.u32 %v888, %v890
        %v895 = vadd.s32 %v891, 1
        %v896 = vsel %vm894, %v895, %v891
        %v897 = vadd.s32 %v892, %v896
        %v898 = vadd.s32 %v897, 536870912
        %v899 = vshrl.u32 %v898, 30
        %v900 = vshll.u32 %v899, 30
        %v901 = vsub.s32 %v897, %v900
        %vm902 = vcmp.lt.s32.totalorder %v901, 0
        %v903 = vsub.s32 0, %v901
        %v904 = vsel %vm902, %v903, %v901
        %v905 = vclz %v904
        %v906 = vsub.s32 %v905, 2
        %vm907 = vcmp.gt.s32.totalorder 0, %v906
        %v908 = vsel %vm907, 0, %v906
        %v909 = vsub.s32 32, %v908
        %v910 = vshll.u32 %v901, %v908
        %v911 = vshrl.u32 %v893, %v909
        %v912 = vor.u32 %v910, %v911
        %v913 = vsub.s32 4294967266, %v908
        %v914 = vadd.s32 %v913, 127
        %v915 = vshll.u32 %v914, 23
        %v916 = vor.u32 4788187, %v915
        %v917 = vand.u32 2147483647, %v916
        %v919 = vcvt.s32.f32 %v912
        %v920 = vmul.f32 %v919, %v917
        %v921 = vxor.u32 %v920, 2147483648
        %v922 = vsel %vm839, %v921, %v920
        %v923 = vsub.s32 4, %v899
        %v924 = vsel %vm839, %v923, %v899
        %v925 = vsel %vm838, %v625, %v922
        %v926 = vsel %vm838, 0, %v924
        %v927 = vcosq.f32.pop %v925
        %v928 = vsinq.f32.pop %v925
        %vm929 = vweird.f32 %v625
        %v930 = vand.u32 %v926, 3
        %vm931 = vcmp.lt.s32.totalorder %v930, 2
        %vm932 = vcmp.eq.s32.totalorder %v930, 0
        %v933 = vxor.u32 %v928, 2147483648
        %v934 = vsel %vm932, %v927, %v933
        %vm935 = vcmp.eq.s32.totalorder %v930, 2
        %v936 = vxor.u32 %v927, 2147483648
        %v937 = vsel %vm935, %v936, %v928
        %v938 = vsel %vm931, %v934, %v937
        %v939 = vsel %vm929, nan, %v938
        %v940 = vand.u32 2147483647, %v626
        %vm941 = vcmp.le.f32.partialorder %v940, 0.7853982
        %vm942 = vcmp.lt.s32.totalorder %v626, 0
        %v943 = vand.u32 %v626, 2139095040
        %v944 = vshrl.u32 %v943, 23
        %v945 = vsub.s32 %v944, 127
        %v946 = vand.u32 2147483647, %v626
        %v947 = vand.u32 %v946, 8388607
        %v948 = vor.u32 %v947, 8388608
        %v949 = vsub.s32 0, %v948
        %v950 = vadd.s32 %v945, 1
        %vm951 = vcmp.gt.s32.totalorder %v950, 0
        %v952 = vsel %vm951, %v950, 0
        %v953 = vshrl.u32 %v952, 5
        %v954 = vand.u32 %v952, 31
        %v955 = vsub.s32 32, %v954
        %v956 = vshrl.u32 683565275, %v955
        %v957 = vshll.u32 683565275, %v954
        %v958 = vshrl.u32 2475754826, %v955
        %v959 = vor.u32 %v957, %v958
        %v960 = vshll.u32 2475754826, %v954
        %v961 = vshrl.u32 2131351028, %v955
        %v962 = vor.u32 %v960, %v961
        %v963 = vshll.u32 2131351028, %v954
        %v964 = vshrl.u32 2102212464, %v955
        %v965 = vor.u32 %v963, %v964
        %v966 = vshll.u32 2102212464, %v954
        %v967 = vshrl.u32 920167782, %v955
        %v968 = vor.u32 %v966, %v967
        %v969 = vshll.u32 920167782, %v954
        %v970 = vshrl.u32 1326507024, %v955
        %v971 = vor.u32 %v969, %v970
        %vm972 = vcmp.lt.s32.totalorder %v953, 1
        %vm973 = vcmp.lt.s32.totalorder %v953, 2
        %vm974 = vcmp.lt.s32.totalorder %v953, 3
        %vm975 = vcmp.lt.s32.totalorder %v953, 4
        %v976 = vsel %vm972, %v956, %v959
        %v977 = vsel %vm975, %v965, 2102212464
        %v978 = vsel %vm974, %v962, %v977
        %v979 = vsel %vm973, %v976, %v978
        %v980 = vsel %vm972, %v959, %v962
        %v981 = vsel %vm975, %v968, 920167782
        %v982 = vsel %vm974, %v965, %v981
        %v983 = vsel %vm973, %v980, %v982
        %v984 = vsel %vm972, %v962, %v965
        %v985 = vsel %vm975, %v971, 1326507024
        %v986 = vsel %vm974, %v968, %v985
        %v987 = vsel %vm973, %v984, %v986
        %v988 = vshll.u32 %v948, 8
        %v989 = vmul.u32.u64.compose %v988, %v987
        %v990 = vextract.low.u32 %v989
        %v991 = vextract.high.u32 %v989
        %v992 = vmul.u32.u64.compose %v988, %v983
        %v993 = vextract.low.u32 %v992
        %v994 = vextract.high.u32 %v992
        %v995 = vmul.u32 %v988, %v979
        %v996 = vadd.s32 %v991, %v993
        %vm997 = vc.u32 %v991, %v993
        %v998 = vadd.s32 %v994, 1
        %v999 = vsel %vm997, %v998, %v994
        %v1000 = vadd.s32 %v995, %v999
        %v1001 = vadd.s32 %v1000, 536870912
        %v1002 = vshrl.u32 %v1001, 30
        %v1003 = vshll.u32 %v1002, 30
        %v1004 = vsub.s32 %v1000, %v1003
        %vm1005 = vcmp.lt.s32.totalorder %v1004, 0
        %v1006 = vsub.s32 0, %v1004
        %v1007 = vsel %vm1005, %v1006, %v1004
        %v1008 = vclz %v1007
        %v1009 = vsub.s32 %v1008, 2
        %vm1010 = vcmp.gt.s32.totalorder 0, %v1009
        %v1011 = vsel %vm1010, 0, %v1009
        %v1012 = vsub.s32 32, %v1011
        %v1013 = vshll.u32 %v1004, %v1011
        %v1014 = vshrl.u32 %v996, %v1012
        %v1015 = vor.u32 %v1013, %v1014
        %v1016 = vsub.s32 4294967266, %v1011
        %v1017 = vadd.s32 %v1016, 127
        %v1018 = vshll.u32 %v1017, 23
        %v1019 = vor.u32 4788187, %v1018
        %v1020 = vand.u32 2147483647, %v1019
        %v1022 = vcvt.s32.f32 %v1015
        %v1023 = vmul.f32 %v1022, %v1020
        %v1024 = vxor.u32 %v1023, 2147483648
        %v1025 = vsel %vm942, %v1024, %v1023
        %v1026 = vsub.s32 4, %v1002
        %v1027 = vsel %vm942, %v1026, %v1002
        %v1028 = vsel %vm941, %v626, %v1025
        %v1029 = vsel %vm941, 0, %v1027
        %v1030 = vcosq.f32.pop %v1028
        %v1031 = vsinq.f32.pop %v1028
        %vm1032 = vweird.f32 %v626
        %v1033 = vand.u32 %v1029, 3
        %vm1034 = vcmp.lt.s32.totalorder %v1033, 2
        %vm1035 = vcmp.eq.s32.totalorder %v1033, 0
        %v1036 = vxor.u32 %v1031, 2147483648
        %v1037 = vsel %vm1035, %v1030, %v1036
        %vm1038 = vcmp.eq.s32.totalorder %v1033, 2
        %v1039 = vxor.u32 %v1030, 2147483648
        %v1040 = vsel %vm1038, %v1039, %v1031
        %v1041 = vsel %vm1034, %v1037, %v1040
        %v1042 = vsel %vm1032, nan, %v1041
        %v1043 = vand.u32 2147483647, %v627
        %vm1044 = vcmp.le.f32.partialorder %v1043, 0.7853982
        %vm1045 = vcmp.lt.s32.totalorder %v627, 0
        %v1046 = vand.u32 %v627, 2139095040
        %v1047 = vshrl.u32 %v1046, 23
        %v1048 = vsub.s32 %v1047, 127
        %v1049 = vand.u32 2147483647, %v627
        %v1050 = vand.u32 %v1049, 8388607
        %v1051 = vor.u32 %v1050, 8388608
        %v1052 = vsub.s32 0, %v1051
        %v1053 = vadd.s32 %v1048, 1
        %vm1054 = vcmp.gt.s32.totalorder %v1053, 0
        %v1055 = vsel %vm1054, %v1053, 0
        %v1056 = vshrl.u32 %v1055, 5
        %v1057 = vand.u32 %v1055, 31
        %v1058 = vsub.s32 32, %v1057
        %v1059 = vshrl.u32 683565275, %v1058
        %v1060 = vshll.u32 683565275, %v1057
        %v1061 = vshrl.u32 2475754826, %v1058
        %v1062 = vor.u32 %v1060, %v1061
        %v1063 = vshll.u32 2475754826, %v1057
        %v1064 = vshrl.u32 2131351028, %v1058
        %v1065 = vor.u32 %v1063, %v1064
        %v1066 = vshll.u32 2131351028, %v1057
        %v1067 = vshrl.u32 2102212464, %v1058
        %v1068 = vor.u32 %v1066, %v1067
        %v1069 = vshll.u32 2102212464, %v1057
        %v1070 = vshrl.u32 920167782, %v1058
        %v1071 = vor.u32 %v1069, %v1070
        %v1072 = vshll.u32 920167782, %v1057
        %v1073 = vshrl.u32 1326507024, %v1058
        %v1074 = vor.u32 %v1072, %v1073
        %vm1075 = vcmp.lt.s32.totalorder %v1056, 1
        %vm1076 = vcmp.lt.s32.totalorder %v1056, 2
        %vm1077 = vcmp.lt.s32.totalorder %v1056, 3
        %vm1078 = vcmp.lt.s32.totalorder %v1056, 4
        %v1079 = vsel %vm1075, %v1059, %v1062
        %v1080 = vsel %vm1078, %v1068, 2102212464
        %v1081 = vsel %vm1077, %v1065, %v1080
        %v1082 = vsel %vm1076, %v1079, %v1081
        %v1083 = vsel %vm1075, %v1062, %v1065
        %v1084 = vsel %vm1078, %v1071, 920167782
        %v1085 = vsel %vm1077, %v1068, %v1084
        %v1086 = vsel %vm1076, %v1083, %v1085
        %v1087 = vsel %vm1075, %v1065, %v1068
        %v1088 = vsel %vm1078, %v1074, 1326507024
        %v1089 = vsel %vm1077, %v1071, %v1088
        %v1090 = vsel %vm1076, %v1087, %v1089
        %v1091 = vshll.u32 %v1051, 8
        %v1092 = vmul.u32.u64.compose %v1091, %v1090
        %v1093 = vextract.low.u32 %v1092
        %v1094 = vextract.high.u32 %v1092
        %v1095 = vmul.u32.u64.compose %v1091, %v1086
        %v1096 = vextract.low.u32 %v1095
        %v1097 = vextract.high.u32 %v1095
        %v1098 = vmul.u32 %v1091, %v1082
        %v1099 = vadd.s32 %v1094, %v1096
        %vm1100 = vc.u32 %v1094, %v1096
        %v1101 = vadd.s32 %v1097, 1
        %v1102 = vsel %vm1100, %v1101, %v1097
        %v1103 = vadd.s32 %v1098, %v1102
        %v1104 = vadd.s32 %v1103, 536870912
        %v1105 = vshrl.u32 %v1104, 30
        %v1106 = vshll.u32 %v1105, 30
        %v1107 = vsub.s32 %v1103, %v1106
        %vm1108 = vcmp.lt.s32.totalorder %v1107, 0
        %v1109 = vsub.s32 0, %v1107
        %v1110 = vsel %vm1108, %v1109, %v1107
        %v1111 = vclz %v1110
        %v1112 = vsub.s32 %v1111, 2
        %vm1113 = vcmp.gt.s32.totalorder 0, %v1112
        %v1114 = vsel %vm1113, 0, %v1112
        %v1115 = vsub.s32 32, %v1114
        %v1116 = vshll.u32 %v1107, %v1114
        %v1117 = vshrl.u32 %v1099, %v1115
        %v1118 = vor.u32 %v1116, %v1117
        %v1119 = vsub.s32 4294967266, %v1114
        %v1120 = vadd.s32 %v1119, 127
        %v1121 = vshll.u32 %v1120, 23
        %v1122 = vor.u32 4788187, %v1121
        %v1123 = vand.u32 2147483647, %v1122
        %v1125 = vcvt.s32.f32 %v1118
        %v1126 = vmul.f32 %v1125, %v1123
        %v1127 = vxor.u32 %v1126, 2147483648
        %v1128 = vsel %vm1045, %v1127, %v1126
        %v1129 = vsub.s32 4, %v1105
        %v1130 = vsel %vm1045, %v1129, %v1105
        %v1131 = vsel %vm1044, %v627, %v1128
        %v1132 = vsel %vm1044, 0, %v1130
        %v1133 = vcosq.f32.pop %v1131
        %v1134 = vsinq.f32.pop %v1131
        %vm1135 = vweird.f32 %v627
        %v1136 = vand.u32 %v1132, 3
        %vm1137 = vcmp.lt.s32.totalorder %v1136, 2
        %vm1138 = vcmp.eq.s32.totalorder %v1136, 0
        %v1139 = vxor.u32 %v1134, 2147483648
        %v1140 = vsel %vm1138, %v1133, %v1139
        %vm1141 = vcmp.eq.s32.totalorder %v1136, 2
        %v1142 = vxor.u32 %v1133, 2147483648
        %v1143 = vsel %vm1141, %v1142, %v1134
        %v1144 = vsel %vm1137, %v1140, %v1143
        %v1145 = vsel %vm1135, nan, %v1144
        %v1146 = vand.u32 2147483647, %v628
        %vm1147 = vcmp.le.f32.partialorder %v1146, 0.7853982
        %vm1148 = vcmp.lt.s32.totalorder %v628, 0
        %v1149 = vand.u32 %v628, 2139095040
        %v1150 = vshrl.u32 %v1149, 23
        %v1151 = vsub.s32 %v1150, 127
        %v1152 = vand.u32 2147483647, %v628
        %v1153 = vand.u32 %v1152, 8388607
        %v1154 = vor.u32 %v1153, 8388608
        %v1155 = vsub.s32 0, %v1154
        %v1156 = vadd.s32 %v1151, 1
        %vm1157 = vcmp.gt.s32.totalorder %v1156, 0
        %v1158 = vsel %vm1157, %v1156, 0
        %v1159 = vshrl.u32 %v1158, 5
        %v1160 = vand.u32 %v1158, 31
        %v1161 = vsub.s32 32, %v1160
        %v1162 = vshrl.u32 683565275, %v1161
        %v1163 = vshll.u32 683565275, %v1160
        %v1164 = vshrl.u32 2475754826, %v1161
        %v1165 = vor.u32 %v1163, %v1164
        %v1166 = vshll.u32 2475754826, %v1160
        %v1167 = vshrl.u32 2131351028, %v1161
        %v1168 = vor.u32 %v1166, %v1167
        %v1169 = vshll.u32 2131351028, %v1160
        %v1170 = vshrl.u32 2102212464, %v1161
        %v1171 = vor.u32 %v1169, %v1170
        %v1172 = vshll.u32 2102212464, %v1160
        %v1173 = vshrl.u32 920167782, %v1161
        %v1174 = vor.u32 %v1172, %v1173
        %v1175 = vshll.u32 920167782, %v1160
        %v1176 = vshrl.u32 1326507024, %v1161
        %v1177 = vor.u32 %v1175, %v1176
        %vm1178 = vcmp.lt.s32.totalorder %v1159, 1
        %vm1179 = vcmp.lt.s32.totalorder %v1159, 2
        %vm1180 = vcmp.lt.s32.totalorder %v1159, 3
        %vm1181 = vcmp.lt.s32.totalorder %v1159, 4
        %v1182 = vsel %vm1178, %v1162, %v1165
        %v1183 = vsel %vm1181, %v1171, 2102212464
        %v1184 = vsel %vm1180, %v1168, %v1183
        %v1185 = vsel %vm1179, %v1182, %v1184
        %v1186 = vsel %vm1178, %v1165, %v1168
        %v1187 = vsel %vm1181, %v1174, 920167782
        %v1188 = vsel %vm1180, %v1171, %v1187
        %v1189 = vsel %vm1179, %v1186, %v1188
        %v1190 = vsel %vm1178, %v1168, %v1171
        %v1191 = vsel %vm1181, %v1177, 1326507024
        %v1192 = vsel %vm1180, %v1174, %v1191
        %v1193 = vsel %vm1179, %v1190, %v1192
        %v1194 = vshll.u32 %v1154, 8
        %v1195 = vmul.u32.u64.compose %v1194, %v1193
        %v1196 = vextract.low.u32 %v1195
        %v1197 = vextract.high.u32 %v1195
        %v1198 = vmul.u32.u64.compose %v1194, %v1189
        %v1199 = vextract.low.u32 %v1198
        %v1200 = vextract.high.u32 %v1198
        %v1201 = vmul.u32 %v1194, %v1185
        %v1202 = vadd.s32 %v1197, %v1199
        %vm1203 = vc.u32 %v1197, %v1199
        %v1204 = vadd.s32 %v1200, 1
        %v1205 = vsel %vm1203, %v1204, %v1200
        %v1206 = vadd.s32 %v1201, %v1205
        %v1207 = vadd.s32 %v1206, 536870912
        %v1208 = vshrl.u32 %v1207, 30
        %v1209 = vshll.u32 %v1208, 30
        %v1210 = vsub.s32 %v1206, %v1209
        %vm1211 = vcmp.lt.s32.totalorder %v1210, 0
        %v1212 = vsub.s32 0, %v1210
        %v1213 = vsel %vm1211, %v1212, %v1210
        %v1214 = vclz %v1213
        %v1215 = vsub.s32 %v1214, 2
        %vm1216 = vcmp.gt.s32.totalorder 0, %v1215
        %v1217 = vsel %vm1216, 0, %v1215
        %v1218 = vsub.s32 32, %v1217
        %v1219 = vshll.u32 %v1210, %v1217
        %v1220 = vshrl.u32 %v1202, %v1218
        %v1221 = vor.u32 %v1219, %v1220
        %v1222 = vsub.s32 4294967266, %v1217
        %v1223 = vadd.s32 %v1222, 127
        %v1224 = vshll.u32 %v1223, 23
        %v1225 = vor.u32 4788187, %v1224
        %v1226 = vand.u32 2147483647, %v1225
        %v1228 = vcvt.s32.f32 %v1221
        %v1229 = vmul.f32 %v1228, %v1226
        %v1230 = vxor.u32 %v1229, 2147483648
        %v1231 = vsel %vm1148, %v1230, %v1229
        %v1232 = vsub.s32 4, %v1208
        %v1233 = vsel %vm1148, %v1232, %v1208
        %v1234 = vsel %vm1147, %v628, %v1231
        %v1235 = vsel %vm1147, 0, %v1233
        %v1236 = vcosq.f32.pop %v1234
        %v1237 = vsinq.f32.pop %v1234
        %vm1238 = vweird.f32 %v628
        %v1239 = vand.u32 %v1235, 3
        %vm1240 = vcmp.lt.s32.totalorder %v1239, 2
        %vm1241 = vcmp.eq.s32.totalorder %v1239, 0
        %v1242 = vxor.u32 %v1237, 2147483648
        %v1243 = vsel %vm1241, %v1236, %v1242
        %vm1244 = vcmp.eq.s32.totalorder %v1239, 2
        %v1245 = vxor.u32 %v1236, 2147483648
        %v1246 = vsel %vm1244, %v1245, %v1237
        %v1247 = vsel %vm1240, %v1243, %v1246
        %v1248 = vsel %vm1238, nan, %v1247
        %v1249 = vand.u32 2147483647, %v629
        %vm1250 = vcmp.le.f32.partialorder %v1249, 0.7853982
        %vm1251 = vcmp.lt.s32.totalorder %v629, 0
        %v1252 = vand.u32 %v629, 2139095040
        %v1253 = vshrl.u32 %v1252, 23
        %v1254 = vsub.s32 %v1253, 127
        %v1255 = vand.u32 2147483647, %v629
        %v1256 = vand.u32 %v1255, 8388607
        %v1257 = vor.u32 %v1256, 8388608
        %v1258 = vsub.s32 0, %v1257
        %v1259 = vadd.s32 %v1254, 1
        %vm1260 = vcmp.gt.s32.totalorder %v1259, 0
        %v1261 = vsel %vm1260, %v1259, 0
        %v1262 = vshrl.u32 %v1261, 5
        %v1263 = vand.u32 %v1261, 31
        %v1264 = vsub.s32 32, %v1263
        %v1265 = vshrl.u32 683565275, %v1264
        %v1266 = vshll.u32 683565275, %v1263
        %v1267 = vshrl.u32 2475754826, %v1264
        %v1268 = vor.u32 %v1266, %v1267
        %v1269 = vshll.u32 2475754826, %v1263
        %v1270 = vshrl.u32 2131351028, %v1264
        %v1271 = vor.u32 %v1269, %v1270
        %v1272 = vshll.u32 2131351028, %v1263
        %v1273 = vshrl.u32 2102212464, %v1264
        %v1274 = vor.u32 %v1272, %v1273
        %v1275 = vshll.u32 2102212464, %v1263
        %v1276 = vshrl.u32 920167782, %v1264
        %v1277 = vor.u32 %v1275, %v1276
        %v1278 = vshll.u32 920167782, %v1263
        %v1279 = vshrl.u32 1326507024, %v1264
        %v1280 = vor.u32 %v1278, %v1279
        %vm1281 = vcmp.lt.s32.totalorder %v1262, 1
        %vm1282 = vcmp.lt.s32.totalorder %v1262, 2
        %vm1283 = vcmp.lt.s32.totalorder %v1262, 3
        %vm1284 = vcmp.lt.s32.totalorder %v1262, 4
        %v1285 = vsel %vm1281, %v1265, %v1268
        %v1286 = vsel %vm1284, %v1274, 2102212464
        %v1287 = vsel %vm1283, %v1271, %v1286
        %v1288 = vsel %vm1282, %v1285, %v1287
        %v1289 = vsel %vm1281, %v1268, %v1271
        %v1290 = vsel %vm1284, %v1277, 920167782
        %v1291 = vsel %vm1283, %v1274, %v1290
        %v1292 = vsel %vm1282, %v1289, %v1291
        %v1293 = vsel %vm1281, %v1271, %v1274
        %v1294 = vsel %vm1284, %v1280, 1326507024
        %v1295 = vsel %vm1283, %v1277, %v1294
        %v1296 = vsel %vm1282, %v1293, %v1295
        %v1297 = vshll.u32 %v1257, 8
        %v1298 = vmul.u32.u64.compose %v1297, %v1296
        %v1299 = vextract.low.u32 %v1298
        %v1300 = vextract.high.u32 %v1298
        %v1301 = vmul.u32.u64.compose %v1297, %v1292
        %v1302 = vextract.low.u32 %v1301
        %v1303 = vextract.high.u32 %v1301
        %v1304 = vmul.u32 %v1297, %v1288
        %v1305 = vadd.s32 %v1300, %v1302
        %vm1306 = vc.u32 %v1300, %v1302
        %v1307 = vadd.s32 %v1303, 1
        %v1308 = vsel %vm1306, %v1307, %v1303
        %v1309 = vadd.s32 %v1304, %v1308
        %v1310 = vadd.s32 %v1309, 536870912
        %v1311 = vshrl.u32 %v1310, 30
        %v1312 = vshll.u32 %v1311, 30
        %v1313 = vsub.s32 %v1309, %v1312
        %vm1314 = vcmp.lt.s32.totalorder %v1313, 0
        %v1315 = vsub.s32 0, %v1313
        %v1316 = vsel %vm1314, %v1315, %v1313
        %v1317 = vclz %v1316
        %v1318 = vsub.s32 %v1317, 2
        %vm1319 = vcmp.gt.s32.totalorder 0, %v1318
        %v1320 = vsel %vm1319, 0, %v1318
        %v1321 = vsub.s32 32, %v1320
        %v1322 = vshll.u32 %v1313, %v1320
        %v1323 = vshrl.u32 %v1305, %v1321
        %v1324 = vor.u32 %v1322, %v1323
        %v1325 = vsub.s32 4294967266, %v1320
        %v1326 = vadd.s32 %v1325, 127
        %v1327 = vshll.u32 %v1326, 23
        %v1328 = vor.u32 4788187, %v1327
        %v1329 = vand.u32 2147483647, %v1328
        %v1331 = vcvt.s32.f32 %v1324
        %v1332 = vmul.f32 %v1331, %v1329
        %v1333 = vxor.u32 %v1332, 2147483648
        %v1334 = vsel %vm1251, %v1333, %v1332
        %v1335 = vsub.s32 4, %v1311
        %v1336 = vsel %vm1251, %v1335, %v1311
        %v1337 = vsel %vm1250, %v629, %v1334
        %v1338 = vsel %vm1250, 0, %v1336
        %v1339 = vcosq.f32.pop %v1337
        %v1340 = vsinq.f32.pop %v1337
        %vm1341 = vweird.f32 %v629
        %v1342 = vand.u32 %v1338, 3
        %vm1343 = vcmp.lt.s32.totalorder %v1342, 2
        %vm1344 = vcmp.eq.s32.totalorder %v1342, 0
        %v1345 = vxor.u32 %v1340, 2147483648
        %v1346 = vsel %vm1344, %v1339, %v1345
        %vm1347 = vcmp.eq.s32.totalorder %v1342, 2
        %v1348 = vxor.u32 %v1339, 2147483648
        %v1349 = vsel %vm1347, %v1348, %v1340
        %v1350 = vsel %vm1343, %v1346, %v1349
        %v1351 = vsel %vm1341, nan, %v1350
        %v1352 = vand.u32 2147483647, %v630
        %vm1353 = vcmp.le.f32.partialorder %v1352, 0.7853982
        %vm1354 = vcmp.lt.s32.totalorder %v630, 0
        %v1355 = vand.u32 %v630, 2139095040
        %v1356 = vshrl.u32 %v1355, 23
        %v1357 = vsub.s32 %v1356, 127
        %v1358 = vand.u32 2147483647, %v630
        %v1359 = vand.u32 %v1358, 8388607
        %v1360 = vor.u32 %v1359, 8388608
        %v1361 = vsub.s32 0, %v1360
        %v1362 = vadd.s32 %v1357, 1
        %vm1363 = vcmp.gt.s32.totalorder %v1362, 0
        %v1364 = vsel %vm1363, %v1362, 0
        %v1365 = vshrl.u32 %v1364, 5
        %v1366 = vand.u32 %v1364, 31
        %v1367 = vsub.s32 32, %v1366
        %v1368 = vshrl.u32 683565275, %v1367
        %v1369 = vshll.u32 683565275, %v1366
        %v1370 = vshrl.u32 2475754826, %v1367
        %v1371 = vor.u32 %v1369, %v1370
        %v1372 = vshll.u32 2475754826, %v1366
        %v1373 = vshrl.u32 2131351028, %v1367
        %v1374 = vor.u32 %v1372, %v1373
        %v1375 = vshll.u32 2131351028, %v1366
        %v1376 = vshrl.u32 2102212464, %v1367
        %v1377 = vor.u32 %v1375, %v1376
        %v1378 = vshll.u32 2102212464, %v1366
        %v1379 = vshrl.u32 920167782, %v1367
        %v1380 = vor.u32 %v1378, %v1379
        %v1381 = vshll.u32 920167782, %v1366
        %v1382 = vshrl.u32 1326507024, %v1367
        %v1383 = vor.u32 %v1381, %v1382
        %vm1384 = vcmp.lt.s32.totalorder %v1365, 1
        %vm1385 = vcmp.lt.s32.totalorder %v1365, 2
        %vm1386 = vcmp.lt.s32.totalorder %v1365, 3
        %vm1387 = vcmp.lt.s32.totalorder %v1365, 4
        %v1388 = vsel %vm1384, %v1368, %v1371
        %v1389 = vsel %vm1387, %v1377, 2102212464
        %v1390 = vsel %vm1386, %v1374, %v1389
        %v1391 = vsel %vm1385, %v1388, %v1390
        %v1392 = vsel %vm1384, %v1371, %v1374
        %v1393 = vsel %vm1387, %v1380, 920167782
        %v1394 = vsel %vm1386, %v1377, %v1393
        %v1395 = vsel %vm1385, %v1392, %v1394
        %v1396 = vsel %vm1384, %v1374, %v1377
        %v1397 = vsel %vm1387, %v1383, 1326507024
        %v1398 = vsel %vm1386, %v1380, %v1397
        %v1399 = vsel %vm1385, %v1396, %v1398
        %v1400 = vshll.u32 %v1360, 8
        %v1401 = vmul.u32.u64.compose %v1400, %v1399
        %v1402 = vextract.low.u32 %v1401
        %v1403 = vextract.high.u32 %v1401
        %v1404 = vmul.u32.u64.compose %v1400, %v1395
        %v1405 = vextract.low.u32 %v1404
        %v1406 = vextract.high.u32 %v1404
        %v1407 = vmul.u32 %v1400, %v1391
        %v1408 = vadd.s32 %v1403, %v1405
        %vm1409 = vc.u32 %v1403, %v1405
        %v1410 = vadd.s32 %v1406, 1
        %v1411 = vsel %vm1409, %v1410, %v1406
        %v1412 = vadd.s32 %v1407, %v1411
        %v1413 = vadd.s32 %v1412, 536870912
        %v1414 = vshrl.u32 %v1413, 30
        %v1415 = vshll.u32 %v1414, 30
        %v1416 = vsub.s32 %v1412, %v1415
        %vm1417 = vcmp.lt.s32.totalorder %v1416, 0
        %v1418 = vsub.s32 0, %v1416
        %v1419 = vsel %vm1417, %v1418, %v1416
        %v1420 = vclz %v1419
        %v1421 = vsub.s32 %v1420, 2
        %vm1422 = vcmp.gt.s32.totalorder 0, %v1421
        %v1423 = vsel %vm1422, 0, %v1421
        %v1424 = vsub.s32 32, %v1423
        %v1425 = vshll.u32 %v1416, %v1423
        %v1426 = vshrl.u32 %v1408, %v1424
        %v1427 = vor.u32 %v1425, %v1426
        %v1428 = vsub.s32 4294967266, %v1423
        %v1429 = vadd.s32 %v1428, 127
        %v1430 = vshll.u32 %v1429, 23
        %v1431 = vor.u32 4788187, %v1430
        %v1432 = vand.u32 2147483647, %v1431
        %v1434 = vcvt.s32.f32 %v1427
        %v1435 = vmul.f32 %v1434, %v1432
        %v1436 = vxor.u32 %v1435, 2147483648
        %v1437 = vsel %vm1354, %v1436, %v1435
        %v1438 = vsub.s32 4, %v1414
        %v1439 = vsel %vm1354, %v1438, %v1414
        %v1440 = vsel %vm1353, %v630, %v1437
        %v1441 = vsel %vm1353, 0, %v1439
        %v1442 = vcosq.f32.pop %v1440
        %v1443 = vsinq.f32.pop %v1440
        %vm1444 = vweird.f32 %v630
        %v1445 = vand.u32 %v1441, 3
        %vm1446 = vcmp.lt.s32.totalorder %v1445, 2
        %vm1447 = vcmp.eq.s32.totalorder %v1445, 0
        %v1448 = vxor.u32 %v1443, 2147483648
        %v1449 = vsel %vm1447, %v1442, %v1448
        %vm1450 = vcmp.eq.s32.totalorder %v1445, 2
        %v1451 = vxor.u32 %v1442, 2147483648
        %v1452 = vsel %vm1450, %v1451, %v1443
        %v1453 = vsel %vm1446, %v1449, %v1452
        %v1454 = vsel %vm1444, nan, %v1453
        %v1455 = vpack.c.bf16 %v1145, %v733
        %v1456 = vpack.c.bf16 %v1248, %v836
        %v1457 = vpack.c.bf16 %v1351, %v939
        %v1458 = vpack.c.bf16 %v1454, %v1042
        %v1459 = vlaneseq
        %v1460 = vshrl.u32 %v1459, 7
        %v1461 = vsub.s32 0, %v1460
        %v1462 = vrot.slane %v586, %v1461
        %v1463 = vlaneseq
        %v1464 = vshrl.u32 %v1463, 7
        %v1465 = vsub.s32 2, %v1464
        %v1466 = vrot.slane %v586, %v1465
        %v1469 = vlaneseq
        %v1470 = vshrl.u32 %v1469, 7
        %v1471 = vsub.s32 0, %v1470
        %v1472 = vrot.slane %v1462, %v1471
        %v1473 = vlaneseq
        %v1474 = vshrl.u32 %v1473, 7
        %v1475 = vsub.s32 0, %v1474
        %v1476 = vrot.slane %v1466, %v1475
        %v1477 = vmul.f32 %v603, %v1472
        %v1478 = vmul.f32 %v603, %v1476
        %v1479 = vmul.f32 %v604, %v1472
        %v1480 = vmul.f32 %v604, %v1476
        %v1481 = vand.u32 2147483647, %v1477
        %vm1482 = vcmp.le.f32.partialorder %v1481, 0.7853982
        %vm1483 = vcmp.lt.s32.totalorder %v1477, 0
        %v1484 = vand.u32 %v1477, 2139095040
        %v1485 = vshrl.u32 %v1484, 23
        %v1486 = vsub.s32 %v1485, 127
        %v1487 = vand.u32 2147483647, %v1477
        %v1488 = vand.u32 %v1487, 8388607
        %v1489 = vor.u32 %v1488, 8388608
        %v1490 = vsub.s32 0, %v1489
        %v1491 = vadd.s32 %v1486, 1
        %vm1492 = vcmp.gt.s32.totalorder %v1491, 0
        %v1493 = vsel %vm1492, %v1491, 0
        %v1494 = vshrl.u32 %v1493, 5
        %v1495 = vand.u32 %v1493, 31
        %v1496 = vsub.s32 32, %v1495
        %v1497 = vshrl.u32 683565275, %v1496
        %v1498 = vshll.u32 683565275, %v1495
        %v1499 = vshrl.u32 2475754826, %v1496
        %v1500 = vor.u32 %v1498, %v1499
        %v1501 = vshll.u32 2475754826, %v1495
        %v1502 = vshrl.u32 2131351028, %v1496
        %v1503 = vor.u32 %v1501, %v1502
        %v1504 = vshll.u32 2131351028, %v1495
        %v1505 = vshrl.u32 2102212464, %v1496
        %v1506 = vor.u32 %v1504, %v1505
        %v1507 = vshll.u32 2102212464, %v1495
        %v1508 = vshrl.u32 920167782, %v1496
        %v1509 = vor.u32 %v1507, %v1508
        %v1510 = vshll.u32 920167782, %v1495
        %v1511 = vshrl.u32 1326507024, %v1496
        %v1512 = vor.u32 %v1510, %v1511
        %vm1513 = vcmp.lt.s32.totalorder %v1494, 1
        %vm1514 = vcmp.lt.s32.totalorder %v1494, 2
        %vm1515 = vcmp.lt.s32.totalorder %v1494, 3
        %vm1516 = vcmp.lt.s32.totalorder %v1494, 4
        %v1517 = vsel %vm1513, %v1497, %v1500
        %v1518 = vsel %vm1516, %v1506, 2102212464
        %v1519 = vsel %vm1515, %v1503, %v1518
        %v1520 = vsel %vm1514, %v1517, %v1519
        %v1521 = vsel %vm1513, %v1500, %v1503
        %v1522 = vsel %vm1516, %v1509, 920167782
        %v1523 = vsel %vm1515, %v1506, %v1522
        %v1524 = vsel %vm1514, %v1521, %v1523
        %v1525 = vsel %vm1513, %v1503, %v1506
        %v1526 = vsel %vm1516, %v1512, 1326507024
        %v1527 = vsel %vm1515, %v1509, %v1526
        %v1528 = vsel %vm1514, %v1525, %v1527
        %v1529 = vshll.u32 %v1489, 8
        %v1530 = vmul.u32.u64.compose %v1529, %v1528
        %v1531 = vextract.low.u32 %v1530
        %v1532 = vextract.high.u32 %v1530
        %v1533 = vmul.u32.u64.compose %v1529, %v1524
        %v1534 = vextract.low.u32 %v1533
        %v1535 = vextract.high.u32 %v1533
        %v1536 = vmul.u32 %v1529, %v1520
        %v1537 = vadd.s32 %v1532, %v1534
        %vm1538 = vc.u32 %v1532, %v1534
        %v1539 = vadd.s32 %v1535, 1
        %v1540 = vsel %vm1538, %v1539, %v1535
        %v1541 = vadd.s32 %v1536, %v1540
        %v1542 = vadd.s32 %v1541, 536870912
        %v1543 = vshrl.u32 %v1542, 30
        %v1544 = vshll.u32 %v1543, 30
        %v1545 = vsub.s32 %v1541, %v1544
        %vm1546 = vcmp.lt.s32.totalorder %v1545, 0
        %v1547 = vsub.s32 0, %v1545
        %v1548 = vsel %vm1546, %v1547, %v1545
        %v1549 = vclz %v1548
        %v1550 = vsub.s32 %v1549, 2
        %vm1551 = vcmp.gt.s32.totalorder 0, %v1550
        %v1552 = vsel %vm1551, 0, %v1550
        %v1553 = vsub.s32 32, %v1552
        %v1554 = vshll.u32 %v1545, %v1552
        %v1555 = vshrl.u32 %v1537, %v1553
        %v1556 = vor.u32 %v1554, %v1555
        %v1557 = vsub.s32 4294967266, %v1552
        %v1558 = vadd.s32 %v1557, 127
        %v1559 = vshll.u32 %v1558, 23
        %v1560 = vor.u32 4788187, %v1559
        %v1561 = vand.u32 2147483647, %v1560
        %v1563 = vcvt.s32.f32 %v1556
        %v1564 = vmul.f32 %v1563, %v1561
        %v1565 = vxor.u32 %v1564, 2147483648
        %v1566 = vsel %vm1483, %v1565, %v1564
        %v1567 = vsub.s32 4, %v1543
        %v1568 = vsel %vm1483, %v1567, %v1543
        %v1569 = vsel %vm1482, %v1477, %v1566
        %v1570 = vsel %vm1482, 0, %v1568
        %v1571 = vcosq.f32.pop %v1569
        %v1572 = vsinq.f32.pop %v1569
        %vm1573 = vweird.f32 %v1477
        %v1574 = vand.u32 %v1570, 3
        %vm1575 = vcmp.lt.s32.totalorder %v1574, 2
        %vm1576 = vcmp.eq.s32.totalorder %v1574, 0
        %v1577 = vxor.u32 %v1572, 2147483648
        %v1578 = vsel %vm1576, %v1571, %v1577
        %vm1579 = vcmp.eq.s32.totalorder %v1574, 2
        %v1580 = vxor.u32 %v1571, 2147483648
        %v1581 = vsel %vm1579, %v1580, %v1572
        %v1582 = vsel %vm1575, %v1578, %v1581
        %v1583 = vsel %vm1573, nan, %v1582
        %v1584 = vand.u32 2147483647, %v1478
        %vm1585 = vcmp.le.f32.partialorder %v1584, 0.7853982
        %vm1586 = vcmp.lt.s32.totalorder %v1478, 0
        %v1587 = vand.u32 %v1478, 2139095040
        %v1588 = vshrl.u32 %v1587, 23
        %v1589 = vsub.s32 %v1588, 127
        %v1590 = vand.u32 2147483647, %v1478
        %v1591 = vand.u32 %v1590, 8388607
        %v1592 = vor.u32 %v1591, 8388608
        %v1593 = vsub.s32 0, %v1592
        %v1594 = vadd.s32 %v1589, 1
        %vm1595 = vcmp.gt.s32.totalorder %v1594, 0
        %v1596 = vsel %vm1595, %v1594, 0
        %v1597 = vshrl.u32 %v1596, 5
        %v1598 = vand.u32 %v1596, 31
        %v1599 = vsub.s32 32, %v1598
        %v1600 = vshrl.u32 683565275, %v1599
        %v1601 = vshll.u32 683565275, %v1598
        %v1602 = vshrl.u32 2475754826, %v1599
        %v1603 = vor.u32 %v1601, %v1602
        %v1604 = vshll.u32 2475754826, %v1598
        %v1605 = vshrl.u32 2131351028, %v1599
        %v1606 = vor.u32 %v1604, %v1605
        %v1607 = vshll.u32 2131351028, %v1598
        %v1608 = vshrl.u32 2102212464, %v1599
        %v1609 = vor.u32 %v1607, %v1608
        %v1610 = vshll.u32 2102212464, %v1598
        %v1611 = vshrl.u32 920167782, %v1599
        %v1612 = vor.u32 %v1610, %v1611
        %v1613 = vshll.u32 920167782, %v1598
        %v1614 = vshrl.u32 1326507024, %v1599
        %v1615 = vor.u32 %v1613, %v1614
        %vm1616 = vcmp.lt.s32.totalorder %v1597, 1
        %vm1617 = vcmp.lt.s32.totalorder %v1597, 2
        %vm1618 = vcmp.lt.s32.totalorder %v1597, 3
        %vm1619 = vcmp.lt.s32.totalorder %v1597, 4
        %v1620 = vsel %vm1616, %v1600, %v1603
        %v1621 = vsel %vm1619, %v1609, 2102212464
        %v1622 = vsel %vm1618, %v1606, %v1621
        %v1623 = vsel %vm1617, %v1620, %v1622
        %v1624 = vsel %vm1616, %v1603, %v1606
        %v1625 = vsel %vm1619, %v1612, 920167782
        %v1626 = vsel %vm1618, %v1609, %v1625
        %v1627 = vsel %vm1617, %v1624, %v1626
        %v1628 = vsel %vm1616, %v1606, %v1609
        %v1629 = vsel %vm1619, %v1615, 1326507024
        %v1630 = vsel %vm1618, %v1612, %v1629
        %v1631 = vsel %vm1617, %v1628, %v1630
        %v1632 = vshll.u32 %v1592, 8
        %v1633 = vmul.u32.u64.compose %v1632, %v1631
        %v1634 = vextract.low.u32 %v1633
        %v1635 = vextract.high.u32 %v1633
        %v1636 = vmul.u32.u64.compose %v1632, %v1627
        %v1637 = vextract.low.u32 %v1636
        %v1638 = vextract.high.u32 %v1636
        %v1639 = vmul.u32 %v1632, %v1623
        %v1640 = vadd.s32 %v1635, %v1637
        %vm1641 = vc.u32 %v1635, %v1637
        %v1642 = vadd.s32 %v1638, 1
        %v1643 = vsel %vm1641, %v1642, %v1638
        %v1644 = vadd.s32 %v1639, %v1643
        %v1645 = vadd.s32 %v1644, 536870912
        %v1646 = vshrl.u32 %v1645, 30
        %v1647 = vshll.u32 %v1646, 30
        %v1648 = vsub.s32 %v1644, %v1647
        %vm1649 = vcmp.lt.s32.totalorder %v1648, 0
        %v1650 = vsub.s32 0, %v1648
        %v1651 = vsel %vm1649, %v1650, %v1648
        %v1652 = vclz %v1651
        %v1653 = vsub.s32 %v1652, 2
        %vm1654 = vcmp.gt.s32.totalorder 0, %v1653
        %v1655 = vsel %vm1654, 0, %v1653
        %v1656 = vsub.s32 32, %v1655
        %v1657 = vshll.u32 %v1648, %v1655
        %v1658 = vshrl.u32 %v1640, %v1656
        %v1659 = vor.u32 %v1657, %v1658
        %v1660 = vsub.s32 4294967266, %v1655
        %v1661 = vadd.s32 %v1660, 127
        %v1662 = vshll.u32 %v1661, 23
        %v1663 = vor.u32 4788187, %v1662
        %v1664 = vand.u32 2147483647, %v1663
        %v1666 = vcvt.s32.f32 %v1659
        %v1667 = vmul.f32 %v1666, %v1664
        %v1668 = vxor.u32 %v1667, 2147483648
        %v1669 = vsel %vm1586, %v1668, %v1667
        %v1670 = vsub.s32 4, %v1646
        %v1671 = vsel %vm1586, %v1670, %v1646
        %v1672 = vsel %vm1585, %v1478, %v1669
        %v1673 = vsel %vm1585, 0, %v1671
        %v1674 = vcosq.f32.pop %v1672
        %v1675 = vsinq.f32.pop %v1672
        %vm1676 = vweird.f32 %v1478
        %v1677 = vand.u32 %v1673, 3
        %vm1678 = vcmp.lt.s32.totalorder %v1677, 2
        %vm1679 = vcmp.eq.s32.totalorder %v1677, 0
        %v1680 = vxor.u32 %v1675, 2147483648
        %v1681 = vsel %vm1679, %v1674, %v1680
        %vm1682 = vcmp.eq.s32.totalorder %v1677, 2
        %v1683 = vxor.u32 %v1674, 2147483648
        %v1684 = vsel %vm1682, %v1683, %v1675
        %v1685 = vsel %vm1678, %v1681, %v1684
        %v1686 = vsel %vm1676, nan, %v1685
        %v1687 = vand.u32 2147483647, %v1479
        %vm1688 = vcmp.le.f32.partialorder %v1687, 0.7853982
        %vm1689 = vcmp.lt.s32.totalorder %v1479, 0
        %v1690 = vand.u32 %v1479, 2139095040
        %v1691 = vshrl.u32 %v1690, 23
        %v1692 = vsub.s32 %v1691, 127
        %v1693 = vand.u32 2147483647, %v1479
        %v1694 = vand.u32 %v1693, 8388607
        %v1695 = vor.u32 %v1694, 8388608
        %v1696 = vsub.s32 0, %v1695
        %v1697 = vadd.s32 %v1692, 1
        %vm1698 = vcmp.gt.s32.totalorder %v1697, 0
        %v1699 = vsel %vm1698, %v1697, 0
        %v1700 = vshrl.u32 %v1699, 5
        %v1701 = vand.u32 %v1699, 31
        %v1702 = vsub.s32 32, %v1701
        %v1703 = vshrl.u32 683565275, %v1702
        %v1704 = vshll.u32 683565275, %v1701
        %v1705 = vshrl.u32 2475754826, %v1702
        %v1706 = vor.u32 %v1704, %v1705
        %v1707 = vshll.u32 2475754826, %v1701
        %v1708 = vshrl.u32 2131351028, %v1702
        %v1709 = vor.u32 %v1707, %v1708
        %v1710 = vshll.u32 2131351028, %v1701
        %v1711 = vshrl.u32 2102212464, %v1702
        %v1712 = vor.u32 %v1710, %v1711
        %v1713 = vshll.u32 2102212464, %v1701
        %v1714 = vshrl.u32 920167782, %v1702
        %v1715 = vor.u32 %v1713, %v1714
        %v1716 = vshll.u32 920167782, %v1701
        %v1717 = vshrl.u32 1326507024, %v1702
        %v1718 = vor.u32 %v1716, %v1717
        %vm1719 = vcmp.lt.s32.totalorder %v1700, 1
        %vm1720 = vcmp.lt.s32.totalorder %v1700, 2
        %vm1721 = vcmp.lt.s32.totalorder %v1700, 3
        %vm1722 = vcmp.lt.s32.totalorder %v1700, 4
        %v1723 = vsel %vm1719, %v1703, %v1706
        %v1724 = vsel %vm1722, %v1712, 2102212464
        %v1725 = vsel %vm1721, %v1709, %v1724
        %v1726 = vsel %vm1720, %v1723, %v1725
        %v1727 = vsel %vm1719, %v1706, %v1709
        %v1728 = vsel %vm1722, %v1715, 920167782
        %v1729 = vsel %vm1721, %v1712, %v1728
        %v1730 = vsel %vm1720, %v1727, %v1729
        %v1731 = vsel %vm1719, %v1709, %v1712
        %v1732 = vsel %vm1722, %v1718, 1326507024
        %v1733 = vsel %vm1721, %v1715, %v1732
        %v1734 = vsel %vm1720, %v1731, %v1733
        %v1735 = vshll.u32 %v1695, 8
        %v1736 = vmul.u32.u64.compose %v1735, %v1734
        %v1737 = vextract.low.u32 %v1736
        %v1738 = vextract.high.u32 %v1736
        %v1739 = vmul.u32.u64.compose %v1735, %v1730
        %v1740 = vextract.low.u32 %v1739
        %v1741 = vextract.high.u32 %v1739
        %v1742 = vmul.u32 %v1735, %v1726
        %v1743 = vadd.s32 %v1738, %v1740
        %vm1744 = vc.u32 %v1738, %v1740
        %v1745 = vadd.s32 %v1741, 1
        %v1746 = vsel %vm1744, %v1745, %v1741
        %v1747 = vadd.s32 %v1742, %v1746
        %v1748 = vadd.s32 %v1747, 536870912
        %v1749 = vshrl.u32 %v1748, 30
        %v1750 = vshll.u32 %v1749, 30
        %v1751 = vsub.s32 %v1747, %v1750
        %vm1752 = vcmp.lt.s32.totalorder %v1751, 0
        %v1753 = vsub.s32 0, %v1751
        %v1754 = vsel %vm1752, %v1753, %v1751
        %v1755 = vclz %v1754
        %v1756 = vsub.s32 %v1755, 2
        %vm1757 = vcmp.gt.s32.totalorder 0, %v1756
        %v1758 = vsel %vm1757, 0, %v1756
        %v1759 = vsub.s32 32, %v1758
        %v1760 = vshll.u32 %v1751, %v1758
        %v1761 = vshrl.u32 %v1743, %v1759
        %v1762 = vor.u32 %v1760, %v1761
        %v1763 = vsub.s32 4294967266, %v1758
        %v1764 = vadd.s32 %v1763, 127
        %v1765 = vshll.u32 %v1764, 23
        %v1766 = vor.u32 4788187, %v1765
        %v1767 = vand.u32 2147483647, %v1766
        %v1769 = vcvt.s32.f32 %v1762
        %v1770 = vmul.f32 %v1769, %v1767
        %v1771 = vxor.u32 %v1770, 2147483648
        %v1772 = vsel %vm1689, %v1771, %v1770
        %v1773 = vsub.s32 4, %v1749
        %v1774 = vsel %vm1689, %v1773, %v1749
        %v1775 = vsel %vm1688, %v1479, %v1772
        %v1776 = vsel %vm1688, 0, %v1774
        %v1777 = vcosq.f32.pop %v1775
        %v1778 = vsinq.f32.pop %v1775
        %vm1779 = vweird.f32 %v1479
        %v1780 = vand.u32 %v1776, 3
        %vm1781 = vcmp.lt.s32.totalorder %v1780, 2
        %vm1782 = vcmp.eq.s32.totalorder %v1780, 0
        %v1783 = vxor.u32 %v1778, 2147483648
        %v1784 = vsel %vm1782, %v1777, %v1783
        %vm1785 = vcmp.eq.s32.totalorder %v1780, 2
        %v1786 = vxor.u32 %v1777, 2147483648
        %v1787 = vsel %vm1785, %v1786, %v1778
        %v1788 = vsel %vm1781, %v1784, %v1787
        %v1789 = vsel %vm1779, nan, %v1788
        %v1790 = vand.u32 2147483647, %v1480
        %vm1791 = vcmp.le.f32.partialorder %v1790, 0.7853982
        %vm1792 = vcmp.lt.s32.totalorder %v1480, 0
        %v1793 = vand.u32 %v1480, 2139095040
        %v1794 = vshrl.u32 %v1793, 23
        %v1795 = vsub.s32 %v1794, 127
        %v1796 = vand.u32 2147483647, %v1480
        %v1797 = vand.u32 %v1796, 8388607
        %v1798 = vor.u32 %v1797, 8388608
        %v1799 = vsub.s32 0, %v1798
        %v1800 = vadd.s32 %v1795, 1
        %vm1801 = vcmp.gt.s32.totalorder %v1800, 0
        %v1802 = vsel %vm1801, %v1800, 0
        %v1803 = vshrl.u32 %v1802, 5
        %v1804 = vand.u32 %v1802, 31
        %v1805 = vsub.s32 32, %v1804
        %v1806 = vshrl.u32 683565275, %v1805
        %v1807 = vshll.u32 683565275, %v1804
        %v1808 = vshrl.u32 2475754826, %v1805
        %v1809 = vor.u32 %v1807, %v1808
        %v1810 = vshll.u32 2475754826, %v1804
        %v1811 = vshrl.u32 2131351028, %v1805
        %v1812 = vor.u32 %v1810, %v1811
        %v1813 = vshll.u32 2131351028, %v1804
        %v1814 = vshrl.u32 2102212464, %v1805
        %v1815 = vor.u32 %v1813, %v1814
        %v1816 = vshll.u32 2102212464, %v1804
        %v1817 = vshrl.u32 920167782, %v1805
        %v1818 = vor.u32 %v1816, %v1817
        %v1819 = vshll.u32 920167782, %v1804
        %v1820 = vshrl.u32 1326507024, %v1805
        %v1821 = vor.u32 %v1819, %v1820
        %vm1822 = vcmp.lt.s32.totalorder %v1803, 1
        %vm1823 = vcmp.lt.s32.totalorder %v1803, 2
        %vm1824 = vcmp.lt.s32.totalorder %v1803, 3
        %vm1825 = vcmp.lt.s32.totalorder %v1803, 4
        %v1826 = vsel %vm1822, %v1806, %v1809
        %v1827 = vsel %vm1825, %v1815, 2102212464
        %v1828 = vsel %vm1824, %v1812, %v1827
        %v1829 = vsel %vm1823, %v1826, %v1828
        %v1830 = vsel %vm1822, %v1809, %v1812
        %v1831 = vsel %vm1825, %v1818, 920167782
        %v1832 = vsel %vm1824, %v1815, %v1831
        %v1833 = vsel %vm1823, %v1830, %v1832
        %v1834 = vsel %vm1822, %v1812, %v1815
        %v1835 = vsel %vm1825, %v1821, 1326507024
        %v1836 = vsel %vm1824, %v1818, %v1835
        %v1837 = vsel %vm1823, %v1834, %v1836
        %v1838 = vshll.u32 %v1798, 8
        %v1839 = vmul.u32.u64.compose %v1838, %v1837
        %v1840 = vextract.low.u32 %v1839
        %v1841 = vextract.high.u32 %v1839
        %v1842 = vmul.u32.u64.compose %v1838, %v1833
        %v1843 = vextract.low.u32 %v1842
        %v1844 = vextract.high.u32 %v1842
        %v1845 = vmul.u32 %v1838, %v1829
        %v1846 = vadd.s32 %v1841, %v1843
        %vm1847 = vc.u32 %v1841, %v1843
        %v1848 = vadd.s32 %v1844, 1
        %v1849 = vsel %vm1847, %v1848, %v1844
        %v1850 = vadd.s32 %v1845, %v1849
        %v1851 = vadd.s32 %v1850, 536870912
        %v1852 = vshrl.u32 %v1851, 30
        %v1853 = vshll.u32 %v1852, 30
        %v1854 = vsub.s32 %v1850, %v1853
        %vm1855 = vcmp.lt.s32.totalorder %v1854, 0
        %v1856 = vsub.s32 0, %v1854
        %v1857 = vsel %vm1855, %v1856, %v1854
        %v1858 = vclz %v1857
        %v1859 = vsub.s32 %v1858, 2
        %vm1860 = vcmp.gt.s32.totalorder 0, %v1859
        %v1861 = vsel %vm1860, 0, %v1859
        %v1862 = vsub.s32 32, %v1861
        %v1863 = vshll.u32 %v1854, %v1861
        %v1864 = vshrl.u32 %v1846, %v1862
        %v1865 = vor.u32 %v1863, %v1864
        %v1866 = vsub.s32 4294967266, %v1861
        %v1867 = vadd.s32 %v1866, 127
        %v1868 = vshll.u32 %v1867, 23
        %v1869 = vor.u32 4788187, %v1868
        %v1870 = vand.u32 2147483647, %v1869
        %v1872 = vcvt.s32.f32 %v1865
        %v1873 = vmul.f32 %v1872, %v1870
        %v1874 = vxor.u32 %v1873, 2147483648
        %v1875 = vsel %vm1792, %v1874, %v1873
        %v1876 = vsub.s32 4, %v1852
        %v1877 = vsel %vm1792, %v1876, %v1852
        %v1878 = vsel %vm1791, %v1480, %v1875
        %v1879 = vsel %vm1791, 0, %v1877
        %v1880 = vcosq.f32.pop %v1878
        %v1881 = vsinq.f32.pop %v1878
        %vm1882 = vweird.f32 %v1480
        %v1883 = vand.u32 %v1879, 3
        %vm1884 = vcmp.lt.s32.totalorder %v1883, 2
        %vm1885 = vcmp.eq.s32.totalorder %v1883, 0
        %v1886 = vxor.u32 %v1881, 2147483648
        %v1887 = vsel %vm1885, %v1880, %v1886
        %vm1888 = vcmp.eq.s32.totalorder %v1883, 2
        %v1889 = vxor.u32 %v1880, 2147483648
        %v1890 = vsel %vm1888, %v1889, %v1881
        %v1891 = vsel %vm1884, %v1887, %v1890
        %v1892 = vsel %vm1882, nan, %v1891
        %v1893 = vand.u32 2147483647, %v1477
        %vm1894 = vcmp.le.f32.partialorder %v1893, 0.7853982
        %vm1895 = vcmp.lt.s32.totalorder %v1477, 0
        %v1896 = vand.u32 %v1477, 2139095040
        %v1897 = vshrl.u32 %v1896, 23
        %v1898 = vsub.s32 %v1897, 127
        %v1899 = vand.u32 2147483647, %v1477
        %v1900 = vand.u32 %v1899, 8388607
        %v1901 = vor.u32 %v1900, 8388608
        %v1902 = vsub.s32 0, %v1901
        %v1903 = vadd.s32 %v1898, 1
        %vm1904 = vcmp.gt.s32.totalorder %v1903, 0
        %v1905 = vsel %vm1904, %v1903, 0
        %v1906 = vshrl.u32 %v1905, 5
        %v1907 = vand.u32 %v1905, 31
        %v1908 = vsub.s32 32, %v1907
        %v1909 = vshrl.u32 683565275, %v1908
        %v1910 = vshll.u32 683565275, %v1907
        %v1911 = vshrl.u32 2475754826, %v1908
        %v1912 = vor.u32 %v1910, %v1911
        %v1913 = vshll.u32 2475754826, %v1907
        %v1914 = vshrl.u32 2131351028, %v1908
        %v1915 = vor.u32 %v1913, %v1914
        %v1916 = vshll.u32 2131351028, %v1907
        %v1917 = vshrl.u32 2102212464, %v1908
        %v1918 = vor.u32 %v1916, %v1917
        %v1919 = vshll.u32 2102212464, %v1907
        %v1920 = vshrl.u32 920167782, %v1908
        %v1921 = vor.u32 %v1919, %v1920
        %v1922 = vshll.u32 920167782, %v1907
        %v1923 = vshrl.u32 1326507024, %v1908
        %v1924 = vor.u32 %v1922, %v1923
        %vm1925 = vcmp.lt.s32.totalorder %v1906, 1
        %vm1926 = vcmp.lt.s32.totalorder %v1906, 2
        %vm1927 = vcmp.lt.s32.totalorder %v1906, 3
        %vm1928 = vcmp.lt.s32.totalorder %v1906, 4
        %v1929 = vsel %vm1925, %v1909, %v1912
        %v1930 = vsel %vm1928, %v1918, 2102212464
        %v1931 = vsel %vm1927, %v1915, %v1930
        %v1932 = vsel %vm1926, %v1929, %v1931
        %v1933 = vsel %vm1925, %v1912, %v1915
        %v1934 = vsel %vm1928, %v1921, 920167782
        %v1935 = vsel %vm1927, %v1918, %v1934
        %v1936 = vsel %vm1926, %v1933, %v1935
        %v1937 = vsel %vm1925, %v1915, %v1918
        %v1938 = vsel %vm1928, %v1924, 1326507024
        %v1939 = vsel %vm1927, %v1921, %v1938
        %v1940 = vsel %vm1926, %v1937, %v1939
        %v1941 = vshll.u32 %v1901, 8
        %v1942 = vmul.u32.u64.compose %v1941, %v1940
        %v1943 = vextract.low.u32 %v1942
        %v1944 = vextract.high.u32 %v1942
        %v1945 = vmul.u32.u64.compose %v1941, %v1936
        %v1946 = vextract.low.u32 %v1945
        %v1947 = vextract.high.u32 %v1945
        %v1948 = vmul.u32 %v1941, %v1932
        %v1949 = vadd.s32 %v1944, %v1946
        %vm1950 = vc.u32 %v1944, %v1946
        %v1951 = vadd.s32 %v1947, 1
        %v1952 = vsel %vm1950, %v1951, %v1947
        %v1953 = vadd.s32 %v1948, %v1952
        %v1954 = vadd.s32 %v1953, 536870912
        %v1955 = vshrl.u32 %v1954, 30
        %v1956 = vshll.u32 %v1955, 30
        %v1957 = vsub.s32 %v1953, %v1956
        %vm1958 = vcmp.lt.s32.totalorder %v1957, 0
        %v1959 = vsub.s32 0, %v1957
        %v1960 = vsel %vm1958, %v1959, %v1957
        %v1961 = vclz %v1960
        %v1962 = vsub.s32 %v1961, 2
        %vm1963 = vcmp.gt.s32.totalorder 0, %v1962
        %v1964 = vsel %vm1963, 0, %v1962
        %v1965 = vsub.s32 32, %v1964
        %v1966 = vshll.u32 %v1957, %v1964
        %v1967 = vshrl.u32 %v1949, %v1965
        %v1968 = vor.u32 %v1966, %v1967
        %v1969 = vsub.s32 4294967266, %v1964
        %v1970 = vadd.s32 %v1969, 127
        %v1971 = vshll.u32 %v1970, 23
        %v1972 = vor.u32 4788187, %v1971
        %v1973 = vand.u32 2147483647, %v1972
        %v1975 = vcvt.s32.f32 %v1968
        %v1976 = vmul.f32 %v1975, %v1973
        %v1977 = vxor.u32 %v1976, 2147483648
        %v1978 = vsel %vm1895, %v1977, %v1976
        %v1979 = vsub.s32 4, %v1955
        %v1980 = vsel %vm1895, %v1979, %v1955
        %v1981 = vsel %vm1894, %v1477, %v1978
        %v1982 = vsel %vm1894, 0, %v1980
        %v1983 = vcosq.f32.pop %v1981
        %v1984 = vsinq.f32.pop %v1981
        %vm1985 = vweird.f32 %v1477
        %v1986 = vadd.s32 %v1982, 3
        %v1987 = vand.u32 %v1986, 3
        %vm1988 = vcmp.lt.s32.totalorder %v1987, 2
        %vm1989 = vcmp.eq.s32.totalorder %v1987, 0
        %v1990 = vxor.u32 %v1984, 2147483648
        %v1991 = vsel %vm1989, %v1983, %v1990
        %vm1992 = vcmp.eq.s32.totalorder %v1987, 2
        %v1993 = vxor.u32 %v1983, 2147483648
        %v1994 = vsel %vm1992, %v1993, %v1984
        %v1995 = vsel %vm1988, %v1991, %v1994
        %v1996 = vsel %vm1985, nan, %v1995
        %v1997 = vand.u32 2147483647, %v1478
        %vm1998 = vcmp.le.f32.partialorder %v1997, 0.7853982
        %vm1999 = vcmp.lt.s32.totalorder %v1478, 0
        %v2000 = vand.u32 %v1478, 2139095040
        %v2001 = vshrl.u32 %v2000, 23
        %v2002 = vsub.s32 %v2001, 127
        %v2003 = vand.u32 2147483647, %v1478
        %v2004 = vand.u32 %v2003, 8388607
        %v2005 = vor.u32 %v2004, 8388608
        %v2006 = vsub.s32 0, %v2005
        %v2007 = vadd.s32 %v2002, 1
        %vm2008 = vcmp.gt.s32.totalorder %v2007, 0
        %v2009 = vsel %vm2008, %v2007, 0
        %v2010 = vshrl.u32 %v2009, 5
        %v2011 = vand.u32 %v2009, 31
        %v2012 = vsub.s32 32, %v2011
        %v2013 = vshrl.u32 683565275, %v2012
        %v2014 = vshll.u32 683565275, %v2011
        %v2015 = vshrl.u32 2475754826, %v2012
        %v2016 = vor.u32 %v2014, %v2015
        %v2017 = vshll.u32 2475754826, %v2011
        %v2018 = vshrl.u32 2131351028, %v2012
        %v2019 = vor.u32 %v2017, %v2018
        %v2020 = vshll.u32 2131351028, %v2011
        %v2021 = vshrl.u32 2102212464, %v2012
        %v2022 = vor.u32 %v2020, %v2021
        %v2023 = vshll.u32 2102212464, %v2011
        %v2024 = vshrl.u32 920167782, %v2012
        %v2025 = vor.u32 %v2023, %v2024
        %v2026 = vshll.u32 920167782, %v2011
        %v2027 = vshrl.u32 1326507024, %v2012
        %v2028 = vor.u32 %v2026, %v2027
        %vm2029 = vcmp.lt.s32.totalorder %v2010, 1
        %vm2030 = vcmp.lt.s32.totalorder %v2010, 2
        %vm2031 = vcmp.lt.s32.totalorder %v2010, 3
        %vm2032 = vcmp.lt.s32.totalorder %v2010, 4
        %v2033 = vsel %vm2029, %v2013, %v2016
        %v2034 = vsel %vm2032, %v2022, 2102212464
        %v2035 = vsel %vm2031, %v2019, %v2034
        %v2036 = vsel %vm2030, %v2033, %v2035
        %v2037 = vsel %vm2029, %v2016, %v2019
        %v2038 = vsel %vm2032, %v2025, 920167782
        %v2039 = vsel %vm2031, %v2022, %v2038
        %v2040 = vsel %vm2030, %v2037, %v2039
        %v2041 = vsel %vm2029, %v2019, %v2022
        %v2042 = vsel %vm2032, %v2028, 1326507024
        %v2043 = vsel %vm2031, %v2025, %v2042
        %v2044 = vsel %vm2030, %v2041, %v2043
        %v2045 = vshll.u32 %v2005, 8
        %v2046 = vmul.u32.u64.compose %v2045, %v2044
        %v2047 = vextract.low.u32 %v2046
        %v2048 = vextract.high.u32 %v2046
        %v2049 = vmul.u32.u64.compose %v2045, %v2040
        %v2050 = vextract.low.u32 %v2049
        %v2051 = vextract.high.u32 %v2049
        %v2052 = vmul.u32 %v2045, %v2036
        %v2053 = vadd.s32 %v2048, %v2050
        %vm2054 = vc.u32 %v2048, %v2050
        %v2055 = vadd.s32 %v2051, 1
        %v2056 = vsel %vm2054, %v2055, %v2051
        %v2057 = vadd.s32 %v2052, %v2056
        %v2058 = vadd.s32 %v2057, 536870912
        %v2059 = vshrl.u32 %v2058, 30
        %v2060 = vshll.u32 %v2059, 30
        %v2061 = vsub.s32 %v2057, %v2060
        %vm2062 = vcmp.lt.s32.totalorder %v2061, 0
        %v2063 = vsub.s32 0, %v2061
        %v2064 = vsel %vm2062, %v2063, %v2061
        %v2065 = vclz %v2064
        %v2066 = vsub.s32 %v2065, 2
        %vm2067 = vcmp.gt.s32.totalorder 0, %v2066
        %v2068 = vsel %vm2067, 0, %v2066
        %v2069 = vsub.s32 32, %v2068
        %v2070 = vshll.u32 %v2061, %v2068
        %v2071 = vshrl.u32 %v2053, %v2069
        %v2072 = vor.u32 %v2070, %v2071
        %v2073 = vsub.s32 4294967266, %v2068
        %v2074 = vadd.s32 %v2073, 127
        %v2075 = vshll.u32 %v2074, 23
        %v2076 = vor.u32 4788187, %v2075
        %v2077 = vand.u32 2147483647, %v2076
        %v2079 = vcvt.s32.f32 %v2072
        %v2080 = vmul.f32 %v2079, %v2077
        %v2081 = vxor.u32 %v2080, 2147483648
        %v2082 = vsel %vm1999, %v2081, %v2080
        %v2083 = vsub.s32 4, %v2059
        %v2084 = vsel %vm1999, %v2083, %v2059
        %v2085 = vsel %vm1998, %v1478, %v2082
        %v2086 = vsel %vm1998, 0, %v2084
        %v2087 = vcosq.f32.pop %v2085
        %v2088 = vsinq.f32.pop %v2085
        %vm2089 = vweird.f32 %v1478
        %v2090 = vadd.s32 %v2086, 3
        %v2091 = vand.u32 %v2090, 3
        %vm2092 = vcmp.lt.s32.totalorder %v2091, 2
        %vm2093 = vcmp.eq.s32.totalorder %v2091, 0
        %v2094 = vxor.u32 %v2088, 2147483648
        %v2095 = vsel %vm2093, %v2087, %v2094
        %vm2096 = vcmp.eq.s32.totalorder %v2091, 2
        %v2097 = vxor.u32 %v2087, 2147483648
        %v2098 = vsel %vm2096, %v2097, %v2088
        %v2099 = vsel %vm2092, %v2095, %v2098
        %v2100 = vsel %vm2089, nan, %v2099
        %v2101 = vand.u32 2147483647, %v1479
        %vm2102 = vcmp.le.f32.partialorder %v2101, 0.7853982
        %vm2103 = vcmp.lt.s32.totalorder %v1479, 0
        %v2104 = vand.u32 %v1479, 2139095040
        %v2105 = vshrl.u32 %v2104, 23
        %v2106 = vsub.s32 %v2105, 127
        %v2107 = vand.u32 2147483647, %v1479
        %v2108 = vand.u32 %v2107, 8388607
        %v2109 = vor.u32 %v2108, 8388608
        %v2110 = vsub.s32 0, %v2109
        %v2111 = vadd.s32 %v2106, 1
        %vm2112 = vcmp.gt.s32.totalorder %v2111, 0
        %v2113 = vsel %vm2112, %v2111, 0
        %v2114 = vshrl.u32 %v2113, 5
        %v2115 = vand.u32 %v2113, 31
        %v2116 = vsub.s32 32, %v2115
        %v2117 = vshrl.u32 683565275, %v2116
        %v2118 = vshll.u32 683565275, %v2115
        %v2119 = vshrl.u32 2475754826, %v2116
        %v2120 = vor.u32 %v2118, %v2119
        %v2121 = vshll.u32 2475754826, %v2115
        %v2122 = vshrl.u32 2131351028, %v2116
        %v2123 = vor.u32 %v2121, %v2122
        %v2124 = vshll.u32 2131351028, %v2115
        %v2125 = vshrl.u32 2102212464, %v2116
        %v2126 = vor.u32 %v2124, %v2125
        %v2127 = vshll.u32 2102212464, %v2115
        %v2128 = vshrl.u32 920167782, %v2116
        %v2129 = vor.u32 %v2127, %v2128
        %v2130 = vshll.u32 920167782, %v2115
        %v2131 = vshrl.u32 1326507024, %v2116
        %v2132 = vor.u32 %v2130, %v2131
        %vm2133 = vcmp.lt.s32.totalorder %v2114, 1
        %vm2134 = vcmp.lt.s32.totalorder %v2114, 2
        %vm2135 = vcmp.lt.s32.totalorder %v2114, 3
        %vm2136 = vcmp.lt.s32.totalorder %v2114, 4
        %v2137 = vsel %vm2133, %v2117, %v2120
        %v2138 = vsel %vm2136, %v2126, 2102212464
        %v2139 = vsel %vm2135, %v2123, %v2138
        %v2140 = vsel %vm2134, %v2137, %v2139
        %v2141 = vsel %vm2133, %v2120, %v2123
        %v2142 = vsel %vm2136, %v2129, 920167782
        %v2143 = vsel %vm2135, %v2126, %v2142
        %v2144 = vsel %vm2134, %v2141, %v2143
        %v2145 = vsel %vm2133, %v2123, %v2126
        %v2146 = vsel %vm2136, %v2132, 1326507024
        %v2147 = vsel %vm2135, %v2129, %v2146
        %v2148 = vsel %vm2134, %v2145, %v2147
        %v2149 = vshll.u32 %v2109, 8
        %v2150 = vmul.u32.u64.compose %v2149, %v2148
        %v2151 = vextract.low.u32 %v2150
        %v2152 = vextract.high.u32 %v2150
        %v2153 = vmul.u32.u64.compose %v2149, %v2144
        %v2154 = vextract.low.u32 %v2153
        %v2155 = vextract.high.u32 %v2153
        %v2156 = vmul.u32 %v2149, %v2140
        %v2157 = vadd.s32 %v2152, %v2154
        %vm2158 = vc.u32 %v2152, %v2154
        %v2159 = vadd.s32 %v2155, 1
        %v2160 = vsel %vm2158, %v2159, %v2155
        %v2161 = vadd.s32 %v2156, %v2160
        %v2162 = vadd.s32 %v2161, 536870912
        %v2163 = vshrl.u32 %v2162, 30
        %v2164 = vshll.u32 %v2163, 30
        %v2165 = vsub.s32 %v2161, %v2164
        %vm2166 = vcmp.lt.s32.totalorder %v2165, 0
        %v2167 = vsub.s32 0, %v2165
        %v2168 = vsel %vm2166, %v2167, %v2165
        %v2169 = vclz %v2168
        %v2170 = vsub.s32 %v2169, 2
        %vm2171 = vcmp.gt.s32.totalorder 0, %v2170
        %v2172 = vsel %vm2171, 0, %v2170
        %v2173 = vsub.s32 32, %v2172
        %v2174 = vshll.u32 %v2165, %v2172
        %v2175 = vshrl.u32 %v2157, %v2173
        %v2176 = vor.u32 %v2174, %v2175
        %v2177 = vsub.s32 4294967266, %v2172
        %v2178 = vadd.s32 %v2177, 127
        %v2179 = vshll.u32 %v2178, 23
        %v2180 = vor.u32 4788187, %v2179
        %v2181 = vand.u32 2147483647, %v2180
        %v2183 = vcvt.s32.f32 %v2176
        %v2184 = vmul.f32 %v2183, %v2181
        %v2185 = vxor.u32 %v2184, 2147483648
        %v2186 = vsel %vm2103, %v2185, %v2184
        %v2187 = vsub.s32 4, %v2163
        %v2188 = vsel %vm2103, %v2187, %v2163
        %v2189 = vsel %vm2102, %v1479, %v2186
        %v2190 = vsel %vm2102, 0, %v2188
        %v2191 = vcosq.f32.pop %v2189
        %v2192 = vsinq.f32.pop %v2189
        %vm2193 = vweird.f32 %v1479
        %v2194 = vadd.s32 %v2190, 3
        %v2195 = vand.u32 %v2194, 3
        %vm2196 = vcmp.lt.s32.totalorder %v2195, 2
        %vm2197 = vcmp.eq.s32.totalorder %v2195, 0
        %v2198 = vxor.u32 %v2192, 2147483648
        %v2199 = vsel %vm2197, %v2191, %v2198
        %vm2200 = vcmp.eq.s32.totalorder %v2195, 2
        %v2201 = vxor.u32 %v2191, 2147483648
        %v2202 = vsel %vm2200, %v2201, %v2192
        %v2203 = vsel %vm2196, %v2199, %v2202
        %v2204 = vsel %vm2193, nan, %v2203
        %v2205 = vand.u32 2147483647, %v1480
        %vm2206 = vcmp.le.f32.partialorder %v2205, 0.7853982
        %vm2207 = vcmp.lt.s32.totalorder %v1480, 0
        %v2208 = vand.u32 %v1480, 2139095040
        %v2209 = vshrl.u32 %v2208, 23
        %v2210 = vsub.s32 %v2209, 127
        %v2211 = vand.u32 2147483647, %v1480
        %v2212 = vand.u32 %v2211, 8388607
        %v2213 = vor.u32 %v2212, 8388608
        %v2214 = vsub.s32 0, %v2213
        %v2215 = vadd.s32 %v2210, 1
        %vm2216 = vcmp.gt.s32.totalorder %v2215, 0
        %v2217 = vsel %vm2216, %v2215, 0
        %v2218 = vshrl.u32 %v2217, 5
        %v2219 = vand.u32 %v2217, 31
        %v2220 = vsub.s32 32, %v2219
        %v2221 = vshrl.u32 683565275, %v2220
        %v2222 = vshll.u32 683565275, %v2219
        %v2223 = vshrl.u32 2475754826, %v2220
        %v2224 = vor.u32 %v2222, %v2223
        %v2225 = vshll.u32 2475754826, %v2219
        %v2226 = vshrl.u32 2131351028, %v2220
        %v2227 = vor.u32 %v2225, %v2226
        %v2228 = vshll.u32 2131351028, %v2219
        %v2229 = vshrl.u32 2102212464, %v2220
        %v2230 = vor.u32 %v2228, %v2229
        %v2231 = vshll.u32 2102212464, %v2219
        %v2232 = vshrl.u32 920167782, %v2220
        %v2233 = vor.u32 %v2231, %v2232
        %v2234 = vshll.u32 920167782, %v2219
        %v2235 = vshrl.u32 1326507024, %v2220
        %v2236 = vor.u32 %v2234, %v2235
        %vm2237 = vcmp.lt.s32.totalorder %v2218, 1
        %vm2238 = vcmp.lt.s32.totalorder %v2218, 2
        %vm2239 = vcmp.lt.s32.totalorder %v2218, 3
        %vm2240 = vcmp.lt.s32.totalorder %v2218, 4
        %v2241 = vsel %vm2237, %v2221, %v2224
        %v2242 = vsel %vm2240, %v2230, 2102212464
        %v2243 = vsel %vm2239, %v2227, %v2242
        %v2244 = vsel %vm2238, %v2241, %v2243
        %v2245 = vsel %vm2237, %v2224, %v2227
        %v2246 = vsel %vm2240, %v2233, 920167782
        %v2247 = vsel %vm2239, %v2230, %v2246
        %v2248 = vsel %vm2238, %v2245, %v2247
        %v2249 = vsel %vm2237, %v2227, %v2230
        %v2250 = vsel %vm2240, %v2236, 1326507024
        %v2251 = vsel %vm2239, %v2233, %v2250
        %v2252 = vsel %vm2238, %v2249, %v2251
        %v2253 = vshll.u32 %v2213, 8
        %v2254 = vmul.u32.u64.compose %v2253, %v2252
        %v2255 = vextract.low.u32 %v2254
        %v2256 = vextract.high.u32 %v2254
        %v2257 = vmul.u32.u64.compose %v2253, %v2248
        %v2258 = vextract.low.u32 %v2257
        %v2259 = vextract.high.u32 %v2257
        %v2260 = vmul.u32 %v2253, %v2244
        %v2261 = vadd.s32 %v2256, %v2258
        %vm2262 = vc.u32 %v2256, %v2258
        %v2263 = vadd.s32 %v2259, 1
        %v2264 = vsel %vm2262, %v2263, %v2259
        %v2265 = vadd.s32 %v2260, %v2264
        %v2266 = vadd.s32 %v2265, 536870912
        %v2267 = vshrl.u32 %v2266, 30
        %v2268 = vshll.u32 %v2267, 30
        %v2269 = vsub.s32 %v2265, %v2268
        %vm2270 = vcmp.lt.s32.totalorder %v2269, 0
        %v2271 = vsub.s32 0, %v2269
        %v2272 = vsel %vm2270, %v2271, %v2269
        %v2273 = vclz %v2272
        %v2274 = vsub.s32 %v2273, 2
        %vm2275 = vcmp.gt.s32.totalorder 0, %v2274
        %v2276 = vsel %vm2275, 0, %v2274
        %v2277 = vsub.s32 32, %v2276
        %v2278 = vshll.u32 %v2269, %v2276
        %v2279 = vshrl.u32 %v2261, %v2277
        %v2280 = vor.u32 %v2278, %v2279
        %v2281 = vsub.s32 4294967266, %v2276
        %v2282 = vadd.s32 %v2281, 127
        %v2283 = vshll.u32 %v2282, 23
        %v2284 = vor.u32 4788187, %v2283
        %v2285 = vand.u32 2147483647, %v2284
        %v2287 = vcvt.s32.f32 %v2280
        %v2288 = vmul.f32 %v2287, %v2285
        %v2289 = vxor.u32 %v2288, 2147483648
        %v2290 = vsel %vm2207, %v2289, %v2288
        %v2291 = vsub.s32 4, %v2267
        %v2292 = vsel %vm2207, %v2291, %v2267
        %v2293 = vsel %vm2206, %v1480, %v2290
        %v2294 = vsel %vm2206, 0, %v2292
        %v2295 = vcosq.f32.pop %v2293
        %v2296 = vsinq.f32.pop %v2293
        %vm2297 = vweird.f32 %v1480
        %v2298 = vadd.s32 %v2294, 3
        %v2299 = vand.u32 %v2298, 3
        %vm2300 = vcmp.lt.s32.totalorder %v2299, 2
        %vm2301 = vcmp.eq.s32.totalorder %v2299, 0
        %v2302 = vxor.u32 %v2296, 2147483648
        %v2303 = vsel %vm2301, %v2295, %v2302
        %vm2304 = vcmp.eq.s32.totalorder %v2299, 2
        %v2305 = vxor.u32 %v2295, 2147483648
        %v2306 = vsel %vm2304, %v2305, %v2296
        %v2307 = vsel %vm2300, %v2303, %v2306
        %v2308 = vsel %vm2297, nan, %v2307
        %v2309 = vadd.f32 %v1583, %v1996
        %v2310 = vadd.f32 %v1686, %v2100
        %v2311 = vadd.f32 %v1789, %v2204
        %v2312 = vadd.f32 %v1892, %v2308
        %v2313 = vsub.f32 0.0, %v2309
        %v2314 = vsub.f32 0.0, %v2310
        %v2315 = vsub.f32 0.0, %v2311
        %v2316 = vsub.f32 0.0, %v2312
        %v2317 = vsub.f32 %v1583, %v1996
        %v2318 = vsub.f32 %v1686, %v2100
        %v2319 = vsub.f32 %v1789, %v2204
        %v2320 = vsub.f32 %v1892, %v2308
        %v2321 = vld [vmem:[#allocation2] sm:$0xf]
        %v2322 = vld [vmem:[#allocation2 + $0x4] sm:$0xf]
        %v2323 = vld [vmem:[#allocation2 + $0x8] sm:$0xf]
        %v2324 = vld [vmem:[#allocation2 + $0xc] sm:$0xf]
        %v2325 = vld [vmem:[#allocation2 + $0x10] sm:$0xf]
        %v2326 = vld [vmem:[#allocation2 + $0x14] sm:$0xf]
        %v2327 = vld [vmem:[#allocation2 + $0x18] sm:$0xf]
        %v2328 = vld [vmem:[#allocation2 + $0x1c] sm:$0xf]
        %v2329 = vld [vmem:[#allocation2 + $0x20] sm:$0xf]
        %v2330 = vld [vmem:[#allocation2 + $0x24] sm:$0xf]
        %v2331 = vld [vmem:[#allocation2 + $0x28] sm:$0xf]
        %v2332 = vld [vmem:[#allocation2 + $0x2c] sm:$0xf]
        %v2333 = vld [vmem:[#allocation2 + $0x30] sm:$0xf]
        %v2334 = vld [vmem:[#allocation2 + $0x34] sm:$0xf]
        %v2335 = vld [vmem:[#allocation2 + $0x38] sm:$0xf]
        %v2336 = vld [vmem:[#allocation2 + $0x3c] sm:$0xf]
        %v2353 = vunpack.c.l.b16 %v2321
        %v2354 = vunpack.c.l.b16 %v2322
        %v2355 = vunpack.c.l.b16 %v2323
        %v2356 = vunpack.c.l.b16 %v2324
        %v2357 = vunpack.c.l.b16 %v2325
        %v2358 = vunpack.c.l.b16 %v2326
        %v2359 = vunpack.c.l.b16 %v2327
        %v2360 = vunpack.c.l.b16 %v2328
        %v2361 = vunpack.c.l.b16 %v2329
        %v2362 = vunpack.c.l.b16 %v2330
        %v2363 = vunpack.c.l.b16 %v2331
        %v2364 = vunpack.c.l.b16 %v2332
        %v2365 = vunpack.c.l.b16 %v2333
        %v2366 = vunpack.c.l.b16 %v2334
        %v2367 = vunpack.c.l.b16 %v2335
        %v2368 = vunpack.c.l.b16 %v2336
        %v2369 = vpack.c.b16 %v2354, %v2353
        %v2370 = vpack.c.b16 %v2356, %v2355
        %v2371 = vpack.c.b16 %v2358, %v2357
        %v2372 = vpack.c.b16 %v2360, %v2359
        %v2373 = vpack.c.b16 %v2362, %v2361
        %v2374 = vpack.c.b16 %v2364, %v2363
        %v2375 = vpack.c.b16 %v2366, %v2365
        %v2376 = vpack.c.b16 %v2368, %v2367
        %vm2377 = vcmask 130048
        %v2379 = vsel %vm2377, %v2369, 0
        %v2382 = vsel %vm2377, %v2370, 0
        %v2385 = vsel %vm2377, %v2371, 0
        %v2388 = vsel %vm2377, %v2372, 0
        %v2391 = vsel %vm2377, %v2373, 0
        %v2394 = vsel %vm2377, %v2374, 0
        %v2397 = vsel %vm2377, %v2375, 0
        %v2400 = vsel %vm2377, %v2376, 0
        %2402 = vmatprep.subr.bf16.mxu0 0
        %2403 = vmatpush1.bf16.msra.mxu0 0
        %2404 = vmatprep.subr.bf16.mxu0 0
        %2405 = vmatpush1.bf16.msra.mxu0 0
        %2406 = vmatprep.subr.bf16.mxu0 0
        %2407 = vmatpush1.bf16.msra.mxu0 0
        %2408 = vmatprep.subr.bf16.mxu0 0
        %2409 = vmatpush1.bf16.msra.mxu0 0
        %2410 = vmatprep.subr.bf16.mxu0 0
        %2411 = vmatpush1.bf16.msra.mxu0 0
        %2412 = vmatprep.subr.bf16.mxu0 0
        %2413 = vmatpush1.bf16.msra.mxu0 0
        %2414 = vmatprep.subr.bf16.mxu0 0
        %2415 = vmatpush1.bf16.msra.mxu0 0
        %2416 = vmatprep.subr.bf16.mxu0 %v1456
        %2417 = vmatpush1.bf16.msra.mxu0 %v1455
        %2418 = vmatprep.subr.bf16.mxu0 0
        %2419 = vmatpush2.bf16.msra.mxu0 0
        %2420 = vmatprep.subr.bf16.mxu0 0
        %2421 = vmatpush2.bf16.msra.mxu0 0
        %2422 = vmatprep.subr.bf16.mxu0 0
        %2423 = vmatpush2.bf16.msra.mxu0 0
        %2424 = vmatprep.subr.bf16.mxu0 0
        %2425 = vmatpush2.bf16.msra.mxu0 0
        %2426 = vmatprep.subr.bf16.mxu0 0
        %2427 = vmatpush2.bf16.msra.mxu0 0
        %2428 = vmatprep.subr.bf16.mxu0 0
        %2429 = vmatpush2.bf16.msra.mxu0 0
        %2430 = vmatprep.subr.bf16.mxu0 0
        %2431 = vmatpush2.bf16.msra.mxu0 0
        %2432 = vmatprep.subr.bf16.mxu0 0
        %2433 = vmatpush2.bf16.msra.mxu0 0
        %2434 = vmatprep.mubr.bf16.mxu0 0
        %2435 = vmatmul.mubr.bf16.gmra.mxu0 %v2379
        %v2436 = vpop.f32.mrf.mxu0
        %v2437 = vadd.f32 0.0, %v2436
        %v2438 = vpop.f32.mrf.mxu0
        %v2439 = vadd.f32 0.0, %v2438
        %v2440 = vpop.f32.mrf.mxu0
        %v2441 = vadd.f32 0.0, %v2440
        %v2442 = vpop.f32.mrf.mxu0
        %v2443 = vadd.f32 0.0, %v2442
        %2444 = vmatprep.mubr.bf16.mxu0 0
        %2445 = vmatmul.mubr.bf16.gmra.mxu0 %v2382
        %v2446 = vpop.f32.mrf.mxu0
        %v2447 = vadd.f32 0.0, %v2446
        %v2448 = vpop.f32.mrf.mxu0
        %v2449 = vadd.f32 0.0, %v2448
        %v2450 = vpop.f32.mrf.mxu0
        %v2451 = vadd.f32 0.0, %v2450
        %v2452 = vpop.f32.mrf.mxu0
        %v2453 = vadd.f32 0.0, %v2452
        %2454 = vmatprep.mubr.bf16.mxu0 0
        %2455 = vmatmul.mubr.bf16.gmra.mxu0 %v2385
        %v2456 = vpop.f32.mrf.mxu0
        %v2457 = vadd.f32 0.0, %v2456
        %v2458 = vpop.f32.mrf.mxu0
        %v2459 = vadd.f32 0.0, %v2458
        %v2460 = vpop.f32.mrf.mxu0
        %v2461 = vadd.f32 0.0, %v2460
        %v2462 = vpop.f32.mrf.mxu0
        %v2463 = vadd.f32 0.0, %v2462
        %2464 = vmatprep.mubr.bf16.mxu0 0
        %2465 = vmatmul.mubr.bf16.gmra.mxu0 %v2388
        %v2466 = vpop.f32.mrf.mxu0
        %v2467 = vadd.f32 0.0, %v2466
        %v2468 = vpop.f32.mrf.mxu0
        %v2469 = vadd.f32 0.0, %v2468
        %v2470 = vpop.f32.mrf.mxu0
        %v2471 = vadd.f32 0.0, %v2470
        %v2472 = vpop.f32.mrf.mxu0
        %v2473 = vadd.f32 0.0, %v2472
        %2474 = vmatprep.mubr.bf16.mxu0 0
        %2475 = vmatmul.mubr.bf16.gmra.mxu0 %v2391
        %v2476 = vpop.f32.mrf.mxu0
        %v2477 = vadd.f32 0.0, %v2476
        %v2478 = vpop.f32.mrf.mxu0
        %v2479 = vadd.f32 0.0, %v2478
        %v2480 = vpop.f32.mrf.mxu0
        %v2481 = vadd.f32 0.0, %v2480
        %v2482 = vpop.f32.mrf.mxu0
        %v2483 = vadd.f32 0.0, %v2482
        %2484 = vmatprep.mubr.bf16.mxu0 0
        %2485 = vmatmul.mubr.bf16.gmra.mxu0 %v2394
        %v2486 = vpop.f32.mrf.mxu0
        %v2487 = vadd.f32 0.0, %v2486
        %v2488 = vpop.f32.mrf.mxu0
        %v2489 = vadd.f32 0.0, %v2488
        %v2490 = vpop.f32.mrf.mxu0
        %v2491 = vadd.f32 0.0, %v2490
        %v2492 = vpop.f32.mrf.mxu0
        %v2493 = vadd.f32 0.0, %v2492
        %2494 = vmatprep.mubr.bf16.mxu0 0
        %2495 = vmatmul.mubr.bf16.gmra.mxu0 %v2397
        %v2496 = vpop.f32.mrf.mxu0
        %v2497 = vadd.f32 0.0, %v2496
        %v2498 = vpop.f32.mrf.mxu0
        %v2499 = vadd.f32 0.0, %v2498
        %v2500 = vpop.f32.mrf.mxu0
        %v2501 = vadd.f32 0.0, %v2500
        %v2502 = vpop.f32.mrf.mxu0
        %v2503 = vadd.f32 0.0, %v2502
        %2504 = vmatprep.mubr.bf16.mxu0 0
        %2505 = vmatmul.mubr.bf16.gmra.mxu0 %v2400
        %v2506 = vpop.f32.mrf.mxu0
        %v2507 = vadd.f32 0.0, %v2506
        %v2508 = vpop.f32.mrf.mxu0
        %v2509 = vadd.f32 0.0, %v2508
        %v2510 = vpop.f32.mrf.mxu0
        %v2511 = vadd.f32 0.0, %v2510
        %v2512 = vpop.f32.mrf.mxu0
        %v2513 = vadd.f32 0.0, %v2512
        %2514 = vdwg.mxu0
        %2515 = vmatprep.subr.bf16.mxu0 0
        %2516 = vmatpush1.bf16.msra.mxu0 0
        %2517 = vmatprep.subr.bf16.mxu0 0
        %2518 = vmatpush1.bf16.msra.mxu0 0
        %2519 = vmatprep.subr.bf16.mxu0 0
        %2520 = vmatpush1.bf16.msra.mxu0 0
        %2521 = vmatprep.subr.bf16.mxu0 0
        %2522 = vmatpush1.bf16.msra.mxu0 0
        %2523 = vmatprep.subr.bf16.mxu0 0
        %2524 = vmatpush1.bf16.msra.mxu0 0
        %2525 = vmatprep.subr.bf16.mxu0 0
        %2526 = vmatpush1.bf16.msra.mxu0 0
        %2527 = vmatprep.subr.bf16.mxu0 0
        %2528 = vmatpush1.bf16.msra.mxu0 0
        %2529 = vmatprep.subr.bf16.mxu0 %v1458
        %2530 = vmatpush1.bf16.msra.mxu0 %v1457
        %2531 = vmatprep.subr.bf16.mxu0 0
        %2532 = vmatpush2.bf16.msra.mxu0 0
        %2533 = vmatprep.subr.bf16.mxu0 0
        %2534 = vmatpush2.bf16.msra.mxu0 0
        %2535 = vmatprep.subr.bf16.mxu0 0
        %2536 = vmatpush2.bf16.msra.mxu0 0
        %2537 = vmatprep.subr.bf16.mxu0 0
        %2538 = vmatpush2.bf16.msra.mxu0 0
        %2539 = vmatprep.subr.bf16.mxu0 0
        %2540 = vmatpush2.bf16.msra.mxu0 0
        %2541 = vmatprep.subr.bf16.mxu0 0
        %2542 = vmatpush2.bf16.msra.mxu0 0
        %2543 = vmatprep.subr.bf16.mxu0 0
        %2544 = vmatpush2.bf16.msra.mxu0 0
        %2545 = vmatprep.subr.bf16.mxu0 0
        %2546 = vmatpush2.bf16.msra.mxu0 0
        %2547 = vmatprep.mubr.bf16.mxu0 0
        %2548 = vmatmul.mubr.bf16.gmra.mxu0 %v2379
        %v2549 = vpop.f32.mrf.mxu0
        %v2550 = vadd.f32 0.0, %v2549
        %v2551 = vpop.f32.mrf.mxu0
        %v2552 = vadd.f32 0.0, %v2551
        %v2553 = vpop.f32.mrf.mxu0
        %v2554 = vadd.f32 0.0, %v2553
        %v2555 = vpop.f32.mrf.mxu0
        %v2556 = vadd.f32 0.0, %v2555
        %2557 = vmatprep.mubr.bf16.mxu0 0
        %2558 = vmatmul.mubr.bf16.gmra.mxu0 %v2382
        %v2559 = vpop.f32.mrf.mxu0
        %v2560 = vadd.f32 0.0, %v2559
        %v2561 = vpop.f32.mrf.mxu0
        %v2562 = vadd.f32 0.0, %v2561
        %v2563 = vpop.f32.mrf.mxu0
        %v2564 = vadd.f32 0.0, %v2563
        %v2565 = vpop.f32.mrf.mxu0
        %v2566 = vadd.f32 0.0, %v2565
        %2567 = vmatprep.mubr.bf16.mxu0 0
        %2568 = vmatmul.mubr.bf16.gmra.mxu0 %v2385
        %v2569 = vpop.f32.mrf.mxu0
        %v2570 = vadd.f32 0.0, %v2569
        %v2571 = vpop.f32.mrf.mxu0
        %v2572 = vadd.f32 0.0, %v2571
        %v2573 = vpop.f32.mrf.mxu0
        %v2574 = vadd.f32 0.0, %v2573
        %v2575 = vpop.f32.mrf.mxu0
        %v2576 = vadd.f32 0.0, %v2575
        %2577 = vmatprep.mubr.bf16.mxu0 0
        %2578 = vmatmul.mubr.bf16.gmra.mxu0 %v2388
        %v2579 = vpop.f32.mrf.mxu0
        %v2580 = vadd.f32 0.0, %v2579
        %v2581 = vpop.f32.mrf.mxu0
        %v2582 = vadd.f32 0.0, %v2581
        %v2583 = vpop.f32.mrf.mxu0
        %v2584 = vadd.f32 0.0, %v2583
        %v2585 = vpop.f32.mrf.mxu0
        %v2586 = vadd.f32 0.0, %v2585
        %2587 = vmatprep.mubr.bf16.mxu0 0
        %2588 = vmatmul.mubr.bf16.gmra.mxu0 %v2391
        %v2589 = vpop.f32.mrf.mxu0
        %v2590 = vadd.f32 0.0, %v2589
        %v2591 = vpop.f32.mrf.mxu0
        %v2592 = vadd.f32 0.0, %v2591
        %v2593 = vpop.f32.mrf.mxu0
        %v2594 = vadd.f32 0.0, %v2593
        %v2595 = vpop.f32.mrf.mxu0
        %v2596 = vadd.f32 0.0, %v2595
        %2597 = vmatprep.mubr.bf16.mxu0 0
        %2598 = vmatmul.mubr.bf16.gmra.mxu0 %v2394
        %v2599 = vpop.f32.mrf.mxu0
        %v2600 = vadd.f32 0.0, %v2599
        %v2601 = vpop.f32.mrf.mxu0
        %v2602 = vadd.f32 0.0, %v2601
        %v2603 = vpop.f32.mrf.mxu0
        %v2604 = vadd.f32 0.0, %v2603
        %v2605 = vpop.f32.mrf.mxu0
        %v2606 = vadd.f32 0.0, %v2605
        %2607 = vmatprep.mubr.bf16.mxu0 0
        %2608 = vmatmul.mubr.bf16.gmra.mxu0 %v2397
        %v2609 = vpop.f32.mrf.mxu0
        %v2610 = vadd.f32 0.0, %v2609
        %v2611 = vpop.f32.mrf.mxu0
        %v2612 = vadd.f32 0.0, %v2611
        %v2613 = vpop.f32.mrf.mxu0
        %v2614 = vadd.f32 0.0, %v2613
        %v2615 = vpop.f32.mrf.mxu0
        %v2616 = vadd.f32 0.0, %v2615
        %2617 = vmatprep.mubr.bf16.mxu0 0
        %2618 = vmatmul.mubr.bf16.gmra.mxu0 %v2400
        %v2619 = vpop.f32.mrf.mxu0
        %v2620 = vadd.f32 0.0, %v2619
        %v2621 = vpop.f32.mrf.mxu0
        %v2622 = vadd.f32 0.0, %v2621
        %v2623 = vpop.f32.mrf.mxu0
        %v2624 = vadd.f32 0.0, %v2623
        %v2625 = vpop.f32.mrf.mxu0
        %v2626 = vadd.f32 0.0, %v2625
        %2627 = vdwg.mxu0
        %v2628 = vadd.f32 %v2437, %v2590
        %v2629 = vadd.f32 %v2439, %v2592
        %v2630 = vadd.f32 %v2441, %v2594
        %v2631 = vadd.f32 %v2443, %v2596
        %v2632 = vadd.f32 %v2447, %v2600
        %v2633 = vadd.f32 %v2449, %v2602
        %v2634 = vadd.f32 %v2451, %v2604
        %v2635 = vadd.f32 %v2453, %v2606
        %v2636 = vadd.f32 %v2457, %v2610
        %v2637 = vadd.f32 %v2459, %v2612
        %v2638 = vadd.f32 %v2461, %v2614
        %v2639 = vadd.f32 %v2463, %v2616
        %v2640 = vadd.f32 %v2467, %v2620
        %v2641 = vadd.f32 %v2469, %v2622
        %v2642 = vadd.f32 %v2471, %v2624
        %v2643 = vadd.f32 %v2473, %v2626
        %v2644 = vsub.f32 %v2477, %v2550
        %v2645 = vsub.f32 %v2479, %v2552
        %v2646 = vsub.f32 %v2481, %v2554
        %v2647 = vsub.f32 %v2483, %v2556
        %v2648 = vsub.f32 %v2487, %v2560
        %v2649 = vsub.f32 %v2489, %v2562
        %v2650 = vsub.f32 %v2491, %v2564
        %v2651 = vsub.f32 %v2493, %v2566
        %v2652 = vsub.f32 %v2497, %v2570
        %v2653 = vsub.f32 %v2499, %v2572
        %v2654 = vsub.f32 %v2501, %v2574
        %v2655 = vsub.f32 %v2503, %v2576
        %v2656 = vsub.f32 %v2507, %v2580
        %v2657 = vsub.f32 %v2509, %v2582
        %v2658 = vsub.f32 %v2511, %v2584
        %v2659 = vsub.f32 %v2513, %v2586
        %v2660 = vadd.f32 %v2628, %v2644
        %v2661 = vadd.f32 %v2629, %v2645
        %v2662 = vadd.f32 %v2630, %v2646
        %v2663 = vadd.f32 %v2631, %v2647
        %v2664 = vadd.f32 %v2632, %v2648
        %v2665 = vadd.f32 %v2633, %v2649
        %v2666 = vadd.f32 %v2634, %v2650
        %v2667 = vadd.f32 %v2635, %v2651
        %v2668 = vadd.f32 %v2636, %v2652
        %v2669 = vadd.f32 %v2637, %v2653
        %v2670 = vadd.f32 %v2638, %v2654
        %v2671 = vadd.f32 %v2639, %v2655
        %v2672 = vadd.f32 %v2640, %v2656
        %v2673 = vadd.f32 %v2641, %v2657
        %v2674 = vadd.f32 %v2642, %v2658
        %v2675 = vadd.f32 %v2643, %v2659
        %v2676 = vmul.f32 %v1583, %v2660
        %v2677 = vmul.f32 %v1686, %v2661
        %v2678 = vmul.f32 %v1789, %v2662
        %v2679 = vmul.f32 %v1892, %v2663
        %v2680 = vmul.f32 %v1583, %v2664
        %v2681 = vmul.f32 %v1686, %v2665
        %v2682 = vmul.f32 %v1789, %v2666
        %v2683 = vmul.f32 %v1892, %v2667
        %v2684 = vmul.f32 %v1583, %v2668
        %v2685 = vmul.f32 %v1686, %v2669
        %v2686 = vmul.f32 %v1789, %v2670
        %v2687 = vmul.f32 %v1892, %v2671
        %v2688 = vmul.f32 %v1583, %v2672
        %v2689 = vmul.f32 %v1686, %v2673
        %v2690 = vmul.f32 %v1789, %v2674
        %v2691 = vmul.f32 %v1892, %v2675
        %v2692 = vmul.f32 %v2644, %v2317
        %v2693 = vmul.f32 %v2645, %v2318
        %v2694 = vmul.f32 %v2646, %v2319
        %v2695 = vmul.f32 %v2647, %v2320
        %v2696 = vmul.f32 %v2648, %v2317
        %v2697 = vmul.f32 %v2649, %v2318
        %v2698 = vmul.f32 %v2650, %v2319
        %v2699 = vmul.f32 %v2651, %v2320
        %v2700 = vmul.f32 %v2652, %v2317
        %v2701 = vmul.f32 %v2653, %v2318
        %v2702 = vmul.f32 %v2654, %v2319
        %v2703 = vmul.f32 %v2655, %v2320
        %v2704 = vmul.f32 %v2656, %v2317
        %v2705 = vmul.f32 %v2657, %v2318
        %v2706 = vmul.f32 %v2658, %v2319
        %v2707 = vmul.f32 %v2659, %v2320
        %v2708 = vsub.f32 %v2676, %v2692
        %v2709 = vsub.f32 %v2677, %v2693
        %v2710 = vsub.f32 %v2678, %v2694
        %v2711 = vsub.f32 %v2679, %v2695
        %v2712 = vsub.f32 %v2680, %v2696
        %v2713 = vsub.f32 %v2681, %v2697
        %v2714 = vsub.f32 %v2682, %v2698
        %v2715 = vsub.f32 %v2683, %v2699
        %v2716 = vsub.f32 %v2684, %v2700
        %v2717 = vsub.f32 %v2685, %v2701
        %v2718 = vsub.f32 %v2686, %v2702
        %v2719 = vsub.f32 %v2687, %v2703
        %v2720 = vsub.f32 %v2688, %v2704
        %v2721 = vsub.f32 %v2689, %v2705
        %v2722 = vsub.f32 %v2690, %v2706
        %v2723 = vsub.f32 %v2691, %v2707
        %v2724 = vadd.f32 %v2708, %v2710
        %v2725 = vrot.slane %v2724, 4
        %v2726 = vadd.f32 %v2724, %v2725
        %v2727 = vrot.slane %v2726, 2
        %v2728 = vadd.f32 %v2726, %v2727
        %v2729 = vrot.slane %v2728, 1
        %v2730 = vadd.f32 %v2728, %v2729
        %v2731 = vadd.f32 %v2709, %v2711
        %v2732 = vrot.slane %v2731, 4
        %v2733 = vadd.f32 %v2731, %v2732
        %v2734 = vrot.slane %v2733, 2
        %v2735 = vadd.f32 %v2733, %v2734
        %v2736 = vrot.slane %v2735, 1
        %v2737 = vadd.f32 %v2735, %v2736
        %v2738 = vadd.f32 %v2712, %v2714
        %v2739 = vrot.slane %v2738, 4
        %v2740 = vadd.f32 %v2738, %v2739
        %v2741 = vrot.slane %v2740, 2
        %v2742 = vadd.f32 %v2740, %v2741
        %v2743 = vrot.slane %v2742, 1
        %v2744 = vadd.f32 %v2742, %v2743
        %v2745 = vadd.f32 %v2713, %v2715
        %v2746 = vrot.slane %v2745, 4
        %v2747 = vadd.f32 %v2745, %v2746
        %v2748 = vrot.slane %v2747, 2
        %v2749 = vadd.f32 %v2747, %v2748
        %v2750 = vrot.slane %v2749, 1
        %v2751 = vadd.f32 %v2749, %v2750
        %v2752 = vadd.f32 %v2716, %v2718
        %v2753 = vrot.slane %v2752, 4
        %v2754 = vadd.f32 %v2752, %v2753
        %v2755 = vrot.slane %v2754, 2
        %v2756 = vadd.f32 %v2754, %v2755
        %v2757 = vrot.slane %v2756, 1
        %v2758 = vadd.f32 %v2756, %v2757
        %v2759 = vadd.f32 %v2717, %v2719
        %v2760 = vrot.slane %v2759, 4
        %v2761 = vadd.f32 %v2759, %v2760
        %v2762 = vrot.slane %v2761, 2
        %v2763 = vadd.f32 %v2761, %v2762
        %v2764 = vrot.slane %v2763, 1
        %v2765 = vadd.f32 %v2763, %v2764
        %v2766 = vadd.f32 %v2720, %v2722
        %v2767 = vrot.slane %v2766, 4
        %v2768 = vadd.f32 %v2766, %v2767
        %v2769 = vrot.slane %v2768, 2
        %v2770 = vadd.f32 %v2768, %v2769
        %v2771 = vrot.slane %v2770, 1
        %v2772 = vadd.f32 %v2770, %v2771
        %v2773 = vadd.f32 %v2721, %v2723
        %v2774 = vrot.slane %v2773, 4
        %v2775 = vadd.f32 %v2773, %v2774
        %v2776 = vrot.slane %v2775, 2
        %v2777 = vadd.f32 %v2775, %v2776
        %v2778 = vrot.slane %v2777, 1
        %v2779 = vadd.f32 %v2777, %v2778
        %v2780 = vmul.f32 %v2628, %v2313
        %v2781 = vmul.f32 %v2629, %v2314
        %v2782 = vmul.f32 %v2630, %v2315
        %v2783 = vmul.f32 %v2631, %v2316
        %v2784 = vmul.f32 %v2632, %v2313
        %v2785 = vmul.f32 %v2633, %v2314
        %v2786 = vmul.f32 %v2634, %v2315
        %v2787 = vmul.f32 %v2635, %v2316
        %v2788 = vmul.f32 %v2636, %v2313
        %v2789 = vmul.f32 %v2637, %v2314
        %v2790 = vmul.f32 %v2638, %v2315
        %v2791 = vmul.f32 %v2639, %v2316
        %v2792 = vmul.f32 %v2640, %v2313
        %v2793 = vmul.f32 %v2641, %v2314
        %v2794 = vmul.f32 %v2642, %v2315
        %v2795 = vmul.f32 %v2643, %v2316
        %v2796 = vadd.f32 %v2676, %v2780
        %v2797 = vadd.f32 %v2677, %v2781
        %v2798 = vadd.f32 %v2678, %v2782
        %v2799 = vadd.f32 %v2679, %v2783
        %v2800 = vadd.f32 %v2680, %v2784
        %v2801 = vadd.f32 %v2681, %v2785
        %v2802 = vadd.f32 %v2682, %v2786
        %v2803 = vadd.f32 %v2683, %v2787
        %v2804 = vadd.f32 %v2684, %v2788
        %v2805 = vadd.f32 %v2685, %v2789
        %v2806 = vadd.f32 %v2686, %v2790
        %v2807 = vadd.f32 %v2687, %v2791
        %v2808 = vadd.f32 %v2688, %v2792
        %v2809 = vadd.f32 %v2689, %v2793
        %v2810 = vadd.f32 %v2690, %v2794
        %v2811 = vadd.f32 %v2691, %v2795
        %v2812 = vadd.f32 %v2796, %v2798
        %v2813 = vrot.slane %v2812, 4
        %v2814 = vadd.f32 %v2812, %v2813
        %v2815 = vrot.slane %v2814, 2
        %v2816 = vadd.f32 %v2814, %v2815
        %v2817 = vrot.slane %v2816, 1
        %v2818 = vadd.f32 %v2816, %v2817
        %v2819 = vadd.f32 %v2797, %v2799
        %v2820 = vrot.slane %v2819, 4
        %v2821 = vadd.f32 %v2819, %v2820
        %v2822 = vrot.slane %v2821, 2
        %v2823 = vadd.f32 %v2821, %v2822
        %v2824 = vrot.slane %v2823, 1
        %v2825 = vadd.f32 %v2823, %v2824
        %v2826 = vadd.f32 %v2800, %v2802
        %v2827 = vrot.slane %v2826, 4
        %v2828 = vadd.f32 %v2826, %v2827
        %v2829 = vrot.slane %v2828, 2
        %v2830 = vadd.f32 %v2828, %v2829
        %v2831 = vrot.slane %v2830, 1
        %v2832 = vadd.f32 %v2830, %v2831
        %v2833 = vadd.f32 %v2801, %v2803
        %v2834 = vrot.slane %v2833, 4
        %v2835 = vadd.f32 %v2833, %v2834
        %v2836 = vrot.slane %v2835, 2
        %v2837 = vadd.f32 %v2835, %v2836
        %v2838 = vrot.slane %v2837, 1
        %v2839 = vadd.f32 %v2837, %v2838
        %v2840 = vadd.f32 %v2804, %v2806
        %v2841 = vrot.slane %v2840, 4
        %v2842 = vadd.f32 %v2840, %v2841
        %v2843 = vrot.slane %v2842, 2
        %v2844 = vadd.f32 %v2842, %v2843
        %v2845 = vrot.slane %v2844, 1
        %v2846 = vadd.f32 %v2844, %v2845
        %v2847 = vadd.f32 %v2805, %v2807
        %v2848 = vrot.slane %v2847, 4
        %v2849 = vadd.f32 %v2847, %v2848
        %v2850 = vrot.slane %v2849, 2
        %v2851 = vadd.f32 %v2849, %v2850
        %v2852 = vrot.slane %v2851, 1
        %v2853 = vadd.f32 %v2851, %v2852
        %v2854 = vadd.f32 %v2808, %v2810
        %v2855 = vrot.slane %v2854, 4
        %v2856 = vadd.f32 %v2854, %v2855
        %v2857 = vrot.slane %v2856, 2
        %v2858 = vadd.f32 %v2856, %v2857
        %v2859 = vrot.slane %v2858, 1
        %v2860 = vadd.f32 %v2858, %v2859
        %v2861 = vadd.f32 %v2809, %v2811
        %v2862 = vrot.slane %v2861, 4
        %v2863 = vadd.f32 %v2861, %v2862
        %v2864 = vrot.slane %v2863, 2
        %v2865 = vadd.f32 %v2863, %v2864
        %v2866 = vrot.slane %v2865, 1
        %v2867 = vadd.f32 %v2865, %v2866
        %v2868 = vld [vmem:[%s352] sm:$0xf]
        %v2869 = vld [vmem:[%s352 + $0x4] sm:$0xf]
        %v2870 = vld [vmem:[%s352 + $0x8] sm:$0xf]
        %v2871 = vld [vmem:[%s352 + $0xc] sm:$0xf]
        %v2872 = vrsqrt.pop %v2868
        %v2873 = vmul.f32 %v2868, %v2872
        %vm2874 = vcmp.eq.f32.partialorder %v2868, inf
        %v2875 = vsel %vm2874, %v2868, %v2873
        %vm2876 = vcmp.eq.f32.partialorder %v2868, 0.0
        %v2877 = vand.u32 %v2868, 2147483648
        %v2878 = vsel %vm2876, %v2877, %v2875
        %v2879 = vrsqrt.pop %v2869
        %v2880 = vmul.f32 %v2869, %v2879
        %vm2881 = vcmp.eq.f32.partialorder %v2869, inf
        %v2882 = vsel %vm2881, %v2869, %v2880
        %vm2883 = vcmp.eq.f32.partialorder %v2869, 0.0
        %v2884 = vand.u32 %v2869, 2147483648
        %v2885 = vsel %vm2883, %v2884, %v2882
        %v2886 = vrsqrt.pop %v2870
        %v2887 = vmul.f32 %v2870, %v2886
        %vm2888 = vcmp.eq.f32.partialorder %v2870, inf
        %v2889 = vsel %vm2888, %v2870, %v2887
        %vm2890 = vcmp.eq.f32.partialorder %v2870, 0.0
        %v2891 = vand.u32 %v2870, 2147483648
        %v2892 = vsel %vm2890, %v2891, %v2889
        %v2893 = vrsqrt.pop %v2871
        %v2894 = vmul.f32 %v2871, %v2893
        %vm2895 = vcmp.eq.f32.partialorder %v2871, inf
        %v2896 = vsel %vm2895, %v2871, %v2894
        %vm2897 = vcmp.eq.f32.partialorder %v2871, 0.0
        %v2898 = vand.u32 %v2871, 2147483648
        %v2899 = vsel %vm2897, %v2898, %v2896
        %v2900 = vmul.f32 %v2878, 0.0625
        %v2901 = vmul.f32 %v2885, 0.0625
        %v2902 = vmul.f32 %v2892, 0.0625
        %v2903 = vmul.f32 %v2899, 0.0625
        %v2908 = vlaneseq
        %v2909 = vshrl.u32 %v2908, 7
        %v2910 = vsub.s32 0, %v2909
        %v2911 = vrot.slane %v2900, %v2910
        %v2912 = vlaneseq
        %v2913 = vshrl.u32 %v2912, 7
        %v2914 = vsub.s32 2, %v2913
        %v2915 = vrot.slane %v2900, %v2914
        %v2916 = vlaneseq
        %v2917 = vshrl.u32 %v2916, 7
        %v2918 = vsub.s32 0, %v2917
        %v2919 = vrot.slane %v2901, %v2918
        %v2920 = vlaneseq
        %v2921 = vshrl.u32 %v2920, 7
        %v2922 = vsub.s32 2, %v2921
        %v2923 = vrot.slane %v2901, %v2922
        %v2924 = vlaneseq
        %v2925 = vshrl.u32 %v2924, 7
        %v2926 = vsub.s32 0, %v2925
        %v2927 = vrot.slane %v2902, %v2926
        %v2928 = vlaneseq
        %v2929 = vshrl.u32 %v2928, 7
        %v2930 = vsub.s32 2, %v2929
        %v2931 = vrot.slane %v2902, %v2930
        %v2932 = vlaneseq
        %v2933 = vshrl.u32 %v2932, 7
        %v2934 = vsub.s32 0, %v2933
        %v2935 = vrot.slane %v2903, %v2934
        %v2936 = vlaneseq
        %v2937 = vshrl.u32 %v2936, 7
        %v2938 = vsub.s32 2, %v2937
        %v2939 = vrot.slane %v2903, %v2938
        %v2948 = vmul.f32 %v2730, %v2911
        %v2949 = vmul.f32 %v2737, %v2915
        %v2950 = vmul.f32 %v2744, %v2919
        %v2951 = vmul.f32 %v2751, %v2923
        %v2952 = vmul.f32 %v2758, %v2927
        %v2953 = vmul.f32 %v2765, %v2931
        %v2954 = vmul.f32 %v2772, %v2935
        %v2955 = vmul.f32 %v2779, %v2939
        %v2964 = vcombine.low %v2948, %v2949
        %v2965 = vcombine.low %v2950, %v2951
        %v2966 = vcombine.low %v2952, %v2953
        %v2967 = vcombine.low %v2954, %v2955
        %v2968 = vrot.slane %v2965, 7
        %vm2969 = vcmask 1041409
        %v2970 = vsel %vm2969, %v2968, %v2964
        %vm2971 = vcmask 1045509
        %v2972 = vsel %vm2971, %v2968, %v2970
        %v2973 = vrot.slane %v2966, 6
        %vm2974 = vcmask 1042434
        %v2975 = vsel %vm2974, %v2973, %v2972
        %vm2976 = vcmask 1046534
        %v2977 = vsel %vm2976, %v2973, %v2975
        %v2978 = vrot.slane %v2967, 5
        %vm2979 = vcmask 1043459
        %v2980 = vsel %vm2979, %v2978, %v2977
        %vm2981 = vcmask 1047559
        %v2982 = vsel %vm2981, %v2978, %v2980
        %2984 = vst [vmem:[%s393] sm:$0xff] %v2982
        %v2985 = vlaneseq
        %v2986 = vshrl.u32 %v2985, 7
        %v2987 = vsub.s32 1, %v2986
        %v2988 = vrot.slane %v2900, %v2987
        %v2989 = vlaneseq
        %v2990 = vshrl.u32 %v2989, 7
        %v2991 = vsub.s32 3, %v2990
        %v2992 = vrot.slane %v2900, %v2991
        %v2993 = vlaneseq
        %v2994 = vshrl.u32 %v2993, 7
        %v2995 = vsub.s32 1, %v2994
        %v2996 = vrot.slane %v2901, %v2995
        %v2997 = vlaneseq
        %v2998 = vshrl.u32 %v2997, 7
        %v2999 = vsub.s32 3, %v2998
        %v3000 = vrot.slane %v2901, %v2999
        %v3001 = vlaneseq
        %v3002 = vshrl.u32 %v3001, 7
        %v3003 = vsub.s32 1, %v3002
        %v3004 = vrot.slane %v2902, %v3003
        %v3005 = vlaneseq
        %v3006 = vshrl.u32 %v3005, 7
        %v3007 = vsub.s32 3, %v3006
        %v3008 = vrot.slane %v2902, %v3007
        %v3009 = vlaneseq
        %v3010 = vshrl.u32 %v3009, 7
        %v3011 = vsub.s32 1, %v3010
        %v3012 = vrot.slane %v2903, %v3011
        %v3013 = vlaneseq
        %v3014 = vshrl.u32 %v3013, 7
        %v3015 = vsub.s32 3, %v3014
        %v3016 = vrot.slane %v2903, %v3015
        %v3025 = vmul.f32 %v2818, %v2988
        %v3026 = vmul.f32 %v2825, %v2992
        %v3027 = vmul.f32 %v2832, %v2996
        %v3028 = vmul.f32 %v2839, %v3000
        %v3029 = vmul.f32 %v2846, %v3004
        %v3030 = vmul.f32 %v2853, %v3008
        %v3031 = vmul.f32 %v2860, %v3012
        %v3032 = vmul.f32 %v2867, %v3016
        %v3041 = vcombine.low %v3025, %v3026
        %v3042 = vcombine.low %v3027, %v3028
        %v3043 = vcombine.low %v3029, %v3030
        %v3044 = vcombine.low %v3031, %v3032
        %v3045 = vrot.slane %v3042, 7
        %v3046 = vsel %vm2969, %v3045, %v3041
        %v3047 = vsel %vm2971, %v3045, %v3046
        %v3048 = vrot.slane %v3043, 6
        %v3049 = vsel %vm2974, %v3048, %v3047
        %v3050 = vsel %vm2976, %v3048, %v3049
        %v3051 = vrot.slane %v3044, 5
        %v3052 = vsel %vm2979, %v3051, %v3050
        %v3053 = vsel %vm2981, %v3051, %v3052
        %s3055 = scalar_lea.vmem %s393, 8 [#allocation12]
        %3056 = vst [vmem:[%s3055] sm:$0xff] %v3053
        %s3057 = sand.u32 %s179, 1
        %s3058 = scalar_lea.sflag [#allocation5], %s3057
        %s3059 = sand.u32 %s179, 1
        %s3060 = smul.addr %s3059, 16
        %s3061 = scalar_lea.vmem [#allocation12], %s3060
        // Predicated region
        $region65: #{tpu_custom_call.1} parent=39 // pred_check
          %p3062 = pneg %p189
        $region66: #{tpu_custom_call.1} parent=39 // pred_check_branch
          %3064 = sbr.rel (%p3062) target = $region68
        $region67: #{tpu_custom_call.1} parent=39 // pred_region
          %s3065 = smul.u32 2, %s33
          %s3067 = ssub.s32 256, 256
          %3068 = vsyncadd %s3058, %s3067
          %s3069 = smul.addr %s32, 8
          %s3070 = sadd.s32 %s3065, %s3069
          %s3071 = smul.addr %s3070, 64
          %s3072 = scalar_lea.hbm %s5, %s3071
          %s3073 = sshll.u32 %s3061, 4
          %s3074 = int_to_ptr.vmem [resolvable:$true] %s3073
          %3079 = dma.vmem_to_hbm [thread:$0]  %s3074, 256, %s3072, %s3058, 128, 256, 8
        $region68: #{tpu_custom_call.1} parent=39 // pred_fallthru
          _
      $region40: #{tpu_custom_call.1} parent=5 // pred_fallthru
        _
      %p3080 = scmp.le.s32.totalorder 2, %s23
      // Predicated region
      $region69: #{tpu_custom_call.1} parent=5 // pred_check
        %p3081 = pneg %p3080
      $region70: #{tpu_custom_call.1} parent=5 // pred_check_branch
        %3083 = sbr.rel (%p3081) target = $region72
      $region71: #{tpu_custom_call.1} parent=5 // pred_region
        %s3084 = ssub.s32 %s23, 2
        // Predicated region
        $region73: #{tpu_custom_call.1} parent=71 // pred_check
          %p3085 = pneg %p195
        $region74: #{tpu_custom_call.1} parent=71 // pred_check_branch
          %3087 = sbr.rel (%p3085) target = $region76
        $region75: #{tpu_custom_call.1} parent=71 // pred_region
          %s3088 = sand.u32 %s180, 1
          %s3089 = scalar_lea.sflag [#allocation5], %s3088
          %s3090 = sand.u32 %s180, 1
          %s3091 = smul.addr %s3090, 16
          %s3092 = scalar_lea.vmem [#allocation12], %s3091
          %3093 = dma.done %s3089, 256
        $region76: #{tpu_custom_call.1} parent=71 // pred_fallthru
          _
      $region72: #{tpu_custom_call.1} parent=5 // pred_fallthru
        _
    $region6: #{tpu_custom_call.1} parent=1 // loop_footer
      %s27 = sadd.s32 1, %s23
    $region7: #{tpu_custom_call.1} parent=1 // loop_footer_branch
      %22 = sbr.rel target = $region3
    $region8: #{tpu_custom_call.1} parent=1 // loop_exit
      _
    %3094 = vsyncpa [#allocation4], 1
    %s3095 = scalar_lea.sflag [#allocation4], 1
    %3096 = vsyncpa %s3095, 1
    %3097 = vsyncpa [#allocation7], 1
    %s3098 = scalar_lea.sflag [#allocation7], 1
    %3099 = vsyncpa %s3098, 1
    %3100 = vsyncpa [#allocation10], 1
    %s3101 = scalar_lea.sflag [#allocation10], 1
    %3102 = vsyncpa %s3101, 1
    %3103 = vsyncpa [#allocation5], 1
    %s3104 = scalar_lea.sflag [#allocation5], 1
    %3105 = vsyncpa %s3104, 1

</llo_original>
